<compile_context>
chip_gen: v7x
topology: tpu7x:2x2x1
jax: 0.10.0
libtpu: 0.0.40
codegen_flags: <defaults>
</compile_context>

<pallas_src>
import functools

import jax
import jax.numpy as jnp
from jax.experimental import pallas as pl
from jax.experimental.pallas import tpu as pltpu

FEAT_CH = 8
HIDDEN = 32
OUT_DIM = 16


def feature_agg_kernel(x_ref, wv_ref, bv_ref, wgf_ref, wgvm_ref, bg_ref,
                       wa_ref, ba_ref, wf_ref, bf_ref, o_ref, *, feat_ch, sub):
    S, C, tile = x_ref.shape            # (views, feat_ch+4, points-in-block)
    F = feat_ch
    n_sub = tile // sub                 # static
    mmt = wv_ref.dtype                  # matmul operand dtype (bf16 fast / f32 exact)
    f32 = jnp.float32

    # Tiny, grid-invariant weights (fetched into VMEM once; constant index_map).
    wv = wv_ref[...]                    # (F, 4)    view_fc weight
    bv = bv_ref[...]                    # (F, 1)    f32
    wgf = wgf_ref[...]                  # (32, F)   global_fc, image-feature part
    wgvm = wgvm_ref[...]                # (32, 2F)  global_fc, [var | mean] part
    bg = bg_ref[...]                    # (32, 1)   f32
    wa = wa_ref[...]                    # (8, 32)   agg_w_fc, real row = 0 (zero-padded)
    ba = ba_ref[...]                    # (1, 1)    f32
    wf = wf_ref[...]                    # (16, 32)  fc weight (transposed)
    bf = bf_ref[...]                    # (16, 1)   f32

    # Sub-chunk the lane (point) axis so the working set stays in vregs.
    for j in range(n_sub):                                      # static unroll, n_sub small
        lanes = pl.ds(j * sub, sub)

        # ---- load per-view slabs (points on lanes); concat views along lanes ----
        feat = [x_ref[s, pl.ds(0, F), lanes].astype(f32) for s in range(S)]   # S x (F, sub)
        dirs = [x_ref[s, pl.ds(F, 4), lanes] for s in range(S)]               # S x (4, sub)
        feat_cat = jnp.concatenate(feat, axis=1)                              # (F, S*sub) f32
        dirs_cat = jnp.concatenate(dirs, axis=1).astype(mmt)                  # (4, S*sub)

        # ---- view_fc (one batched matmul over all S views) + residual ----
        view = jnp.dot(wv, dirs_cat, preferred_element_type=f32) + bv         # (F, S*sub)
        img = feat_cat + jnp.maximum(view, 0.0)                               # (F, S*sub) f32

        # ---- per-point mean / unbiased variance over the S views (f32 VPU) ----
        iv = [img[:, s * sub:(s + 1) * sub] for s in range(S)]                # lane slices of img
        ssum = iv[0]
        for s in range(1, S):
            ssum = ssum + iv[s]
        mean = ssum * (1.0 / S)                                               # (F, sub)
        d = iv[0] - mean
        vsum = d * d
        for s in range(1, S):
            d = iv[s] - mean
            vsum = vsum + d * d
        var = vsum * (1.0 / (S - 1))                                          # torch.var (N-1)

        # ---- global_fc: per-point [var|mean] part fused into one K=2F matmul
        #      (reused for all S views), image part batched over views ----
        vm = jnp.concatenate([var, mean], axis=0).astype(mmt)                 # (2F, sub)
        base = jnp.dot(wgvm, vm, preferred_element_type=f32) + bg             # (32, sub)
        g_pre = jnp.dot(wgf, img.astype(mmt), preferred_element_type=f32)     # (32, S*sub)
        g = jnp.concatenate(
            [jnp.maximum(g_pre[:, s * sub:(s + 1) * sub] + base, 0.0)
             for s in range(S)], axis=1)                                      # (32, S*sub)

        # ---- agg_w_fc (batched over views; only row 0 of padded weight is real) ----
        w = jnp.dot(wa, g.astype(mmt), preferred_element_type=f32)[0:1, :] + ba
        w = jnp.maximum(w, 0.0)                                               # (1, S*sub)

        # ---- softmax over views + weighted sum (element-wise, lane-dense) ----
        ws = [w[:, s * sub:(s + 1) * sub] for s in range(S)]                  # S x (1, sub)
        wmax = ws[0]
        for s in range(1, S):
            wmax = jnp.maximum(wmax, ws[s])
        es = [jnp.exp(ws[s] - wmax) for s in range(S)]
        esum = es[0]
        for s in range(1, S):
            esum = esum + es[s]
        inv = pl.reciprocal(esum, approx=True)                                # EUP slot
        inv = inv * (2.0 - esum * inv)                                        # one Newton step -> ~f32 exact

        acc = g[:, 0:sub] * es[0]
        for s in range(1, S):
            acc = acc + g[:, s * sub:(s + 1) * sub] * es[s]
        im_feat = acc * inv                                                   # (32, sub) f32

        # ---- fc + ReLU; lane-dense store (unmasked vst) ----
        out = jnp.dot(wf, im_feat.astype(mmt), preferred_element_type=f32) + bf
        o_ref[:, lanes] = jnp.maximum(out, 0.0).astype(o_ref.dtype)           # (16, sub)


def _round_up(n, m):
    return (n + m - 1) // m * m


def _pick_tile(p128, batch, target):
    """Largest point tile (multiple of 128) that divides the 128-aligned point
    count (no extra padding pass), fits `target`, and — when possible — leaves
    >= 4 total grid steps so both v7x TensorCores get pipelined work."""
    n = p128 // 128
    target = max(128, target)
    divs = [d for d in range(1, n + 1) if n % d == 0 and 128 * d <= target]
    good = [d for d in divs if batch * (n // d) >= 4]
    return 128 * (max(good) if good else max(divs))


def feature_agg(x, params, *, feat_ch=FEAT_CH, tile=2048, sub=256,
                matmul_dtype=jnp.bfloat16, channels_last=True):
    """x: (B, S, P, feat_ch+4) — same layout the PyTorch module receives.

    Returns (B, P, 16) when channels_last=True (PyTorch layout).  Pass
    channels_last=False to get the lane-dense (B, 16, P) directly and skip the
    XLA output transpose if the consumer can take it.
    """
    B, S, P, C = x.shape
    assert C == feat_ch + 4
    assert S >= 2, "unbiased variance over views requires at least 2 source views"
    wv, bv, wg, bg, wa, ba, wf, bf = params
    f32 = jnp.float32
    F = feat_ch

    # ---- pack the tiny weights into the layouts the kernel consumes
    #      (matmul weights in the matmul operand dtype; biases stay f32) ----
    wv_k = wv.T.astype(matmul_dtype)                               # (F, 4)
    bv_k = bv.reshape(F, 1).astype(f32)                            # (F, 1)
    wgf_k = wg[:F].T.astype(matmul_dtype)                          # (32, F)
    wgvm_k = wg[F:].T.astype(matmul_dtype)                         # (32, 2F) = [var | mean]
    bg_k = bg.reshape(HIDDEN, 1).astype(f32)                       # (32, 1)
    wa_k = jnp.zeros((8, HIDDEN), matmul_dtype).at[0, :].set(
        wa.reshape(-1).astype(matmul_dtype))                       # (8, 32), row 0 real
    ba_k = ba.reshape(1, 1).astype(f32)                            # (1, 1)
    wf_k = wf.T.astype(matmul_dtype)                               # (16, 32)
    bf_k = bf.reshape(OUT_DIM, 1).astype(f32)                      # (16, 1)

    # ---- single layout pass over x: (B,S,P,C) -> (B,S,C,P), points on lanes.
    #      The <=127-point tail pad fuses into the same copy (no extra pass). ----
    P128 = _round_up(P, 128)
    xt = jnp.transpose(x, (0, 1, 3, 2))
    if P128 != P:
        xt = jnp.pad(xt, ((0, 0), (0, 0), (0, 0), (0, P128 - P)))

    tile = _pick_tile(P128, B, tile)
    sub = max(128, (min(sub, tile) // 128) * 128)
    if tile % sub != 0:
        sub = 128                                 # tile is always a multiple of 128

    grid = (B, P128 // tile)
    _const = lambda b, p: (0, 0)

    kern = functools.partial(feature_agg_kernel, feat_ch=feat_ch, sub=sub)
    out = pl.pallas_call(
        kern,
        out_shape=jax.ShapeDtypeStruct((B, OUT_DIM, P128), x.dtype),
        grid_spec=pltpu.PrefetchScalarGridSpec(
            num_scalar_prefetch=0,
            grid=grid,
            in_specs=[
                # direct (S, C, tile) block of the lane-dense input
                pl.BlockSpec((None, S, C, tile), lambda b, p: (b, 0, 0, p)),
                pl.BlockSpec((F, 4), _const),
                pl.BlockSpec((F, 1), _const),
                pl.BlockSpec((HIDDEN, F), _const),
                pl.BlockSpec((HIDDEN, 2 * F), _const),
                pl.BlockSpec((HIDDEN, 1), _const),
                pl.BlockSpec((8, HIDDEN), _const),
                pl.BlockSpec((1, 1), _const),
                pl.BlockSpec((OUT_DIM, HIDDEN), _const),
                pl.BlockSpec((OUT_DIM, 1), _const),
            ],
            # lane-dense output: (OUT_DIM, tile) blocks, points on lanes
            out_specs=pl.BlockSpec((None, OUT_DIM, tile), lambda b, p: (b, 0, p)),
        ),
        compiler_params=pltpu.CompilerParams(
            dimension_semantics=("parallel", "parallel"),
        ),
    )(xt, wv_k, bv_k, wgf_k, wgvm_k, bg_k, wa_k, ba_k, wf_k, bf_k)

    out = out[:, :, :P]                               # drop point-axis padding
    if channels_last:
        out = jnp.transpose(out, (0, 2, 1))           # (B, P, 16) — PyTorch layout
    return out


def init_params(key, feat_ch=FEAT_CH):
    """Kaiming-normal weights (fan_in, like nn.init.kaiming_normal_), zero biases."""
    k1, k2, k3, k4 = jax.random.split(key, 4)

    def kaiming(k, fan_in, fan_out):
        std = (2.0 / fan_in) ** 0.5
        return jax.random.normal(k, (fan_in, fan_out), jnp.float32) * std

    wv = kaiming(k1, 4, feat_ch)
    bv = jnp.zeros((1, feat_ch), jnp.float32)
    wg = kaiming(k2, 3 * feat_ch, HIDDEN)
    bg = jnp.zeros((1, HIDDEN), jnp.float32)
    wa = kaiming(k3, HIDDEN, 1)
    ba = jnp.zeros((1, 1), jnp.float32)
    wf = kaiming(k4, HIDDEN, OUT_DIM)
    bf = jnp.zeros((1, OUT_DIM), jnp.float32)
    return wv, bv, wg, bg, wa, ba, wf, bf


def feature_agg_ref(x, params, feat_ch=FEAT_CH):
    """Pure-JAX reference replicating the PyTorch forward pass."""
    wv, bv, wg, bg, wa, ba, wf, bf = params
    xp = jnp.transpose(x, (0, 2, 1, 3))                          # (B, P, S, C)
    S = xp.shape[-2]
    view = jax.nn.relu(xp[..., feat_ch:] @ wv + bv[0])
    img_feat = xp[..., :feat_ch] + view
    mean = jnp.mean(img_feat, axis=-2, keepdims=True)
    var = jnp.sum((img_feat - mean) ** 2, axis=-2, keepdims=True) / (S - 1)
    feat = jnp.concatenate(
        [img_feat,
         jnp.broadcast_to(var, img_feat.shape),
         jnp.broadcast_to(mean, img_feat.shape)], axis=-1)
    g = jax.nn.relu(feat @ wg + bg[0])
    w = jax.nn.relu(g @ wa + ba[0])
    agg_w = jax.nn.softmax(w, axis=-2)
    im_feat = jnp.sum(g * agg_w, axis=-2)
    return jax.nn.relu(im_feat @ wf + bf[0])


if __name__ == "__main__":
    key = jax.random.PRNGKey(0)
    kx, kp = jax.random.split(key)

    B, S, P = 2, 4, 1000                       # small: 2 batches, 4 source views, 1000 points
    x = jax.random.normal(kx, (B, S, P, FEAT_CH + 4), jnp.float32)
    params = init_params(kp, FEAT_CH)
    ref = feature_agg_ref(x, params)

    # Exact-semantics check: f32 matmul operands, tight tolerance.
    out_f32 = jax.block_until_ready(feature_agg(x, params, matmul_dtype=jnp.float32))
    assert out_f32.shape == (B, P, OUT_DIM)
    assert jnp.allclose(out_f32, ref, rtol=1e-4, atol=1e-4), "f32 path mismatch vs reference"

    # Default fast path: bf16 matmul operands, f32 accumulation / element-wise.
    # (mixed-precision tolerance; the f32 path above is the exact-semantics check)
    out = jax.block_until_ready(feature_agg(x, params))
    assert out.shape == (B, P, OUT_DIM)
    assert bool(jnp.all(jnp.isfinite(out)))
    assert jnp.allclose(out, ref, rtol=5e-2, atol=3e-1), "bf16 path outside mixed-precision tolerance"

    print("KERNEL_OK")
</pallas_src>

<mosaic_0001>
module attributes {stable_mosaic.version = 11 : i64} {
  func.func @feature_agg_kernel(%arg0: i32, %arg1: i32, %arg2: memref<1x4x12x512xf32, #tpu.memory_space<vmem>>, %arg3: memref<8x4xf32, #tpu.memory_space<vmem>>, %arg4: memref<8x1xf32, #tpu.memory_space<vmem>>, %arg5: memref<32x8xf32, #tpu.memory_space<vmem>>, %arg6: memref<32x16xf32, #tpu.memory_space<vmem>>, %arg7: memref<32x1xf32, #tpu.memory_space<vmem>>, %arg8: memref<8x32xf32, #tpu.memory_space<vmem>>, %arg9: memref<1x1xf32, #tpu.memory_space<vmem>>, %arg10: memref<16x32xf32, #tpu.memory_space<vmem>>, %arg11: memref<16x1xf32, #tpu.memory_space<vmem>>, %arg12: memref<1x16x512xf32, #tpu.memory_space<vmem>>) attributes {dimension_semantics = [#tpu.dimension_semantics<parallel>, #tpu.dimension_semantics<parallel>], iteration_bounds = array<i64: 2, 2>, scalar_prefetch = 0 : i64, scratch_operands = 0 : i64, tpu.core_type = #tpu.core_type<tc>, window_params = [{transform_indices = @transform_0, window_bounds = array<i64: 1, 4, 12, 512>}, {pipeline_mode = #tpu.pipeline_mode<synchronous>, transform_indices = @transform_1, window_bounds = array<i64: 8, 4>}, {pipeline_mode = #tpu.pipeline_mode<synchronous>, transform_indices = @transform_2, window_bounds = array<i64: 8, 1>}, {pipeline_mode = #tpu.pipeline_mode<synchronous>, transform_indices = @transform_3, window_bounds = array<i64: 32, 8>}, {pipeline_mode = #tpu.pipeline_mode<synchronous>, transform_indices = @transform_4, window_bounds = array<i64: 32, 16>}, {pipeline_mode = #tpu.pipeline_mode<synchronous>, transform_indices = @transform_5, window_bounds = array<i64: 32, 1>}, {pipeline_mode = #tpu.pipeline_mode<synchronous>, transform_indices = @transform_6, window_bounds = array<i64: 8, 32>}, {pipeline_mode = #tpu.pipeline_mode<synchronous>, transform_indices = @transform_7, window_bounds = array<i64: 1, 1>}, {pipeline_mode = #tpu.pipeline_mode<synchronous>, transform_indices = @transform_8, window_bounds = array<i64: 16, 32>}, {pipeline_mode = #tpu.pipeline_mode<synchronous>, transform_indices = @transform_9, window_bounds = array<i64: 16, 1>}, {transform_indices = @transform_10, window_bounds = array<i64: 1, 16, 512>}]} {
    %c0 = arith.constant 0 : index
    %c0_0 = arith.constant 0 : index
    %0 = vector.load %arg3[%c0, %c0_0] : memref<8x4xf32, #tpu.memory_space<vmem>>, vector<8x4xf32>
    %c0_1 = arith.constant 0 : index
    %c0_2 = arith.constant 0 : index
    %1 = vector.load %arg4[%c0_1, %c0_2] : memref<8x1xf32, #tpu.memory_space<vmem>>, vector<8x1xf32>
    %c0_3 = arith.constant 0 : index
    %c0_4 = arith.constant 0 : index
    %2 = vector.load %arg5[%c0_3, %c0_4] : memref<32x8xf32, #tpu.memory_space<vmem>>, vector<32x8xf32>
    %c0_5 = arith.constant 0 : index
    %c0_6 = arith.constant 0 : index
    %3 = vector.load %arg6[%c0_5, %c0_6] : memref<32x16xf32, #tpu.memory_space<vmem>>, vector<32x16xf32>
    %c0_7 = arith.constant 0 : index
    %c0_8 = arith.constant 0 : index
    %4 = vector.load %arg7[%c0_7, %c0_8] : memref<32x1xf32, #tpu.memory_space<vmem>>, vector<32x1xf32>
    %c0_9 = arith.constant 0 : index
    %c0_10 = arith.constant 0 : index
    %5 = vector.load %arg8[%c0_9, %c0_10] : memref<8x32xf32, #tpu.memory_space<vmem>>, vector<8x32xf32>
    %c0_11 = arith.constant 0 : index
    %c0_12 = arith.constant 0 : index
    %6 = vector.load %arg9[%c0_11, %c0_12] : memref<1x1xf32, #tpu.memory_space<vmem>>, vector<1x1xf32>
    %c0_13 = arith.constant 0 : index
    %c0_14 = arith.constant 0 : index
    %7 = vector.load %arg10[%c0_13, %c0_14] : memref<16x32xf32, #tpu.memory_space<vmem>>, vector<16x32xf32>
    %c0_15 = arith.constant 0 : index
    %c0_16 = arith.constant 0 : index
    %8 = vector.load %arg11[%c0_15, %c0_16] : memref<16x1xf32, #tpu.memory_space<vmem>>, vector<16x1xf32>
    %c0_17 = arith.constant 0 : index
    %c0_18 = arith.constant 0 : index
    %c0_19 = arith.constant 0 : index
    %c0_20 = arith.constant 0 : index
    %9 = vector.load %arg2[%c0_17, %c0_18, %c0_19, %c0_20] : memref<1x4x12x512xf32, #tpu.memory_space<vmem>>, vector<1x1x8x256xf32>
    %10 = vector.shape_cast %9 : vector<1x1x8x256xf32> to vector<8x256xf32>
    %c0_21 = arith.constant 0 : index
    %c1 = arith.constant 1 : index
    %c0_22 = arith.constant 0 : index
    %c0_23 = arith.constant 0 : index
    %11 = vector.load %arg2[%c0_21, %c1, %c0_22, %c0_23] : memref<1x4x12x512xf32, #tpu.memory_space<vmem>>, vector<1x1x8x256xf32>
    %12 = vector.shape_cast %11 : vector<1x1x8x256xf32> to vector<8x256xf32>
    %c0_24 = arith.constant 0 : index
    %c2 = arith.constant 2 : index
    %c0_25 = arith.constant 0 : index
    %c0_26 = arith.constant 0 : index
    %13 = vector.load %arg2[%c0_24, %c2, %c0_25, %c0_26] : memref<1x4x12x512xf32, #tpu.memory_space<vmem>>, vector<1x1x8x256xf32>
    %14 = vector.shape_cast %13 : vector<1x1x8x256xf32> to vector<8x256xf32>
    %c0_27 = arith.constant 0 : index
    %c3 = arith.constant 3 : index
    %c0_28 = arith.constant 0 : index
    %c0_29 = arith.constant 0 : index
    %15 = vector.load %arg2[%c0_27, %c3, %c0_28, %c0_29] : memref<1x4x12x512xf32, #tpu.memory_space<vmem>>, vector<1x1x8x256xf32>
    %16 = vector.shape_cast %15 : vector<1x1x8x256xf32> to vector<8x256xf32>
    %c0_30 = arith.constant 0 : index
    %c0_31 = arith.constant 0 : index
    %c8 = arith.constant 8 : index
    %c0_32 = arith.constant 0 : index
    %17 = vector.load %arg2[%c0_30, %c0_31, %c8, %c0_32] : memref<1x4x12x512xf32, #tpu.memory_space<vmem>>, vector<1x1x4x256xf32>
    %18 = vector.shape_cast %17 : vector<1x1x4x256xf32> to vector<4x256xf32>
    %c0_33 = arith.constant 0 : index
    %c1_34 = arith.constant 1 : index
    %c8_35 = arith.constant 8 : index
    %c0_36 = arith.constant 0 : index
    %19 = vector.load %arg2[%c0_33, %c1_34, %c8_35, %c0_36] : memref<1x4x12x512xf32, #tpu.memory_space<vmem>>, vector<1x1x4x256xf32>
    %20 = vector.shape_cast %19 : vector<1x1x4x256xf32> to vector<4x256xf32>
    %c0_37 = arith.constant 0 : index
    %c2_38 = arith.constant 2 : index
    %c8_39 = arith.constant 8 : index
    %c0_40 = arith.constant 0 : index
    %21 = vector.load %arg2[%c0_37, %c2_38, %c8_39, %c0_40] : memref<1x4x12x512xf32, #tpu.memory_space<vmem>>, vector<1x1x4x256xf32>
    %22 = vector.shape_cast %21 : vector<1x1x4x256xf32> to vector<4x256xf32>
    %c0_41 = arith.constant 0 : index
    %c3_42 = arith.constant 3 : index
    %c8_43 = arith.constant 8 : index
    %c0_44 = arith.constant 0 : index
    %23 = vector.load %arg2[%c0_41, %c3_42, %c8_43, %c0_44] : memref<1x4x12x512xf32, #tpu.memory_space<vmem>>, vector<1x1x4x256xf32>
    %24 = vector.shape_cast %23 : vector<1x1x4x256xf32> to vector<4x256xf32>
    %25 = tpu.concatenate %10, %12, %14, %16 in 1 : vector<8x256xf32>, vector<8x256xf32>, vector<8x256xf32>, vector<8x256xf32> -> vector<8x1024xf32>
    %26 = tpu.concatenate %18, %20, %22, %24 in 1 : vector<4x256xf32>, vector<4x256xf32>, vector<4x256xf32>, vector<4x256xf32> -> vector<4x1024xf32>
    %cst = arith.constant dense<0.000000e+00> : vector<8x1024xf32>
    %27 = tpu.matmul %0, %26, %cst {dimension_numbers = #tpu.dot_dimension_numbers<[1], [0], [0], [1], [0, 0, 1, 1], [], []>} : vector<8x4xf32>, vector<4x1024xf32>, vector<8x1024xf32> -> vector<8x1024xf32>
    %28 = vector.broadcast %1 : vector<8x1xf32> to vector<8x1024xf32>
    %29 = arith.addf %27, %28 : vector<8x1024xf32>
    %cst_45 = arith.constant 0.000000e+00 : f32
    %30 = vector.broadcast %cst_45 : f32 to vector<8x1024xf32>
    %31 = arith.maximumf %29, %30 : vector<8x1024xf32>
    %32 = arith.addf %25, %31 : vector<8x1024xf32>
    %33 = vector.extract_strided_slice %32 {offsets = [0, 0], sizes = [8, 256], strides = [1, 1]} : vector<8x1024xf32> to vector<8x256xf32>
    %34 = vector.extract_strided_slice %32 {offsets = [0, 256], sizes = [8, 256], strides = [1, 1]} : vector<8x1024xf32> to vector<8x256xf32>
    %35 = vector.extract_strided_slice %32 {offsets = [0, 512], sizes = [8, 256], strides = [1, 1]} : vector<8x1024xf32> to vector<8x256xf32>
    %36 = vector.extract_strided_slice %32 {offsets = [0, 768], sizes = [8, 256], strides = [1, 1]} : vector<8x1024xf32> to vector<8x256xf32>
    %37 = arith.addf %33, %34 : vector<8x256xf32>
    %38 = arith.addf %37, %35 : vector<8x256xf32>
    %39 = arith.addf %38, %36 : vector<8x256xf32>
    %cst_46 = arith.constant 2.500000e-01 : f32
    %40 = vector.broadcast %cst_46 : f32 to vector<8x256xf32>
    %41 = arith.mulf %39, %40 : vector<8x256xf32>
    %42 = arith.subf %33, %41 : vector<8x256xf32>
    %43 = arith.mulf %42, %42 : vector<8x256xf32>
    %44 = arith.subf %34, %41 : vector<8x256xf32>
    %45 = arith.mulf %44, %44 : vector<8x256xf32>
    %46 = arith.addf %43, %45 : vector<8x256xf32>
    %47 = arith.subf %35, %41 : vector<8x256xf32>
    %48 = arith.mulf %47, %47 : vector<8x256xf32>
    %49 = arith.addf %46, %48 : vector<8x256xf32>
    %50 = arith.subf %36, %41 : vector<8x256xf32>
    %51 = arith.mulf %50, %50 : vector<8x256xf32>
    %52 = arith.addf %49, %51 : vector<8x256xf32>
    %cst_47 = arith.constant 0.333333343 : f32
    %53 = vector.broadcast %cst_47 : f32 to vector<8x256xf32>
    %54 = arith.mulf %52, %53 : vector<8x256xf32>
    %55 = tpu.concatenate %54, %41 in 0 : vector<8x256xf32>, vector<8x256xf32> -> vector<16x256xf32>
    %cst_48 = arith.constant dense<0.000000e+00> : vector<32x256xf32>
    %56 = tpu.matmul %3, %55, %cst_48 {dimension_numbers = #tpu.dot_dimension_numbers<[1], [0], [0], [1], [0, 0, 1, 1], [], []>} : vector<32x16xf32>, vector<16x256xf32>, vector<32x256xf32> -> vector<32x256xf32>
    %57 = vector.broadcast %4 : vector<32x1xf32> to vector<32x256xf32>
    %58 = arith.addf %56, %57 : vector<32x256xf32>
    %cst_49 = arith.constant dense<0.000000e+00> : vector<32x1024xf32>
    %59 = tpu.matmul %2, %32, %cst_49 {dimension_numbers = #tpu.dot_dimension_numbers<[1], [0], [0], [1], [0, 0, 1, 1], [], []>} : vector<32x8xf32>, vector<8x1024xf32>, vector<32x1024xf32> -> vector<32x1024xf32>
    %60 = vector.extract_strided_slice %59 {offsets = [0, 0], sizes = [32, 256], strides = [1, 1]} : vector<32x1024xf32> to vector<32x256xf32>
    %61 = arith.addf %60, %58 : vector<32x256xf32>
    %cst_50 = arith.constant 0.000000e+00 : f32
    %62 = vector.broadcast %cst_50 : f32 to vector<32x256xf32>
    %63 = arith.maximumf %61, %62 : vector<32x256xf32>
    %64 = vector.extract_strided_slice %59 {offsets = [0, 256], sizes = [32, 256], strides = [1, 1]} : vector<32x1024xf32> to vector<32x256xf32>
    %65 = arith.addf %64, %58 : vector<32x256xf32>
    %cst_51 = arith.constant 0.000000e+00 : f32
    %66 = vector.broadcast %cst_51 : f32 to vector<32x256xf32>
    %67 = arith.maximumf %65, %66 : vector<32x256xf32>
    %68 = vector.extract_strided_slice %59 {offsets = [0, 512], sizes = [32, 256], strides = [1, 1]} : vector<32x1024xf32> to vector<32x256xf32>
    %69 = arith.addf %68, %58 : vector<32x256xf32>
    %cst_52 = arith.constant 0.000000e+00 : f32
    %70 = vector.broadcast %cst_52 : f32 to vector<32x256xf32>
    %71 = arith.maximumf %69, %70 : vector<32x256xf32>
    %72 = vector.extract_strided_slice %59 {offsets = [0, 768], sizes = [32, 256], strides = [1, 1]} : vector<32x1024xf32> to vector<32x256xf32>
    %73 = arith.addf %72, %58 : vector<32x256xf32>
    %cst_53 = arith.constant 0.000000e+00 : f32
    %74 = vector.broadcast %cst_53 : f32 to vector<32x256xf32>
    %75 = arith.maximumf %73, %74 : vector<32x256xf32>
    %76 = tpu.concatenate %63, %67, %71, %75 in 1 : vector<32x256xf32>, vector<32x256xf32>, vector<32x256xf32>, vector<32x256xf32> -> vector<32x1024xf32>
    %cst_54 = arith.constant dense<0.000000e+00> : vector<8x1024xf32>
    %77 = tpu.matmul %5, %76, %cst_54 {dimension_numbers = #tpu.dot_dimension_numbers<[1], [0], [0], [1], [0, 0, 1, 1], [], []>} : vector<8x32xf32>, vector<32x1024xf32>, vector<8x1024xf32> -> vector<8x1024xf32>
    %78 = vector.extract_strided_slice %77 {offsets = [0, 0], sizes = [1, 1024], strides = [1, 1]} : vector<8x1024xf32> to vector<1x1024xf32>
    %79 = vector.broadcast %6 : vector<1x1xf32> to vector<1x1024xf32>
    %80 = arith.addf %78, %79 : vector<1x1024xf32>
    %cst_55 = arith.constant 0.000000e+00 : f32
    %81 = vector.broadcast %cst_55 : f32 to vector<1x1024xf32>
    %82 = arith.maximumf %80, %81 : vector<1x1024xf32>
    %83 = vector.extract_strided_slice %82 {offsets = [0, 0], sizes = [1, 256], strides = [1, 1]} : vector<1x1024xf32> to vector<1x256xf32>
    %84 = vector.extract_strided_slice %82 {offsets = [0, 256], sizes = [1, 256], strides = [1, 1]} : vector<1x1024xf32> to vector<1x256xf32>
    %85 = vector.extract_strided_slice %82 {offsets = [0, 512], sizes = [1, 256], strides = [1, 1]} : vector<1x1024xf32> to vector<1x256xf32>
    %86 = vector.extract_strided_slice %82 {offsets = [0, 768], sizes = [1, 256], strides = [1, 1]} : vector<1x1024xf32> to vector<1x256xf32>
    %87 = arith.maximumf %83, %84 : vector<1x256xf32>
    %88 = arith.maximumf %87, %85 : vector<1x256xf32>
    %89 = arith.maximumf %88, %86 : vector<1x256xf32>
    %90 = arith.subf %83, %89 : vector<1x256xf32>
    %91 = math.exp %90 : vector<1x256xf32>
    %92 = arith.subf %84, %89 : vector<1x256xf32>
    %93 = math.exp %92 : vector<1x256xf32>
    %94 = arith.subf %85, %89 : vector<1x256xf32>
    %95 = math.exp %94 : vector<1x256xf32>
    %96 = arith.subf %86, %89 : vector<1x256xf32>
    %97 = math.exp %96 : vector<1x256xf32>
    %98 = arith.addf %91, %93 : vector<1x256xf32>
    %99 = arith.addf %98, %95 : vector<1x256xf32>
    %100 = arith.addf %99, %97 : vector<1x256xf32>
    %101 = tpu.reciprocal %100 {approx = true} : vector<1x256xf32> -> vector<1x256xf32>
    %102 = arith.mulf %100, %101 : vector<1x256xf32>
    %cst_56 = arith.constant 2.000000e+00 : f32
    %103 = vector.broadcast %cst_56 : f32 to vector<1x256xf32>
    %104 = arith.subf %103, %102 : vector<1x256xf32>
    %105 = arith.mulf %101, %104 : vector<1x256xf32>
    %106 = vector.extract_strided_slice %76 {offsets = [0, 0], sizes = [32, 256], strides = [1, 1]} : vector<32x1024xf32> to vector<32x256xf32>
    %107 = vector.broadcast %91 : vector<1x256xf32> to vector<32x256xf32>
    %108 = arith.mulf %106, %107 : vector<32x256xf32>
    %109 = vector.extract_strided_slice %76 {offsets = [0, 256], sizes = [32, 256], strides = [1, 1]} : vector<32x1024xf32> to vector<32x256xf32>
    %110 = vector.broadcast %93 : vector<1x256xf32> to vector<32x256xf32>
    %111 = arith.mulf %109, %110 : vector<32x256xf32>
    %112 = arith.addf %108, %111 : vector<32x256xf32>
    %113 = vector.extract_strided_slice %76 {offsets = [0, 512], sizes = [32, 256], strides = [1, 1]} : vector<32x1024xf32> to vector<32x256xf32>
    %114 = vector.broadcast %95 : vector<1x256xf32> to vector<32x256xf32>
    %115 = arith.mulf %113, %114 : vector<32x256xf32>
    %116 = arith.addf %112, %115 : vector<32x256xf32>
    %117 = vector.extract_strided_slice %76 {offsets = [0, 768], sizes = [32, 256], strides = [1, 1]} : vector<32x1024xf32> to vector<32x256xf32>
    %118 = vector.broadcast %97 : vector<1x256xf32> to vector<32x256xf32>
    %119 = arith.mulf %117, %118 : vector<32x256xf32>
    %120 = arith.addf %116, %119 : vector<32x256xf32>
    %121 = vector.broadcast %105 : vector<1x256xf32> to vector<32x256xf32>
    %122 = arith.mulf %120, %121 : vector<32x256xf32>
    %cst_57 = arith.constant dense<0.000000e+00> : vector<16x256xf32>
    %123 = tpu.matmul %7, %122, %cst_57 {dimension_numbers = #tpu.dot_dimension_numbers<[1], [0], [0], [1], [0, 0, 1, 1], [], []>} : vector<16x32xf32>, vector<32x256xf32>, vector<16x256xf32> -> vector<16x256xf32>
    %124 = vector.broadcast %8 : vector<16x1xf32> to vector<16x256xf32>
    %125 = arith.addf %123, %124 : vector<16x256xf32>
    %cst_58 = arith.constant 0.000000e+00 : f32
    %126 = vector.broadcast %cst_58 : f32 to vector<16x256xf32>
    %127 = arith.maximumf %125, %126 : vector<16x256xf32>
    %c0_59 = arith.constant 0 : index
    %c0_60 = arith.constant 0 : index
    %c0_61 = arith.constant 0 : index
    %128 = vector.load %arg12[%c0_59, %c0_60, %c0_61] : memref<1x16x512xf32, #tpu.memory_space<vmem>>, vector<1x16x256xf32>
    %129 = vector.shape_cast %128 : vector<1x16x256xf32> to vector<16x256xf32>
    %130 = vector.shape_cast %127 : vector<16x256xf32> to vector<1x16x256xf32>
    tpu.vector_store %arg12[%c0_59, %c0_60, %c0_61], %130 {strides = array<i32>} : memref<1x16x512xf32, #tpu.memory_space<vmem>>, vector<1x16x256xf32>,
    %c0_62 = arith.constant 0 : index
    %c0_63 = arith.constant 0 : index
    %c0_64 = arith.constant 0 : index
    %c256 = arith.constant 256 : index
    %131 = vector.load %arg2[%c0_62, %c0_63, %c0_64, %c256] : memref<1x4x12x512xf32, #tpu.memory_space<vmem>>, vector<1x1x8x256xf32>
    %132 = vector.shape_cast %131 : vector<1x1x8x256xf32> to vector<8x256xf32>
    %c0_65 = arith.constant 0 : index
    %c1_66 = arith.constant 1 : index
    %c0_67 = arith.constant 0 : index
    %c256_68 = arith.constant 256 : index
    %133 = vector.load %arg2[%c0_65, %c1_66, %c0_67, %c256_68] : memref<1x4x12x512xf32, #tpu.memory_space<vmem>>, vector<1x1x8x256xf32>
    %134 = vector.shape_cast %133 : vector<1x1x8x256xf32> to vector<8x256xf32>
    %c0_69 = arith.constant 0 : index
    %c2_70 = arith.constant 2 : index
    %c0_71 = arith.constant 0 : index
    %c256_72 = arith.constant 256 : index
    %135 = vector.load %arg2[%c0_69, %c2_70, %c0_71, %c256_72] : memref<1x4x12x512xf32, #tpu.memory_space<vmem>>, vector<1x1x8x256xf32>
    %136 = vector.shape_cast %135 : vector<1x1x8x256xf32> to vector<8x256xf32>
    %c0_73 = arith.constant 0 : index
    %c3_74 = arith.constant 3 : index
    %c0_75 = arith.constant 0 : index
    %c256_76 = arith.constant 256 : index
    %137 = vector.load %arg2[%c0_73, %c3_74, %c0_75, %c256_76] : memref<1x4x12x512xf32, #tpu.memory_space<vmem>>, vector<1x1x8x256xf32>
    %138 = vector.shape_cast %137 : vector<1x1x8x256xf32> to vector<8x256xf32>
    %c0_77 = arith.constant 0 : index
    %c0_78 = arith.constant 0 : index
    %c8_79 = arith.constant 8 : index
    %c256_80 = arith.constant 256 : index
    %139 = vector.load %arg2[%c0_77, %c0_78, %c8_79, %c256_80] : memref<1x4x12x512xf32, #tpu.memory_space<vmem>>, vector<1x1x4x256xf32>
    %140 = vector.shape_cast %139 : vector<1x1x4x256xf32> to vector<4x256xf32>
    %c0_81 = arith.constant 0 : index
    %c1_82 = arith.constant 1 : index
    %c8_83 = arith.constant 8 : index
    %c256_84 = arith.constant 256 : index
    %141 = vector.load %arg2[%c0_81, %c1_82, %c8_83, %c256_84] : memref<1x4x12x512xf32, #tpu.memory_space<vmem>>, vector<1x1x4x256xf32>
    %142 = vector.shape_cast %141 : vector<1x1x4x256xf32> to vector<4x256xf32>
    %c0_85 = arith.constant 0 : index
    %c2_86 = arith.constant 2 : index
    %c8_87 = arith.constant 8 : index
    %c256_88 = arith.constant 256 : index
    %143 = vector.load %arg2[%c0_85, %c2_86, %c8_87, %c256_88] : memref<1x4x12x512xf32, #tpu.memory_space<vmem>>, vector<1x1x4x256xf32>
    %144 = vector.shape_cast %143 : vector<1x1x4x256xf32> to vector<4x256xf32>
    %c0_89 = arith.constant 0 : index
    %c3_90 = arith.constant 3 : index
    %c8_91 = arith.constant 8 : index
    %c256_92 = arith.constant 256 : index
    %145 = vector.load %arg2[%c0_89, %c3_90, %c8_91, %c256_92] : memref<1x4x12x512xf32, #tpu.memory_space<vmem>>, vector<1x1x4x256xf32>
    %146 = vector.shape_cast %145 : vector<1x1x4x256xf32> to vector<4x256xf32>
    %147 = tpu.concatenate %132, %134, %136, %138 in 1 : vector<8x256xf32>, vector<8x256xf32>, vector<8x256xf32>, vector<8x256xf32> -> vector<8x1024xf32>
    %148 = tpu.concatenate %140, %142, %144, %146 in 1 : vector<4x256xf32>, vector<4x256xf32>, vector<4x256xf32>, vector<4x256xf32> -> vector<4x1024xf32>
    %cst_93 = arith.constant dense<0.000000e+00> : vector<8x1024xf32>
    %149 = tpu.matmul %0, %148, %cst_93 {dimension_numbers = #tpu.dot_dimension_numbers<[1], [0], [0], [1], [0, 0, 1, 1], [], []>} : vector<8x4xf32>, vector<4x1024xf32>, vector<8x1024xf32> -> vector<8x1024xf32>
    %150 = vector.broadcast %1 : vector<8x1xf32> to vector<8x1024xf32>
    %151 = arith.addf %149, %150 : vector<8x1024xf32>
    %cst_94 = arith.constant 0.000000e+00 : f32
    %152 = vector.broadcast %cst_94 : f32 to vector<8x1024xf32>
    %153 = arith.maximumf %151, %152 : vector<8x1024xf32>
    %154 = arith.addf %147, %153 : vector<8x1024xf32>
    %155 = vector.extract_strided_slice %154 {offsets = [0, 0], sizes = [8, 256], strides = [1, 1]} : vector<8x1024xf32> to vector<8x256xf32>
    %156 = vector.extract_strided_slice %154 {offsets = [0, 256], sizes = [8, 256], strides = [1, 1]} : vector<8x1024xf32> to vector<8x256xf32>
    %157 = vector.extract_strided_slice %154 {offsets = [0, 512], sizes = [8, 256], strides = [1, 1]} : vector<8x1024xf32> to vector<8x256xf32>
    %158 = vector.extract_strided_slice %154 {offsets = [0, 768], sizes = [8, 256], strides = [1, 1]} : vector<8x1024xf32> to vector<8x256xf32>
    %159 = arith.addf %155, %156 : vector<8x256xf32>
    %160 = arith.addf %159, %157 : vector<8x256xf32>
    %161 = arith.addf %160, %158 : vector<8x256xf32>
    %cst_95 = arith.constant 2.500000e-01 : f32
    %162 = vector.broadcast %cst_95 : f32 to vector<8x256xf32>
    %163 = arith.mulf %161, %162 : vector<8x256xf32>
    %164 = arith.subf %155, %163 : vector<8x256xf32>
    %165 = arith.mulf %164, %164 : vector<8x256xf32>
    %166 = arith.subf %156, %163 : vector<8x256xf32>
    %167 = arith.mulf %166, %166 : vector<8x256xf32>
    %168 = arith.addf %165, %167 : vector<8x256xf32>
    %169 = arith.subf %157, %163 : vector<8x256xf32>
    %170 = arith.mulf %169, %169 : vector<8x256xf32>
    %171 = arith.addf %168, %170 : vector<8x256xf32>
    %172 = arith.subf %158, %163 : vector<8x256xf32>
    %173 = arith.mulf %172, %172 : vector<8x256xf32>
    %174 = arith.addf %171, %173 : vector<8x256xf32>
    %cst_96 = arith.constant 0.333333343 : f32
    %175 = vector.broadcast %cst_96 : f32 to vector<8x256xf32>
    %176 = arith.mulf %174, %175 : vector<8x256xf32>
    %177 = tpu.concatenate %176, %163 in 0 : vector<8x256xf32>, vector<8x256xf32> -> vector<16x256xf32>
    %cst_97 = arith.constant dense<0.000000e+00> : vector<32x256xf32>
    %178 = tpu.matmul %3, %177, %cst_97 {dimension_numbers = #tpu.dot_dimension_numbers<[1], [0], [0], [1], [0, 0, 1, 1], [], []>} : vector<32x16xf32>, vector<16x256xf32>, vector<32x256xf32> -> vector<32x256xf32>
    %179 = vector.broadcast %4 : vector<32x1xf32> to vector<32x256xf32>
    %180 = arith.addf %178, %179 : vector<32x256xf32>
    %cst_98 = arith.constant dense<0.000000e+00> : vector<32x1024xf32>
    %181 = tpu.matmul %2, %154, %cst_98 {dimension_numbers = #tpu.dot_dimension_numbers<[1], [0], [0], [1], [0, 0, 1, 1], [], []>} : vector<32x8xf32>, vector<8x1024xf32>, vector<32x1024xf32> -> vector<32x1024xf32>
    %182 = vector.extract_strided_slice %181 {offsets = [0, 0], sizes = [32, 256], strides = [1, 1]} : vector<32x1024xf32> to vector<32x256xf32>
    %183 = arith.addf %182, %180 : vector<32x256xf32>
    %cst_99 = arith.constant 0.000000e+00 : f32
    %184 = vector.broadcast %cst_99 : f32 to vector<32x256xf32>
    %185 = arith.maximumf %183, %184 : vector<32x256xf32>
    %186 = vector.extract_strided_slice %181 {offsets = [0, 256], sizes = [32, 256], strides = [1, 1]} : vector<32x1024xf32> to vector<32x256xf32>
    %187 = arith.addf %186, %180 : vector<32x256xf32>
    %cst_100 = arith.constant 0.000000e+00 : f32
    %188 = vector.broadcast %cst_100 : f32 to vector<32x256xf32>
    %189 = arith.maximumf %187, %188 : vector<32x256xf32>
    %190 = vector.extract_strided_slice %181 {offsets = [0, 512], sizes = [32, 256], strides = [1, 1]} : vector<32x1024xf32> to vector<32x256xf32>
    %191 = arith.addf %190, %180 : vector<32x256xf32>
    %cst_101 = arith.constant 0.000000e+00 : f32
    %192 = vector.broadcast %cst_101 : f32 to vector<32x256xf32>
    %193 = arith.maximumf %191, %192 : vector<32x256xf32>
    %194 = vector.extract_strided_slice %181 {offsets = [0, 768], sizes = [32, 256], strides = [1, 1]} : vector<32x1024xf32> to vector<32x256xf32>
    %195 = arith.addf %194, %180 : vector<32x256xf32>
    %cst_102 = arith.constant 0.000000e+00 : f32
    %196 = vector.broadcast %cst_102 : f32 to vector<32x256xf32>
    %197 = arith.maximumf %195, %196 : vector<32x256xf32>
    %198 = tpu.concatenate %185, %189, %193, %197 in 1 : vector<32x256xf32>, vector<32x256xf32>, vector<32x256xf32>, vector<32x256xf32> -> vector<32x1024xf32>
    %cst_103 = arith.constant dense<0.000000e+00> : vector<8x1024xf32>
    %199 = tpu.matmul %5, %198, %cst_103 {dimension_numbers = #tpu.dot_dimension_numbers<[1], [0], [0], [1], [0, 0, 1, 1], [], []>} : vector<8x32xf32>, vector<32x1024xf32>, vector<8x1024xf32> -> vector<8x1024xf32>
    %200 = vector.extract_strided_slice %199 {offsets = [0, 0], sizes = [1, 1024], strides = [1, 1]} : vector<8x1024xf32> to vector<1x1024xf32>
    %201 = vector.broadcast %6 : vector<1x1xf32> to vector<1x1024xf32>
    %202 = arith.addf %200, %201 : vector<1x1024xf32>
    %cst_104 = arith.constant 0.000000e+00 : f32
    %203 = vector.broadcast %cst_104 : f32 to vector<1x1024xf32>
    %204 = arith.maximumf %202, %203 : vector<1x1024xf32>
    %205 = vector.extract_strided_slice %204 {offsets = [0, 0], sizes = [1, 256], strides = [1, 1]} : vector<1x1024xf32> to vector<1x256xf32>
    %206 = vector.extract_strided_slice %204 {offsets = [0, 256], sizes = [1, 256], strides = [1, 1]} : vector<1x1024xf32> to vector<1x256xf32>
    %207 = vector.extract_strided_slice %204 {offsets = [0, 512], sizes = [1, 256], strides = [1, 1]} : vector<1x1024xf32> to vector<1x256xf32>
    %208 = vector.extract_strided_slice %204 {offsets = [0, 768], sizes = [1, 256], strides = [1, 1]} : vector<1x1024xf32> to vector<1x256xf32>
    %209 = arith.maximumf %205, %206 : vector<1x256xf32>
    %210 = arith.maximumf %209, %207 : vector<1x256xf32>
    %211 = arith.maximumf %210, %208 : vector<1x256xf32>
    %212 = arith.subf %205, %211 : vector<1x256xf32>
    %213 = math.exp %212 : vector<1x256xf32>
    %214 = arith.subf %206, %211 : vector<1x256xf32>
    %215 = math.exp %214 : vector<1x256xf32>
    %216 = arith.subf %207, %211 : vector<1x256xf32>
    %217 = math.exp %216 : vector<1x256xf32>
    %218 = arith.subf %208, %211 : vector<1x256xf32>
    %219 = math.exp %218 : vector<1x256xf32>
    %220 = arith.addf %213, %215 : vector<1x256xf32>
    %221 = arith.addf %220, %217 : vector<1x256xf32>
    %222 = arith.addf %221, %219 : vector<1x256xf32>
    %223 = tpu.reciprocal %222 {approx = true} : vector<1x256xf32> -> vector<1x256xf32>
    %224 = arith.mulf %222, %223 : vector<1x256xf32>
    %cst_105 = arith.constant 2.000000e+00 : f32
    %225 = vector.broadcast %cst_105 : f32 to vector<1x256xf32>
    %226 = arith.subf %225, %224 : vector<1x256xf32>
    %227 = arith.mulf %223, %226 : vector<1x256xf32>
    %228 = vector.extract_strided_slice %198 {offsets = [0, 0], sizes = [32, 256], strides = [1, 1]} : vector<32x1024xf32> to vector<32x256xf32>
    %229 = vector.broadcast %213 : vector<1x256xf32> to vector<32x256xf32>
    %230 = arith.mulf %228, %229 : vector<32x256xf32>
    %231 = vector.extract_strided_slice %198 {offsets = [0, 256], sizes = [32, 256], strides = [1, 1]} : vector<32x1024xf32> to vector<32x256xf32>
    %232 = vector.broadcast %215 : vector<1x256xf32> to vector<32x256xf32>
    %233 = arith.mulf %231, %232 : vector<32x256xf32>
    %234 = arith.addf %230, %233 : vector<32x256xf32>
    %235 = vector.extract_strided_slice %198 {offsets = [0, 512], sizes = [32, 256], strides = [1, 1]} : vector<32x1024xf32> to vector<32x256xf32>
    %236 = vector.broadcast %217 : vector<1x256xf32> to vector<32x256xf32>
    %237 = arith.mulf %235, %236 : vector<32x256xf32>
    %238 = arith.addf %234, %237 : vector<32x256xf32>
    %239 = vector.extract_strided_slice %198 {offsets = [0, 768], sizes = [32, 256], strides = [1, 1]} : vector<32x1024xf32> to vector<32x256xf32>
    %240 = vector.broadcast %219 : vector<1x256xf32> to vector<32x256xf32>
    %241 = arith.mulf %239, %240 : vector<32x256xf32>
    %242 = arith.addf %238, %241 : vector<32x256xf32>
    %243 = vector.broadcast %227 : vector<1x256xf32> to vector<32x256xf32>
    %244 = arith.mulf %242, %243 : vector<32x256xf32>
    %cst_106 = arith.constant dense<0.000000e+00> : vector<16x256xf32>
    %245 = tpu.matmul %7, %244, %cst_106 {dimension_numbers = #tpu.dot_dimension_numbers<[1], [0], [0], [1], [0, 0, 1, 1], [], []>} : vector<16x32xf32>, vector<32x256xf32>, vector<16x256xf32> -> vector<16x256xf32>
    %246 = vector.broadcast %8 : vector<16x1xf32> to vector<16x256xf32>
    %247 = arith.addf %245, %246 : vector<16x256xf32>
    %cst_107 = arith.constant 0.000000e+00 : f32
    %248 = vector.broadcast %cst_107 : f32 to vector<16x256xf32>
    %249 = arith.maximumf %247, %248 : vector<16x256xf32>
    %c0_108 = arith.constant 0 : index
    %c0_109 = arith.constant 0 : index
    %c256_110 = arith.constant 256 : index
    %250 = vector.load %arg12[%c0_108, %c0_109, %c256_110] : memref<1x16x512xf32, #tpu.memory_space<vmem>>, vector<1x16x256xf32>
    %251 = vector.shape_cast %250 : vector<1x16x256xf32> to vector<16x256xf32>
    %252 = vector.shape_cast %249 : vector<16x256xf32> to vector<1x16x256xf32>
    tpu.vector_store %arg12[%c0_108, %c0_109, %c256_110], %252 {strides = array<i32>} : memref<1x16x512xf32, #tpu.memory_space<vmem>>, vector<1x16x256xf32>,
    return
  }
  func.func @transform_0(%arg0: i32, %arg1: i32) -> (i32, i32, i32, i32) {
    %c0_i32 = arith.constant 0 : i32
    %c0_i32_0 = arith.constant 0 : i32
    %c0_i32_1 = arith.constant 0 : i32
    return %arg0, %c0_i32, %c0_i32_0, %arg1 : i32, i32, i32, i32
  }
  func.func @transform_1(%arg0: i32, %arg1: i32) -> (i32, i32) {
    %c0_i32 = arith.constant 0 : i32
    %c0_i32_0 = arith.constant 0 : i32
    %c0_i32_1 = arith.constant 0 : i32
    return %c0_i32, %c0_i32_0 : i32, i32
  }
  func.func @transform_2(%arg0: i32, %arg1: i32) -> (i32, i32) {
    %c0_i32 = arith.constant 0 : i32
    %c0_i32_0 = arith.constant 0 : i32
    %c0_i32_1 = arith.constant 0 : i32
    return %c0_i32, %c0_i32_0 : i32, i32
  }
  func.func @transform_3(%arg0: i32, %arg1: i32) -> (i32, i32) {
    %c0_i32 = arith.constant 0 : i32
    %c0_i32_0 = arith.constant 0 : i32
    %c0_i32_1 = arith.constant 0 : i32
    return %c0_i32, %c0_i32_0 : i32, i32
  }
  func.func @transform_4(%arg0: i32, %arg1: i32) -> (i32, i32) {
    %c0_i32 = arith.constant 0 : i32
    %c0_i32_0 = arith.constant 0 : i32
    %c0_i32_1 = arith.constant 0 : i32
    return %c0_i32, %c0_i32_0 : i32, i32
  }
  func.func @transform_5(%arg0: i32, %arg1: i32) -> (i32, i32) {
    %c0_i32 = arith.constant 0 : i32
    %c0_i32_0 = arith.constant 0 : i32
    %c0_i32_1 = arith.constant 0 : i32
    return %c0_i32, %c0_i32_0 : i32, i32
  }
  func.func @transform_6(%arg0: i32, %arg1: i32) -> (i32, i32) {
    %c0_i32 = arith.constant 0 : i32
    %c0_i32_0 = arith.constant 0 : i32
    %c0_i32_1 = arith.constant 0 : i32
    return %c0_i32, %c0_i32_0 : i32, i32
  }
  func.func @transform_7(%arg0: i32, %arg1: i32) -> (i32, i32) {
    %c0_i32 = arith.constant 0 : i32
    %c0_i32_0 = arith.constant 0 : i32
    %c0_i32_1 = arith.constant 0 : i32
    return %c0_i32, %c0_i32_0 : i32, i32
  }
  func.func @transform_8(%arg0: i32, %arg1: i32) -> (i32, i32) {
    %c0_i32 = arith.constant 0 : i32
    %c0_i32_0 = arith.constant 0 : i32
    %c0_i32_1 = arith.constant 0 : i32
    return %c0_i32, %c0_i32_0 : i32, i32
  }
  func.func @transform_9(%arg0: i32, %arg1: i32) -> (i32, i32) {
    %c0_i32 = arith.constant 0 : i32
    %c0_i32_0 = arith.constant 0 : i32
    %c0_i32_1 = arith.constant 0 : i32
    return %c0_i32, %c0_i32_0 : i32, i32
  }
  func.func @transform_10(%arg0: i32, %arg1: i32) -> (i32, i32, i32) {
    %c0_i32 = arith.constant 0 : i32
    %c0_i32_0 = arith.constant 0 : i32
    return %arg0, %c0_i32, %arg1 : i32, i32, i32
  }
}

</mosaic_0001>

<llo_original>
// kernel: tpu_custom_call.1
$region0: #{tpu_custom_call.1}
  #allocation0 [shape = 'u32[]', space=smem, size = 0x4, offset = 0x4, fixed_abs, tag = 'smem constant byte address 0x4 - core index']
  #allocation1 [shape = 'u32[144,128]{1,0:T(1,128)}', space=vmem, size = 0x12000, scoped, tag = 'internal scratch']
  #allocation2 [shape = 'f32[1,1]{1,0:T(1,128)S(1)}', space=vmem, size = 0x200, scoped, tag = 'scoped memory for tpu_custom_call.1']
  %s0 = inlined_call_operand.vmem [shape: f32[2,4,12,1024], index: 0, kind: input, shape index: {}]
  %s1 = inlined_call_operand.vmem [shape: f32[8,4], index: 1, kind: input, shape index: {}]
  %s2 = inlined_call_operand.vmem [shape: f32[8,1], index: 2, kind: input, shape index: {}]
  %s3 = inlined_call_operand.vmem [shape: f32[32,8], index: 3, kind: input, shape index: {}]
  %s4 = inlined_call_operand.vmem [shape: f32[32,16], index: 4, kind: input, shape index: {}]
  %s5 = inlined_call_operand.vmem [shape: f32[32,1], index: 5, kind: input, shape index: {}]
  %s6 = inlined_call_operand.vmem [shape: f32[8,32], index: 6, kind: input, shape index: {}]
  %s7 = inlined_call_operand.<no memory space> [shape: f32[1,1], index: 7, kind: input, shape index: {}]
  %s8 = inlined_call_operand.vmem [shape: f32[16,32], index: 8, kind: input, shape index: {}]
  %s9 = inlined_call_operand.vmem [shape: f32[16,1], index: 9, kind: input, shape index: {}]
  %s10 = inlined_call_operand.hbm [shape: f32[2,16,1024], index: 10, kind: output, shape index: {}]
  %s11 = sld [smem:[#allocation0]]
  $region96: #{tpu_custom_call.1} parent=0
    _
  %s13 = ssub.s32 1, %s11
  %s14 = scalar_select 0, %s13, %s11
  %v15 = vstv %s7
  %16 = vst [vmem:[#allocation2] sm:$0x1] %v15
  $region1: #{tpu_custom_call.1} parent=0
    #allocation3 [shape = 'u8[262144]{0}', space=vmem, size = 0x40000, scoped, tag = 'input window, operand 0']
    #allocation4 [shape = 'u8[65536]{0}', space=vmem, size = 0x10000, scoped, tag = 'output window, operand 0']
    #allocation5 [shape = 's32[2]{0}', space=sflag, size = 0x8, scoped, tag = 'scoped memory for tpu_custom_call.1']
    %17 = vsyncpa [#allocation5], 0
    %s18 = scalar_lea.sflag [#allocation5], 1
    %19 = vsyncpa %s18, 0
    loop: start=0, step=1, limit=6
    $region2: #{tpu_custom_call.1} parent=1 // loop_pre_header
      _
    $region3: #{tpu_custom_call.1} parent=1 // loop_header
      %s21 = sphi 0, %s25
      %p22 = scmp.ge.s32.totalorder %s21, 6
      %s28 = sphi 0, %s40
      %s29 = sphi 0, %s36
      %s30 = sphi 0, %s28
      %s31 = sphi 0, %s29
      %s32 = sphi 0, %s30
      %s33 = sphi 0, %s31
      %s45 = sphi 0, %s47
      %s48 = sphi 0, %s45
      %s49 = sphi 0, %s48
      %s65 = sphi 0, %s49
      %s69 = sphi 0, %s69
      %s71 = sphi 0, %s69
      %s72 = sphi 0, %s71
      %s86 = sphi 0, %s72
      %s90 = sphi 0, %s90
      %s92 = sphi 0, %s90
      %s93 = sphi 0, %s92
      %s107 = sphi 0, %s93
      %s111 = sphi 0, %s111
      %s113 = sphi 0, %s111
      %s114 = sphi 0, %s113
      %s128 = sphi 0, %s114
      %s132 = sphi 0, %s132
      %s134 = sphi 0, %s132
      %s135 = sphi 0, %s134
      %s149 = sphi 0, %s135
      %s153 = sphi 0, %s153
      %s155 = sphi 0, %s153
      %s156 = sphi 0, %s155
      %s170 = sphi 0, %s156
      %s174 = sphi 0, %s174
      %s176 = sphi 0, %s174
      %s177 = sphi 0, %s176
      %s191 = sphi 0, %s177
      %s195 = sphi 0, %s195
      %s197 = sphi 0, %s195
      %s198 = sphi 0, %s197
      %s212 = sphi 0, %s198
      %s216 = sphi 0, %s216
      %s218 = sphi 0, %s216
      %s219 = sphi 0, %s218
      %s233 = sphi 0, %s219
      %s237 = sphi 0, %s237
      %s239 = sphi 0, %s237
      %s240 = sphi 0, %s239
      %s254 = sphi 0, %s240
      %s262 = sphi 0, %s264
      %s265 = sphi 0, %s262
      %s266 = sphi 0, %s265
      %s282 = sphi 0, %s266
    $region4: #{tpu_custom_call.1} parent=1 // loop_header_branch
      %24 = sbr.rel (%p22) target = $region8
    $region5: #{tpu_custom_call.1} parent=1 // loop_body
      %s26 = ssub.s32 %s21, 1
      %s27 = ssub.s32 %s21, 2
      %s34 = sadd.s32 1, %s29
      %p35 = scmp.ge.s32.totalorder %s34, 2
      %s36 = scalar_select %p35, 0, %s34
      %s37 = sadd.s32 1, %s28
      %s38 = scalar_select %p35, %s37, %s28
      %p39 = scmp.ge.s32.totalorder %s38, 2
      %s40 = scalar_select %p39, 0, %s38
      %s41 = ssub.s32 %s28, %s40
      %s42 = ssub.s32 %s29, %s36
      %s43 = sor.u32 %s41, %s42
      %p44 = scmp.eq.s32.totalorder %s43, 0
      %s46 = sadd.s32 %s45, 1
      %s47 = scalar_select %p44, %s45, %s46
      %p50 = pneg %p44
      %p51 = scmp.eq.s32.totalorder %s21, 3
      %p52 = por %p50, %p51
      %p53 = scmp.ne.s32.totalorder %s45, %s48
      %p54 = scmp.eq.s32.totalorder %s21, 0
      %p55 = por %p53, %p54
      %p56 = scmp.ne.s32.totalorder %s45, %s48
      %p57 = scmp.eq.s32.totalorder %s26, 3
      %p58 = por %p56, %p57
      %p59 = scmp.ne.s32.totalorder %s48, %s49
      %p60 = scmp.eq.s32.totalorder %s26, 0
      %p61 = por %p59, %p60
      %p62 = scmp.ne.s32.totalorder %s48, %s49
      %p63 = scmp.eq.s32.totalorder %s27, 3
      %p64 = por %p62, %p63
      %p66 = scmp.ne.s32.totalorder %s49, %s65
      %p67 = scmp.eq.s32.totalorder %s27, 0
      %p68 = por %p66, %p67
      %s70 = sadd.s32 %s69, 1
      %p73 = scmp.eq.s32.totalorder %s21, 3
      %p74 = scmp.ne.s32.totalorder %s69, %s71
      %p75 = scmp.eq.s32.totalorder %s21, 0
      %p76 = por %p74, %p75
      %p77 = scmp.ne.s32.totalorder %s69, %s71
      %p78 = scmp.eq.s32.totalorder %s26, 3
      %p79 = por %p77, %p78
      %p80 = scmp.ne.s32.totalorder %s71, %s72
      %p81 = scmp.eq.s32.totalorder %s26, 0
      %p82 = por %p80, %p81
      %p83 = scmp.ne.s32.totalorder %s71, %s72
      %p84 = scmp.eq.s32.totalorder %s27, 3
      %p85 = por %p83, %p84
      %p87 = scmp.ne.s32.totalorder %s72, %s86
      %p88 = scmp.eq.s32.totalorder %s27, 0
      %p89 = por %p87, %p88
      %s91 = sadd.s32 %s90, 1
      %p94 = scmp.eq.s32.totalorder %s21, 3
      %p95 = scmp.ne.s32.totalorder %s90, %s92
      %p96 = scmp.eq.s32.totalorder %s21, 0
      %p97 = por %p95, %p96
      %p98 = scmp.ne.s32.totalorder %s90, %s92
      %p99 = scmp.eq.s32.totalorder %s26, 3
      %p100 = por %p98, %p99
      %p101 = scmp.ne.s32.totalorder %s92, %s93
      %p102 = scmp.eq.s32.totalorder %s26, 0
      %p103 = por %p101, %p102
      %p104 = scmp.ne.s32.totalorder %s92, %s93
      %p105 = scmp.eq.s32.totalorder %s27, 3
      %p106 = por %p104, %p105
      %p108 = scmp.ne.s32.totalorder %s93, %s107
      %p109 = scmp.eq.s32.totalorder %s27, 0
      %p110 = por %p108, %p109
      %s112 = sadd.s32 %s111, 1
      %p115 = scmp.eq.s32.totalorder %s21, 3
      %p116 = scmp.ne.s32.totalorder %s111, %s113
      %p117 = scmp.eq.s32.totalorder %s21, 0
      %p118 = por %p116, %p117
      %p119 = scmp.ne.s32.totalorder %s111, %s113
      %p120 = scmp.eq.s32.totalorder %s26, 3
      %p121 = por %p119, %p120
      %p122 = scmp.ne.s32.totalorder %s113, %s114
      %p123 = scmp.eq.s32.totalorder %s26, 0
      %p124 = por %p122, %p123
      %p125 = scmp.ne.s32.totalorder %s113, %s114
      %p126 = scmp.eq.s32.totalorder %s27, 3
      %p127 = por %p125, %p126
      %p129 = scmp.ne.s32.totalorder %s114, %s128
      %p130 = scmp.eq.s32.totalorder %s27, 0
      %p131 = por %p129, %p130
      %s133 = sadd.s32 %s132, 1
      %p136 = scmp.eq.s32.totalorder %s21, 3
      %p137 = scmp.ne.s32.totalorder %s132, %s134
      %p138 = scmp.eq.s32.totalorder %s21, 0
      %p139 = por %p137, %p138
      %p140 = scmp.ne.s32.totalorder %s132, %s134
      %p141 = scmp.eq.s32.totalorder %s26, 3
      %p142 = por %p140, %p141
      %p143 = scmp.ne.s32.totalorder %s134, %s135
      %p144 = scmp.eq.s32.totalorder %s26, 0
      %p145 = por %p143, %p144
      %p146 = scmp.ne.s32.totalorder %s134, %s135
      %p147 = scmp.eq.s32.totalorder %s27, 3
      %p148 = por %p146, %p147
      %p150 = scmp.ne.s32.totalorder %s135, %s149
      %p151 = scmp.eq.s32.totalorder %s27, 0
      %p152 = por %p150, %p151
      %s154 = sadd.s32 %s153, 1
      %p157 = scmp.eq.s32.totalorder %s21, 3
      %p158 = scmp.ne.s32.totalorder %s153, %s155
      %p159 = scmp.eq.s32.totalorder %s21, 0
      %p160 = por %p158, %p159
      %p161 = scmp.ne.s32.totalorder %s153, %s155
      %p162 = scmp.eq.s32.totalorder %s26, 3
      %p163 = por %p161, %p162
      %p164 = scmp.ne.s32.totalorder %s155, %s156
      %p165 = scmp.eq.s32.totalorder %s26, 0
      %p166 = por %p164, %p165
      %p167 = scmp.ne.s32.totalorder %s155, %s156
      %p168 = scmp.eq.s32.totalorder %s27, 3
      %p169 = por %p167, %p168
      %p171 = scmp.ne.s32.totalorder %s156, %s170
      %p172 = scmp.eq.s32.totalorder %s27, 0
      %p173 = por %p171, %p172
      %s175 = sadd.s32 %s174, 1
      %p178 = scmp.eq.s32.totalorder %s21, 3
      %p179 = scmp.ne.s32.totalorder %s174, %s176
      %p180 = scmp.eq.s32.totalorder %s21, 0
      %p181 = por %p179, %p180
      %p182 = scmp.ne.s32.totalorder %s174, %s176
      %p183 = scmp.eq.s32.totalorder %s26, 3
      %p184 = por %p182, %p183
      %p185 = scmp.ne.s32.totalorder %s176, %s177
      %p186 = scmp.eq.s32.totalorder %s26, 0
      %p187 = por %p185, %p186
      %p188 = scmp.ne.s32.totalorder %s176, %s177
      %p189 = scmp.eq.s32.totalorder %s27, 3
      %p190 = por %p188, %p189
      %p192 = scmp.ne.s32.totalorder %s177, %s191
      %p193 = scmp.eq.s32.totalorder %s27, 0
      %p194 = por %p192, %p193
      %s196 = sadd.s32 %s195, 1
      %p199 = scmp.eq.s32.totalorder %s21, 3
      %p200 = scmp.ne.s32.totalorder %s195, %s197
      %p201 = scmp.eq.s32.totalorder %s21, 0
      %p202 = por %p200, %p201
      %p203 = scmp.ne.s32.totalorder %s195, %s197
      %p204 = scmp.eq.s32.totalorder %s26, 3
      %p205 = por %p203, %p204
      %p206 = scmp.ne.s32.totalorder %s197, %s198
      %p207 = scmp.eq.s32.totalorder %s26, 0
      %p208 = por %p206, %p207
      %p209 = scmp.ne.s32.totalorder %s197, %s198
      %p210 = scmp.eq.s32.totalorder %s27, 3
      %p211 = por %p209, %p210
      %p213 = scmp.ne.s32.totalorder %s198, %s212
      %p214 = scmp.eq.s32.totalorder %s27, 0
      %p215 = por %p213, %p214
      %s217 = sadd.s32 %s216, 1
      %p220 = scmp.eq.s32.totalorder %s21, 3
      %p221 = scmp.ne.s32.totalorder %s216, %s218
      %p222 = scmp.eq.s32.totalorder %s21, 0
      %p223 = por %p221, %p222
      %p224 = scmp.ne.s32.totalorder %s216, %s218
      %p225 = scmp.eq.s32.totalorder %s26, 3
      %p226 = por %p224, %p225
      %p227 = scmp.ne.s32.totalorder %s218, %s219
      %p228 = scmp.eq.s32.totalorder %s26, 0
      %p229 = por %p227, %p228
      %p230 = scmp.ne.s32.totalorder %s218, %s219
      %p231 = scmp.eq.s32.totalorder %s27, 3
      %p232 = por %p230, %p231
      %p234 = scmp.ne.s32.totalorder %s219, %s233
      %p235 = scmp.eq.s32.totalorder %s27, 0
      %p236 = por %p234, %p235
      %s238 = sadd.s32 %s237, 1
      %p241 = scmp.eq.s32.totalorder %s21, 3
      %p242 = scmp.ne.s32.totalorder %s237, %s239
      %p243 = scmp.eq.s32.totalorder %s21, 0
      %p244 = por %p242, %p243
      %p245 = scmp.ne.s32.totalorder %s237, %s239
      %p246 = scmp.eq.s32.totalorder %s26, 3
      %p247 = por %p245, %p246
      %p248 = scmp.ne.s32.totalorder %s239, %s240
      %p249 = scmp.eq.s32.totalorder %s26, 0
      %p250 = por %p248, %p249
      %p251 = scmp.ne.s32.totalorder %s239, %s240
      %p252 = scmp.eq.s32.totalorder %s27, 3
      %p253 = por %p251, %p252
      %p255 = scmp.ne.s32.totalorder %s240, %s254
      %p256 = scmp.eq.s32.totalorder %s27, 0
      %p257 = por %p255, %p256
      %s258 = ssub.s32 %s28, %s40
      %s259 = ssub.s32 %s29, %s36
      %s260 = sor.u32 %s258, %s259
      %p261 = scmp.eq.s32.totalorder %s260, 0
      %s263 = sadd.s32 %s262, 1
      %s264 = scalar_select %p261, %s262, %s263
      %p267 = pneg %p261
      %p268 = scmp.eq.s32.totalorder %s21, 3
      %p269 = por %p267, %p268
      %p270 = scmp.ne.s32.totalorder %s262, %s265
      %p271 = scmp.eq.s32.totalorder %s21, 0
      %p272 = por %p270, %p271
      %p273 = scmp.ne.s32.totalorder %s262, %s265
      %p274 = scmp.eq.s32.totalorder %s26, 3
      %p275 = por %p273, %p274
      %p276 = scmp.ne.s32.totalorder %s265, %s266
      %p277 = scmp.eq.s32.totalorder %s26, 0
      %p278 = por %p276, %p277
      %p279 = scmp.ne.s32.totalorder %s265, %s266
      %p280 = scmp.eq.s32.totalorder %s27, 3
      %p281 = por %p279, %p280
      %p283 = scmp.ne.s32.totalorder %s266, %s282
      %p284 = scmp.eq.s32.totalorder %s27, 0
      %p285 = por %p283, %p284
      %p286 = scmp.le.s32.totalorder 1, %s21
      %p287 = scmp.lt.s32.totalorder %s21, 5
      %p288 = pnand %p286, %p287
      %p289 = pneg %p288
      // Predicated region
      $region9: #{tpu_custom_call.1} parent=5 // pred_check
        _
      $region10: #{tpu_custom_call.1} parent=5 // pred_check_branch
        %291 = sbr.rel (%p288) target = $region12
      $region11: #{tpu_custom_call.1} parent=5 // pred_region
        %s292 = ssub.s32 %s21, 1
        // Predicated region
        $region13: #{tpu_custom_call.1} parent=11 // pred_check
          %p293 = pneg %p82
        $region14: #{tpu_custom_call.1} parent=11 // pred_check_branch
          %295 = sbr.rel (%p293) target = $region16
        $region15: #{tpu_custom_call.1} parent=11 // pred_region
          _
        $region16: #{tpu_custom_call.1} parent=11 // pred_fallthru
          _
        // Predicated region
        $region17: #{tpu_custom_call.1} parent=11 // pred_check
          %p296 = pneg %p103
        $region18: #{tpu_custom_call.1} parent=11 // pred_check_branch
          %298 = sbr.rel (%p296) target = $region20
        $region19: #{tpu_custom_call.1} parent=11 // pred_region
          _
        $region20: #{tpu_custom_call.1} parent=11 // pred_fallthru
          _
        // Predicated region
        $region21: #{tpu_custom_call.1} parent=11 // pred_check
          %p299 = pneg %p124
        $region22: #{tpu_custom_call.1} parent=11 // pred_check_branch
          %301 = sbr.rel (%p299) target = $region24
        $region23: #{tpu_custom_call.1} parent=11 // pred_region
          _
        $region24: #{tpu_custom_call.1} parent=11 // pred_fallthru
          _
        // Predicated region
        $region25: #{tpu_custom_call.1} parent=11 // pred_check
          %p302 = pneg %p145
        $region26: #{tpu_custom_call.1} parent=11 // pred_check_branch
          %304 = sbr.rel (%p302) target = $region28
        $region27: #{tpu_custom_call.1} parent=11 // pred_region
          _
        $region28: #{tpu_custom_call.1} parent=11 // pred_fallthru
          _
        // Predicated region
        $region29: #{tpu_custom_call.1} parent=11 // pred_check
          %p305 = pneg %p166
        $region30: #{tpu_custom_call.1} parent=11 // pred_check_branch
          %307 = sbr.rel (%p305) target = $region32
        $region31: #{tpu_custom_call.1} parent=11 // pred_region
          _
        $region32: #{tpu_custom_call.1} parent=11 // pred_fallthru
          _
        // Predicated region
        $region33: #{tpu_custom_call.1} parent=11 // pred_check
          %p308 = pneg %p187
        $region34: #{tpu_custom_call.1} parent=11 // pred_check_branch
          %310 = sbr.rel (%p308) target = $region36
        $region35: #{tpu_custom_call.1} parent=11 // pred_region
          _
        $region36: #{tpu_custom_call.1} parent=11 // pred_fallthru
          _
        // Predicated region
        $region37: #{tpu_custom_call.1} parent=11 // pred_check
          %p311 = pneg %p208
        $region38: #{tpu_custom_call.1} parent=11 // pred_check_branch
          %313 = sbr.rel (%p311) target = $region40
        $region39: #{tpu_custom_call.1} parent=11 // pred_region
          _
        $region40: #{tpu_custom_call.1} parent=11 // pred_fallthru
          _
        // Predicated region
        $region41: #{tpu_custom_call.1} parent=11 // pred_check
          %p314 = pneg %p229
        $region42: #{tpu_custom_call.1} parent=11 // pred_check_branch
          %316 = sbr.rel (%p314) target = $region44
        $region43: #{tpu_custom_call.1} parent=11 // pred_region
          _
        $region44: #{tpu_custom_call.1} parent=11 // pred_fallthru
          _
        // Predicated region
        $region45: #{tpu_custom_call.1} parent=11 // pred_check
          %p317 = pneg %p250
        $region46: #{tpu_custom_call.1} parent=11 // pred_check_branch
          %319 = sbr.rel (%p317) target = $region48
        $region47: #{tpu_custom_call.1} parent=11 // pred_region
          _
        $region48: #{tpu_custom_call.1} parent=11 // pred_fallthru
          _
      $region12: #{tpu_custom_call.1} parent=5 // pred_fallthru
        _
      %p320 = scmp.lt.s32.totalorder %s21, 4
      // Predicated region
      $region49: #{tpu_custom_call.1} parent=5 // pred_check
        %p321 = pneg %p320
      $region50: #{tpu_custom_call.1} parent=5 // pred_check_branch
        %323 = sbr.rel (%p321) target = $region52
      $region51: #{tpu_custom_call.1} parent=5 // pred_region
        // Predicated region
        $region53: #{tpu_custom_call.1} parent=51 // pred_check
          %p324 = pneg %p55
        $region54: #{tpu_custom_call.1} parent=51 // pred_check_branch
          %326 = sbr.rel (%p324) target = $region56
        $region55: #{tpu_custom_call.1} parent=51 // pred_region
          %s327 = sand.u32 %s45, 1
          %s328 = sand.u32 %s45, 1
          %s329 = smul.addr %s328, 256
          %s330 = scalar_lea.vmem [#allocation3], %s329
          %s331 = smul.u32 4, %s29
          %s332 = smul.addr %s28, 64
          %s333 = sadd.s32 %s331, %s332
          %s334 = smul.addr %s333, 8
          %s335 = scalar_lea.vmem %s0, %s334
          // Predicated region
          $region57: #{tpu_custom_call.1} parent=55 // pred_check
            _
          $region58: #{tpu_custom_call.1} parent=55 // pred_check_branch
            %337 = sbr.rel (0) target = $region60
          $region59: #{tpu_custom_call.1} parent=55 // pred_region
            // Predicated region
            $region61: #{tpu_custom_call.1} parent=59 // pred_check
              _
            $region62: #{tpu_custom_call.1} parent=59 // pred_check_branch
              %339 = sbr.rel (0) target = $region64
            $region63: #{tpu_custom_call.1} parent=59 // pred_region
              loop: start=0, step=1, limit=1
              $region65: #{tpu_custom_call.1} parent=63 // loop_pre_header
                _
              $region66: #{tpu_custom_call.1} parent=63 // loop_header
                %s341 = sphi 0, %s345
                %p342 = scmp.ge.s32.totalorder %s341, 1
                %s346 = sphi %s335, %s335
                %s347 = sphi %s330, %s330
              $region67: #{tpu_custom_call.1} parent=63 // loop_header_branch
                %344 = sbr.rel (%p342) target = $region71
              $region68: #{tpu_custom_call.1} parent=63 // loop_body
                %v348 = vld [vmem:[%s346] sm:$0xff]
                %349 = vst [vmem:[%s347] sm:$0xff] %v348
                %v350 = vld [vmem:[%s346 + $0x8] sm:$0xff]
                %351 = vst [vmem:[%s347 + $0x8] sm:$0xff] %v350
                %v352 = vld [vmem:[%s346 + $0x10] sm:$0xff]
                %353 = vst [vmem:[%s347 + $0x10] sm:$0xff] %v352
                %v354 = vld [vmem:[%s346 + $0x18] sm:$0xff]
                %355 = vst [vmem:[%s347 + $0x18] sm:$0xff] %v354
                %v356 = vld [vmem:[%s346 + $0x40] sm:$0xff]
                %357 = vst [vmem:[%s347 + $0x20] sm:$0xff] %v356
                %v358 = vld [vmem:[%s346 + $0x48] sm:$0xff]
                %359 = vst [vmem:[%s347 + $0x28] sm:$0xff] %v358
                %v360 = vld [vmem:[%s346 + $0x50] sm:$0xff]
                %361 = vst [vmem:[%s347 + $0x30] sm:$0xff] %v360
                %v362 = vld [vmem:[%s346 + $0x58] sm:$0xff]
                %363 = vst [vmem:[%s347 + $0x38] sm:$0xff] %v362
                %v364 = vld [vmem:[%s346 + $0x80] sm:$0xff]
                %365 = vst [vmem:[%s347 + $0x40] sm:$0xff] %v364
                %v366 = vld [vmem:[%s346 + $0x88] sm:$0xff]
                %367 = vst [vmem:[%s347 + $0x48] sm:$0xff] %v366
                %v368 = vld [vmem:[%s346 + $0x90] sm:$0xff]
                %369 = vst [vmem:[%s347 + $0x50] sm:$0xff] %v368
                %v370 = vld [vmem:[%s346 + $0x98] sm:$0xff]
                %371 = vst [vmem:[%s347 + $0x58] sm:$0xff] %v370
                %v372 = vld [vmem:[%s346 + $0xc0] sm:$0xff]
                %373 = vst [vmem:[%s347 + $0x60] sm:$0xff] %v372
                %v374 = vld [vmem:[%s346 + $0xc8] sm:$0xff]
                %375 = vst [vmem:[%s347 + $0x68] sm:$0xff] %v374
                %v376 = vld [vmem:[%s346 + $0xd0] sm:$0xff]
                %377 = vst [vmem:[%s347 + $0x70] sm:$0xff] %v376
                %v378 = vld [vmem:[%s346 + $0xd8] sm:$0xff]
                %379 = vst [vmem:[%s347 + $0x78] sm:$0xff] %v378
                %v380 = vld [vmem:[%s346 + $0x100] sm:$0xff]
                %381 = vst [vmem:[%s347 + $0x80] sm:$0xff] %v380
                %v382 = vld [vmem:[%s346 + $0x108] sm:$0xff]
                %383 = vst [vmem:[%s347 + $0x88] sm:$0xff] %v382
                %v384 = vld [vmem:[%s346 + $0x110] sm:$0xff]
                %385 = vst [vmem:[%s347 + $0x90] sm:$0xff] %v384
                %v386 = vld [vmem:[%s346 + $0x118] sm:$0xff]
                %387 = vst [vmem:[%s347 + $0x98] sm:$0xff] %v386
                %v388 = vld [vmem:[%s346 + $0x140] sm:$0xff]
                %389 = vst [vmem:[%s347 + $0xa0] sm:$0xff] %v388
                %v390 = vld [vmem:[%s346 + $0x148] sm:$0xff]
                %391 = vst [vmem:[%s347 + $0xa8] sm:$0xff] %v390
                %v392 = vld [vmem:[%s346 + $0x150] sm:$0xff]
                %393 = vst [vmem:[%s347 + $0xb0] sm:$0xff] %v392
                %v394 = vld [vmem:[%s346 + $0x158] sm:$0xff]
                %395 = vst [vmem:[%s347 + $0xb8] sm:$0xff] %v394
                %v396 = vld [vmem:[%s346 + $0x180] sm:$0xff]
                %397 = vst [vmem:[%s347 + $0xc0] sm:$0xff] %v396
                %v398 = vld [vmem:[%s346 + $0x188] sm:$0xff]
                %399 = vst [vmem:[%s347 + $0xc8] sm:$0xff] %v398
                %v400 = vld [vmem:[%s346 + $0x190] sm:$0xff]
                %401 = vst [vmem:[%s347 + $0xd0] sm:$0xff] %v400
                %v402 = vld [vmem:[%s346 + $0x198] sm:$0xff]
                %403 = vst [vmem:[%s347 + $0xd8] sm:$0xff] %v402
                %v404 = vld [vmem:[%s346 + $0x1c0] sm:$0xff]
                %405 = vst [vmem:[%s347 + $0xe0] sm:$0xff] %v404
                %v406 = vld [vmem:[%s346 + $0x1c8] sm:$0xff]
                %407 = vst [vmem:[%s347 + $0xe8] sm:$0xff] %v406
                %v408 = vld [vmem:[%s346 + $0x1d0] sm:$0xff]
                %409 = vst [vmem:[%s347 + $0xf0] sm:$0xff] %v408
                %v410 = vld [vmem:[%s346 + $0x1d8] sm:$0xff]
                %411 = vst [vmem:[%s347 + $0xf8] sm:$0xff] %v410
              $region69: #{tpu_custom_call.1} parent=63 // loop_footer
                %s345 = sadd.s32 1, %s341
              $region70: #{tpu_custom_call.1} parent=63 // loop_footer_branch
                %340 = sbr.rel target = $region66
              $region71: #{tpu_custom_call.1} parent=63 // loop_exit
                _
            $region64: #{tpu_custom_call.1} parent=59 // pred_fallthru
              _
            // Predicated region
            $region72: #{tpu_custom_call.1} parent=59 // pred_check
              _
            $region73: #{tpu_custom_call.1} parent=59 // pred_check_branch
              %413 = sbr.rel target = $region75
            $region74: #{tpu_custom_call.1} parent=59 // pred_region
              _
            $region75: #{tpu_custom_call.1} parent=59 // pred_fallthru
              _
          $region60: #{tpu_custom_call.1} parent=55 // pred_fallthru
            _
          %414 = vnop
        $region56: #{tpu_custom_call.1} parent=51 // pred_fallthru
          _
      $region52: #{tpu_custom_call.1} parent=5 // pred_fallthru
        _
      %p415 = scmp.le.s32.totalorder 1, %s21
      %p416 = scmp.lt.s32.totalorder %s21, 5
      %p417 = pnand %p415, %p416
      %p418 = pneg %p417
      // Predicated region
      $region76: #{tpu_custom_call.1} parent=5 // pred_check
        _
      $region77: #{tpu_custom_call.1} parent=5 // pred_check_branch
        %420 = sbr.rel (%p417) target = $region79
      $region78: #{tpu_custom_call.1} parent=5 // pred_region
        %s421 = ssub.s32 %s21, 1
        %s422 = sand.u32 %s48, 1
        %s423 = sand.u32 %s48, 1
        %s424 = smul.addr %s423, 256
        %s425 = scalar_lea.vmem [#allocation3], %s424
        // Predicated region
        $region80: #{tpu_custom_call.1} parent=78 // pred_check
          %p426 = pneg %p61
        $region81: #{tpu_custom_call.1} parent=78 // pred_check_branch
          %428 = sbr.rel (%p426) target = $region83
        $region82: #{tpu_custom_call.1} parent=78 // pred_region
          _
        $region83: #{tpu_custom_call.1} parent=78 // pred_fallthru
          _
        %s429 = sand.u32 %s48, 1
        %s430 = sand.u32 %s48, 1
        %s431 = smul.addr %s430, 256
        %s432 = scalar_lea.vmem [#allocation3], %s431
        %p433 = pneg %p61
        %p434 = pneg %p58
        %p435 = pneg %p82
        %p436 = pneg %p79
        %p437 = pneg %p103
        %p438 = pneg %p100
        %p439 = pneg %p124
        %p440 = pneg %p121
        %p441 = pneg %p145
        %p442 = pneg %p142
        %p443 = pneg %p166
        %p444 = pneg %p163
        %p445 = pneg %p187
        %p446 = pneg %p184
        %p447 = pneg %p208
        %p448 = pneg %p205
        %p449 = pneg %p229
        %p450 = pneg %p226
        %p451 = pneg %p250
        %p452 = pneg %p247
        %p453 = pneg %p278
        %p454 = pneg %p275
        %s455 = sand.u32 %s265, 1
        %s456 = scalar_lea.sflag [#allocation5], %s455
        %s457 = sand.u32 %s265, 1
        %s458 = smul.addr %s457, 64
        %s459 = scalar_lea.vmem [#allocation4], %s458
        %s460 = smul.u32 4, %s31
        %s461 = smul.u32 4, %s31
        %v462 = vld [vmem:[%s1] sm:$0xff]
        %v463 = vld [vmem:[%s2] sm:$0xff]
        %v464 = vld [vmem:[%s3] sm:$0xff]
        %v465 = vld [vmem:[%s3 + $0x8] sm:$0xff]
        %v466 = vld [vmem:[%s3 + $0x10] sm:$0xff]
        %v467 = vld [vmem:[%s3 + $0x18] sm:$0xff]
        %v468 = vld [vmem:[%s4] sm:$0xff]
        %v469 = vld [vmem:[%s4 + $0x8] sm:$0xff]
        %v470 = vld [vmem:[%s4 + $0x10] sm:$0xff]
        %v471 = vld [vmem:[%s4 + $0x18] sm:$0xff]
        %v472 = vld [vmem:[%s5] sm:$0xff]
        %v473 = vld [vmem:[%s5 + $0x8] sm:$0xff]
        %v474 = vld [vmem:[%s5 + $0x10] sm:$0xff]
        %v475 = vld [vmem:[%s5 + $0x18] sm:$0xff]
        %v476 = vld [vmem:[%s6] sm:$0xff]
        %v477 = vld [vmem:[#allocation2] sm:$0x1]
        %v478 = vld [vmem:[%s8] sm:$0xff]
        %v479 = vld [vmem:[%s8 + $0x8] sm:$0xff]
        %v480 = vld [vmem:[%s9] sm:$0xff]
        %v481 = vld [vmem:[%s9 + $0x8] sm:$0xff]
        %v482 = vld [vmem:[%s425] sm:$0xff]
        %v483 = vld [vmem:[%s425 + $0x8] sm:$0xff]
        %s484 = scalar_lea.vmem %s425, 64 [#allocation3]
        %v485 = vld [vmem:[%s484] sm:$0xff]
        %v486 = vld [vmem:[%s484 + $0x8] sm:$0xff]
        %s487 = scalar_lea.vmem %s425, 128 [#allocation3]
        %v488 = vld [vmem:[%s487] sm:$0xff]
        %v489 = vld [vmem:[%s487 + $0x8] sm:$0xff]
        %s490 = scalar_lea.vmem %s425, 192 [#allocation3]
        %v491 = vld [vmem:[%s490] sm:$0xff]
        %v492 = vld [vmem:[%s490 + $0x8] sm:$0xff]
        %v493 = vld [vmem:[%s425 + $0x20] sm:$0xf]
        %v494 = vld [vmem:[%s425 + $0x28] sm:$0xf]
        %v495 = vld [vmem:[%s484 + $0x20] sm:$0xf]
        %v496 = vld [vmem:[%s484 + $0x28] sm:$0xf]
        %v497 = vld [vmem:[%s487 + $0x20] sm:$0xf]
        %v498 = vld [vmem:[%s487 + $0x28] sm:$0xf]
        %v499 = vld [vmem:[%s490 + $0x20] sm:$0xf]
        %v500 = vld [vmem:[%s490 + $0x28] sm:$0xf]
        %502 = vset.pattern.permute.xlu0 0
        %503 = vperm.xlu0 %502, %v463
        %v504 = vpop.permute.xlu0 %503
        %vm506 = vcmask 31744
        %v508 = vsel %vm506, %v462, 0
        %vm510 = vcmask 1043456
        %v512 = vsel %vm510, %v493, 0
        %v515 = vsel %vm510, %v494, 0
        %v518 = vsel %vm510, %v495, 0
        %v521 = vsel %vm510, %v496, 0
        %v524 = vsel %vm510, %v497, 0
        %v527 = vsel %vm510, %v498, 0
        %v530 = vsel %vm510, %v499, 0
        %v533 = vsel %vm510, %v500, 0
        %535 = vmatprep.subr.mxu0 %v515
        %536 = vmatpush1.msra.mxu0 %v512
        %537 = vmatprep.subr.mxu0 0.0
        %538 = vmatpush1.msra.mxu0 0.0
        %539 = vmatprep.subr.mxu0 0.0
        %540 = vmatpush1.msra.mxu0 0.0
        %541 = vmatprep.subr.mxu0 0.0
        %542 = vmatpush1.msra.mxu0 0.0
        %543 = vmatprep.subr.mxu0 0.0
        %544 = vmatpush1.msra.mxu0 0.0
        %545 = vmatprep.subr.mxu0 0.0
        %546 = vmatpush1.msra.mxu0 0.0
        %547 = vmatprep.subr.mxu0 0.0
        %548 = vmatpush1.msra.mxu0 0.0
        %549 = vmatprep.subr.mxu0 0.0
        %550 = vmatpush1.msra.mxu0 0.0
        %551 = vmatprep.subr.mxu0 0.0
        %552 = vmatpush1.msra.mxu0 0.0
        %553 = vmatprep.subr.mxu0 0.0
        %554 = vmatpush1.msra.mxu0 0.0
        %555 = vmatprep.subr.mxu0 0.0
        %556 = vmatpush1.msra.mxu0 0.0
        %557 = vmatprep.subr.mxu0 0.0
        %558 = vmatpush1.msra.mxu0 0.0
        %559 = vmatprep.subr.mxu0 0.0
        %560 = vmatpush1.msra.mxu0 0.0
        %561 = vmatprep.subr.mxu0 0.0
        %562 = vmatpush1.msra.mxu0 0.0
        %563 = vmatprep.subr.mxu0 0.0
        %564 = vmatpush1.msra.mxu0 0.0
        %565 = vmatprep.subr.mxu0 0.0
        %566 = vmatpush1.msra.mxu0 0.0
        %567 = vmatprep.subr.mxu0 0.0
        %568 = vmatpush1.msra.mxu0 0.0
        %569 = vmatprep.subr.mxu0 0.0
        %570 = vmatpush1.msra.mxu0 0.0
        %571 = vmatprep.subr.mxu0 0.0
        %572 = vmatpush1.msra.mxu0 0.0
        %573 = vmatprep.subr.mxu0 0.0
        %574 = vmatpush1.msra.mxu0 0.0
        %575 = vmatprep.subr.mxu0 0.0
        %576 = vmatpush1.msra.mxu0 0.0
        %577 = vmatprep.subr.mxu0 0.0
        %578 = vmatpush1.msra.mxu0 0.0
        %579 = vmatprep.subr.mxu0 0.0
        %580 = vmatpush1.msra.mxu0 0.0
        %581 = vmatprep.subr.mxu0 0.0
        %582 = vmatpush1.msra.mxu0 0.0
        %583 = vmatprep.subr.mxu0 0.0
        %584 = vmatpush1.msra.mxu0 0.0
        %585 = vmatprep.subr.mxu0 0.0
        %586 = vmatpush1.msra.mxu0 0.0
        %587 = vmatprep.subr.mxu0 0.0
        %588 = vmatpush1.msra.mxu0 0.0
        %589 = vmatprep.subr.mxu0 0.0
        %590 = vmatpush1.msra.mxu0 0.0
        %591 = vmatprep.subr.mxu0 0.0
        %592 = vmatpush1.msra.mxu0 0.0
        %593 = vmatprep.subr.mxu0 0.0
        %594 = vmatpush1.msra.mxu0 0.0
        %595 = vmatprep.subr.mxu0 0.0
        %596 = vmatpush1.msra.mxu0 0.0
        %597 = vmatprep.subr.mxu0 0.0
        %598 = vmatpush1.msra.mxu0 0.0
        %599 = vmatprep.mubr.f32.mxu0 0.0
        %600 = vmatmul.mubr.f32.gmra.mrb[0].mxu0 %v508
        %v601 = vpop.f32.mrb[0].mxu0
        %v602 = vadd.f32 %v504, %v601
        %v603 = vpop.f32.mrb[0].mxu0
        %v604 = vadd.f32 %v504, %v603
        %605 = vdwg.mxu0
        %606 = vmatprep.subr.mxu0 %v521
        %607 = vmatpush1.msra.mxu0 %v518
        %608 = vmatprep.subr.mxu0 0.0
        %609 = vmatpush1.msra.mxu0 0.0
        %610 = vmatprep.subr.mxu0 0.0
        %611 = vmatpush1.msra.mxu0 0.0
        %612 = vmatprep.subr.mxu0 0.0
        %613 = vmatpush1.msra.mxu0 0.0
        %614 = vmatprep.subr.mxu0 0.0
        %615 = vmatpush1.msra.mxu0 0.0
        %616 = vmatprep.subr.mxu0 0.0
        %617 = vmatpush1.msra.mxu0 0.0
        %618 = vmatprep.subr.mxu0 0.0
        %619 = vmatpush1.msra.mxu0 0.0
        %620 = vmatprep.subr.mxu0 0.0
        %621 = vmatpush1.msra.mxu0 0.0
        %622 = vmatprep.subr.mxu0 0.0
        %623 = vmatpush1.msra.mxu0 0.0
        %624 = vmatprep.subr.mxu0 0.0
        %625 = vmatpush1.msra.mxu0 0.0
        %626 = vmatprep.subr.mxu0 0.0
        %627 = vmatpush1.msra.mxu0 0.0
        %628 = vmatprep.subr.mxu0 0.0
        %629 = vmatpush1.msra.mxu0 0.0
        %630 = vmatprep.subr.mxu0 0.0
        %631 = vmatpush1.msra.mxu0 0.0
        %632 = vmatprep.subr.mxu0 0.0
        %633 = vmatpush1.msra.mxu0 0.0
        %634 = vmatprep.subr.mxu0 0.0
        %635 = vmatpush1.msra.mxu0 0.0
        %636 = vmatprep.subr.mxu0 0.0
        %637 = vmatpush1.msra.mxu0 0.0
        %638 = vmatprep.subr.mxu0 0.0
        %639 = vmatpush1.msra.mxu0 0.0
        %640 = vmatprep.subr.mxu0 0.0
        %641 = vmatpush1.msra.mxu0 0.0
        %642 = vmatprep.subr.mxu0 0.0
        %643 = vmatpush1.msra.mxu0 0.0
        %644 = vmatprep.subr.mxu0 0.0
        %645 = vmatpush1.msra.mxu0 0.0
        %646 = vmatprep.subr.mxu0 0.0
        %647 = vmatpush1.msra.mxu0 0.0
        %648 = vmatprep.subr.mxu0 0.0
        %649 = vmatpush1.msra.mxu0 0.0
        %650 = vmatprep.subr.mxu0 0.0
        %651 = vmatpush1.msra.mxu0 0.0
        %652 = vmatprep.subr.mxu0 0.0
        %653 = vmatpush1.msra.mxu0 0.0
        %654 = vmatprep.subr.mxu0 0.0
        %655 = vmatpush1.msra.mxu0 0.0
        %656 = vmatprep.subr.mxu0 0.0
        %657 = vmatpush1.msra.mxu0 0.0
        %658 = vmatprep.subr.mxu0 0.0
        %659 = vmatpush1.msra.mxu0 0.0
        %660 = vmatprep.subr.mxu0 0.0
        %661 = vmatpush1.msra.mxu0 0.0
        %662 = vmatprep.subr.mxu0 0.0
        %663 = vmatpush1.msra.mxu0 0.0
        %664 = vmatprep.subr.mxu0 0.0
        %665 = vmatpush1.msra.mxu0 0.0
        %666 = vmatprep.subr.mxu0 0.0
        %667 = vmatpush1.msra.mxu0 0.0
        %668 = vmatprep.subr.mxu0 0.0
        %669 = vmatpush1.msra.mxu0 0.0
        %670 = vmatprep.mubr.f32.mxu0 0.0
        %671 = vmatmul.mubr.f32.gmra.mrb[0].mxu0 %v508
        %v672 = vpop.f32.mrb[0].mxu0
        %v673 = vadd.f32 %v504, %v672
        %v674 = vpop.f32.mrb[0].mxu0
        %v675 = vadd.f32 %v504, %v674
        %676 = vdwg.mxu0
        %677 = vmatprep.subr.mxu0 %v527
        %678 = vmatpush1.msra.mxu0 %v524
        %679 = vmatprep.subr.mxu0 0.0
        %680 = vmatpush1.msra.mxu0 0.0
        %681 = vmatprep.subr.mxu0 0.0
        %682 = vmatpush1.msra.mxu0 0.0
        %683 = vmatprep.subr.mxu0 0.0
        %684 = vmatpush1.msra.mxu0 0.0
        %685 = vmatprep.subr.mxu0 0.0
        %686 = vmatpush1.msra.mxu0 0.0
        %687 = vmatprep.subr.mxu0 0.0
        %688 = vmatpush1.msra.mxu0 0.0
        %689 = vmatprep.subr.mxu0 0.0
        %690 = vmatpush1.msra.mxu0 0.0
        %691 = vmatprep.subr.mxu0 0.0
        %692 = vmatpush1.msra.mxu0 0.0
        %693 = vmatprep.subr.mxu0 0.0
        %694 = vmatpush1.msra.mxu0 0.0
        %695 = vmatprep.subr.mxu0 0.0
        %696 = vmatpush1.msra.mxu0 0.0
        %697 = vmatprep.subr.mxu0 0.0
        %698 = vmatpush1.msra.mxu0 0.0
        %699 = vmatprep.subr.mxu0 0.0
        %700 = vmatpush1.msra.mxu0 0.0
        %701 = vmatprep.subr.mxu0 0.0
        %702 = vmatpush1.msra.mxu0 0.0
        %703 = vmatprep.subr.mxu0 0.0
        %704 = vmatpush1.msra.mxu0 0.0
        %705 = vmatprep.subr.mxu0 0.0
        %706 = vmatpush1.msra.mxu0 0.0
        %707 = vmatprep.subr.mxu0 0.0
        %708 = vmatpush1.msra.mxu0 0.0
        %709 = vmatprep.subr.mxu0 0.0
        %710 = vmatpush1.msra.mxu0 0.0
        %711 = vmatprep.subr.mxu0 0.0
        %712 = vmatpush1.msra.mxu0 0.0
        %713 = vmatprep.subr.mxu0 0.0
        %714 = vmatpush1.msra.mxu0 0.0
        %715 = vmatprep.subr.mxu0 0.0
        %716 = vmatpush1.msra.mxu0 0.0
        %717 = vmatprep.subr.mxu0 0.0
        %718 = vmatpush1.msra.mxu0 0.0
        %719 = vmatprep.subr.mxu0 0.0
        %720 = vmatpush1.msra.mxu0 0.0
        %721 = vmatprep.subr.mxu0 0.0
        %722 = vmatpush1.msra.mxu0 0.0
        %723 = vmatprep.subr.mxu0 0.0
        %724 = vmatpush1.msra.mxu0 0.0
        %725 = vmatprep.subr.mxu0 0.0
        %726 = vmatpush1.msra.mxu0 0.0
        %727 = vmatprep.subr.mxu0 0.0
        %728 = vmatpush1.msra.mxu0 0.0
        %729 = vmatprep.subr.mxu0 0.0
        %730 = vmatpush1.msra.mxu0 0.0
        %731 = vmatprep.subr.mxu0 0.0
        %732 = vmatpush1.msra.mxu0 0.0
        %733 = vmatprep.subr.mxu0 0.0
        %734 = vmatpush1.msra.mxu0 0.0
        %735 = vmatprep.subr.mxu0 0.0
        %736 = vmatpush1.msra.mxu0 0.0
        %737 = vmatprep.subr.mxu0 0.0
        %738 = vmatpush1.msra.mxu0 0.0
        %739 = vmatprep.subr.mxu0 0.0
        %740 = vmatpush1.msra.mxu0 0.0
        %741 = vmatprep.mubr.f32.mxu0 0.0
        %742 = vmatmul.mubr.f32.gmra.mrb[0].mxu0 %v508
        %v743 = vpop.f32.mrb[0].mxu0
        %v744 = vadd.f32 %v504, %v743
        %v745 = vpop.f32.mrb[0].mxu0
        %v746 = vadd.f32 %v504, %v745
        %747 = vdwg.mxu0
        %748 = vmatprep.subr.mxu0 %v533
        %749 = vmatpush1.msra.mxu0 %v530
        %750 = vmatprep.subr.mxu0 0.0
        %751 = vmatpush1.msra.mxu0 0.0
        %752 = vmatprep.subr.mxu0 0.0
        %753 = vmatpush1.msra.mxu0 0.0
        %754 = vmatprep.subr.mxu0 0.0
        %755 = vmatpush1.msra.mxu0 0.0
        %756 = vmatprep.subr.mxu0 0.0
        %757 = vmatpush1.msra.mxu0 0.0
        %758 = vmatprep.subr.mxu0 0.0
        %759 = vmatpush1.msra.mxu0 0.0
        %760 = vmatprep.subr.mxu0 0.0
        %761 = vmatpush1.msra.mxu0 0.0
        %762 = vmatprep.subr.mxu0 0.0
        %763 = vmatpush1.msra.mxu0 0.0
        %764 = vmatprep.subr.mxu0 0.0
        %765 = vmatpush1.msra.mxu0 0.0
        %766 = vmatprep.subr.mxu0 0.0
        %767 = vmatpush1.msra.mxu0 0.0
        %768 = vmatprep.subr.mxu0 0.0
        %769 = vmatpush1.msra.mxu0 0.0
        %770 = vmatprep.subr.mxu0 0.0
        %771 = vmatpush1.msra.mxu0 0.0
        %772 = vmatprep.subr.mxu0 0.0
        %773 = vmatpush1.msra.mxu0 0.0
        %774 = vmatprep.subr.mxu0 0.0
        %775 = vmatpush1.msra.mxu0 0.0
        %776 = vmatprep.subr.mxu0 0.0
        %777 = vmatpush1.msra.mxu0 0.0
        %778 = vmatprep.subr.mxu0 0.0
        %779 = vmatpush1.msra.mxu0 0.0
        %780 = vmatprep.subr.mxu0 0.0
        %781 = vmatpush1.msra.mxu0 0.0
        %782 = vmatprep.subr.mxu0 0.0
        %783 = vmatpush1.msra.mxu0 0.0
        %784 = vmatprep.subr.mxu0 0.0
        %785 = vmatpush1.msra.mxu0 0.0
        %786 = vmatprep.subr.mxu0 0.0
        %787 = vmatpush1.msra.mxu0 0.0
        %788 = vmatprep.subr.mxu0 0.0
        %789 = vmatpush1.msra.mxu0 0.0
        %790 = vmatprep.subr.mxu0 0.0
        %791 = vmatpush1.msra.mxu0 0.0
        %792 = vmatprep.subr.mxu0 0.0
        %793 = vmatpush1.msra.mxu0 0.0
        %794 = vmatprep.subr.mxu0 0.0
        %795 = vmatpush1.msra.mxu0 0.0
        %796 = vmatprep.subr.mxu0 0.0
        %797 = vmatpush1.msra.mxu0 0.0
        %798 = vmatprep.subr.mxu0 0.0
        %799 = vmatpush1.msra.mxu0 0.0
        %800 = vmatprep.subr.mxu0 0.0
        %801 = vmatpush1.msra.mxu0 0.0
        %802 = vmatprep.subr.mxu0 0.0
        %803 = vmatpush1.msra.mxu0 0.0
        %804 = vmatprep.subr.mxu0 0.0
        %805 = vmatpush1.msra.mxu0 0.0
        %806 = vmatprep.subr.mxu0 0.0
        %807 = vmatpush1.msra.mxu0 0.0
        %808 = vmatprep.subr.mxu0 0.0
        %809 = vmatpush1.msra.mxu0 0.0
        %810 = vmatprep.subr.mxu0 0.0
        %811 = vmatpush1.msra.mxu0 0.0
        %812 = vmatprep.mubr.f32.mxu0 0.0
        %813 = vmatmul.mubr.f32.gmra.mrb[0].mxu0 %v508
        %v814 = vpop.f32.mrb[0].mxu0
        %v815 = vadd.f32 %v504, %v814
        %v816 = vpop.f32.mrb[0].mxu0
        %v817 = vadd.f32 %v504, %v816
        %818 = vdwg.mxu0
        %v819 = vmax.f32 %v602, 0.0
        %v820 = vmax.f32 %v604, 0.0
        %v821 = vmax.f32 %v673, 0.0
        %v822 = vmax.f32 %v675, 0.0
        %v823 = vmax.f32 %v744, 0.0
        %v824 = vmax.f32 %v746, 0.0
        %v825 = vmax.f32 %v815, 0.0
        %v826 = vmax.f32 %v817, 0.0
        %v827 = vadd.f32 %v482, %v819
        %v828 = vadd.f32 %v483, %v820
        %v829 = vadd.f32 %v485, %v821
        %v830 = vadd.f32 %v486, %v822
        %v831 = vadd.f32 %v488, %v823
        %v832 = vadd.f32 %v489, %v824
        %v833 = vadd.f32 %v491, %v825
        %v834 = vadd.f32 %v492, %v826
        %v835 = vadd.f32 %v827, %v829
        %v836 = vadd.f32 %v828, %v830
        %v837 = vadd.f32 %v835, %v831
        %v838 = vadd.f32 %v836, %v832
        %v839 = vadd.f32 %v837, %v833
        %v840 = vadd.f32 %v838, %v834
        %v841 = vmul.f32 %v839, 0.25
        %v842 = vmul.f32 %v840, 0.25
        %v843 = vsub.f32 %v827, %v841
        %v844 = vsub.f32 %v828, %v842
        %v845 = vmul.f32 %v843, %v843
        %v846 = vmul.f32 %v844, %v844
        %v847 = vsub.f32 %v829, %v841
        %v848 = vsub.f32 %v830, %v842
        %v849 = vmul.f32 %v847, %v847
        %v850 = vmul.f32 %v848, %v848
        %v851 = vadd.f32 %v845, %v849
        %v852 = vadd.f32 %v846, %v850
        %v853 = vsub.f32 %v831, %v841
        %v854 = vsub.f32 %v832, %v842
        %v855 = vmul.f32 %v853, %v853
        %v856 = vmul.f32 %v854, %v854
        %v857 = vadd.f32 %v851, %v855
        %v858 = vadd.f32 %v852, %v856
        %v859 = vsub.f32 %v833, %v841
        %v860 = vsub.f32 %v834, %v842
        %v861 = vmul.f32 %v859, %v859
        %v862 = vmul.f32 %v860, %v860
        %v863 = vadd.f32 %v857, %v861
        %v864 = vadd.f32 %v858, %v862
        %v865 = vmul.f32 %v863, 0.33333334
        %v866 = vmul.f32 %v864, 0.33333334
        %868 = vset.pattern.permute.xlu0 0
        %869 = vperm.xlu0 %868, %v472
        %v870 = vpop.permute.xlu0 %869
        %873 = vset.pattern.permute.xlu0 0
        %874 = vperm.xlu0 %873, %v473
        %v875 = vpop.permute.xlu0 %874
        %878 = vset.pattern.permute.xlu0 0
        %879 = vperm.xlu0 %878, %v474
        %v880 = vpop.permute.xlu0 %879
        %883 = vset.pattern.permute.xlu0 0
        %884 = vperm.xlu0 %883, %v475
        %v885 = vpop.permute.xlu0 %884
        %vm887 = vcmask 130048
        %v889 = vsel %vm887, %v468, 0
        %v892 = vsel %vm887, %v469, 0
        %v895 = vsel %vm887, %v470, 0
        %v898 = vsel %vm887, %v471, 0
        %900 = vmatprep.subr.mxu0 %v866
        %901 = vmatpush1.msra.mxu0 %v865
        %902 = vmatprep.subr.mxu0 %v842
        %903 = vmatpush1.msra.mxu0 %v841
        %904 = vmatprep.subr.mxu0 0.0
        %905 = vmatpush1.msra.mxu0 0.0
        %906 = vmatprep.subr.mxu0 0.0
        %907 = vmatpush1.msra.mxu0 0.0
        %908 = vmatprep.subr.mxu0 0.0
        %909 = vmatpush1.msra.mxu0 0.0
        %910 = vmatprep.subr.mxu0 0.0
        %911 = vmatpush1.msra.mxu0 0.0
        %912 = vmatprep.subr.mxu0 0.0
        %913 = vmatpush1.msra.mxu0 0.0
        %914 = vmatprep.subr.mxu0 0.0
        %915 = vmatpush1.msra.mxu0 0.0
        %916 = vmatprep.subr.mxu0 0.0
        %917 = vmatpush1.msra.mxu0 0.0
        %918 = vmatprep.subr.mxu0 0.0
        %919 = vmatpush1.msra.mxu0 0.0
        %920 = vmatprep.subr.mxu0 0.0
        %921 = vmatpush1.msra.mxu0 0.0
        %922 = vmatprep.subr.mxu0 0.0
        %923 = vmatpush1.msra.mxu0 0.0
        %924 = vmatprep.subr.mxu0 0.0
        %925 = vmatpush1.msra.mxu0 0.0
        %926 = vmatprep.subr.mxu0 0.0
        %927 = vmatpush1.msra.mxu0 0.0
        %928 = vmatprep.subr.mxu0 0.0
        %929 = vmatpush1.msra.mxu0 0.0
        %930 = vmatprep.subr.mxu0 0.0
        %931 = vmatpush1.msra.mxu0 0.0
        %932 = vmatprep.subr.mxu0 0.0
        %933 = vmatpush1.msra.mxu0 0.0
        %934 = vmatprep.subr.mxu0 0.0
        %935 = vmatpush1.msra.mxu0 0.0
        %936 = vmatprep.subr.mxu0 0.0
        %937 = vmatpush1.msra.mxu0 0.0
        %938 = vmatprep.subr.mxu0 0.0
        %939 = vmatpush1.msra.mxu0 0.0
        %940 = vmatprep.subr.mxu0 0.0
        %941 = vmatpush1.msra.mxu0 0.0
        %942 = vmatprep.subr.mxu0 0.0
        %943 = vmatpush1.msra.mxu0 0.0
        %944 = vmatprep.subr.mxu0 0.0
        %945 = vmatpush1.msra.mxu0 0.0
        %946 = vmatprep.subr.mxu0 0.0
        %947 = vmatpush1.msra.mxu0 0.0
        %948 = vmatprep.subr.mxu0 0.0
        %949 = vmatpush1.msra.mxu0 0.0
        %950 = vmatprep.subr.mxu0 0.0
        %951 = vmatpush1.msra.mxu0 0.0
        %952 = vmatprep.subr.mxu0 0.0
        %953 = vmatpush1.msra.mxu0 0.0
        %954 = vmatprep.subr.mxu0 0.0
        %955 = vmatpush1.msra.mxu0 0.0
        %956 = vmatprep.subr.mxu0 0.0
        %957 = vmatpush1.msra.mxu0 0.0
        %958 = vmatprep.subr.mxu0 0.0
        %959 = vmatpush1.msra.mxu0 0.0
        %960 = vmatprep.subr.mxu0 0.0
        %961 = vmatpush1.msra.mxu0 0.0
        %962 = vmatprep.subr.mxu0 0.0
        %963 = vmatpush1.msra.mxu0 0.0
        %964 = vmatprep.mubr.f32.mxu0 0.0
        %965 = vmatmul.mubr.f32.gmra.mrb[0].mxu0 %v889
        %v966 = vpop.f32.mrb[0].mxu0
        %v967 = vadd.f32 %v870, %v966
        %v968 = vpop.f32.mrb[0].mxu0
        %v969 = vadd.f32 %v870, %v968
        %970 = vmatprep.mubr.f32.mxu0 0.0
        %971 = vmatmul.mubr.f32.gmra.mrb[0].mxu0 %v892
        %v972 = vpop.f32.mrb[0].mxu0
        %v973 = vadd.f32 %v875, %v972
        %v974 = vpop.f32.mrb[0].mxu0
        %v975 = vadd.f32 %v875, %v974
        %976 = vmatprep.mubr.f32.mxu0 0.0
        %977 = vmatmul.mubr.f32.gmra.mrb[0].mxu0 %v895
        %v978 = vpop.f32.mrb[0].mxu0
        %v979 = vadd.f32 %v880, %v978
        %v980 = vpop.f32.mrb[0].mxu0
        %v981 = vadd.f32 %v880, %v980
        %982 = vmatprep.mubr.f32.mxu0 0.0
        %983 = vmatmul.mubr.f32.gmra.mrb[0].mxu0 %v898
        %v984 = vpop.f32.mrb[0].mxu0
        %v985 = vadd.f32 %v885, %v984
        %v986 = vpop.f32.mrb[0].mxu0
        %v987 = vadd.f32 %v885, %v986
        %988 = vdwg.mxu0
        %vm989 = vcmask 64512
        %v991 = vsel %vm989, %v464, 0
        %v994 = vsel %vm989, %v465, 0
        %v997 = vsel %vm989, %v466, 0
        %v1000 = vsel %vm989, %v467, 0
        %1002 = vmatprep.subr.mxu0 %v828
        %1003 = vmatpush1.msra.mxu0 %v827
        %1004 = vmatprep.subr.mxu0 0.0
        %1005 = vmatpush1.msra.mxu0 0.0
        %1006 = vmatprep.subr.mxu0 0.0
        %1007 = vmatpush1.msra.mxu0 0.0
        %1008 = vmatprep.subr.mxu0 0.0
        %1009 = vmatpush1.msra.mxu0 0.0
        %1010 = vmatprep.subr.mxu0 0.0
        %1011 = vmatpush1.msra.mxu0 0.0
        %1012 = vmatprep.subr.mxu0 0.0
        %1013 = vmatpush1.msra.mxu0 0.0
        %1014 = vmatprep.subr.mxu0 0.0
        %1015 = vmatpush1.msra.mxu0 0.0
        %1016 = vmatprep.subr.mxu0 0.0
        %1017 = vmatpush1.msra.mxu0 0.0
        %1018 = vmatprep.subr.mxu0 0.0
        %1019 = vmatpush1.msra.mxu0 0.0
        %1020 = vmatprep.subr.mxu0 0.0
        %1021 = vmatpush1.msra.mxu0 0.0
        %1022 = vmatprep.subr.mxu0 0.0
        %1023 = vmatpush1.msra.mxu0 0.0
        %1024 = vmatprep.subr.mxu0 0.0
        %1025 = vmatpush1.msra.mxu0 0.0
        %1026 = vmatprep.subr.mxu0 0.0
        %1027 = vmatpush1.msra.mxu0 0.0
        %1028 = vmatprep.subr.mxu0 0.0
        %1029 = vmatpush1.msra.mxu0 0.0
        %1030 = vmatprep.subr.mxu0 0.0
        %1031 = vmatpush1.msra.mxu0 0.0
        %1032 = vmatprep.subr.mxu0 0.0
        %1033 = vmatpush1.msra.mxu0 0.0
        %1034 = vmatprep.subr.mxu0 0.0
        %1035 = vmatpush1.msra.mxu0 0.0
        %1036 = vmatprep.subr.mxu0 0.0
        %1037 = vmatpush1.msra.mxu0 0.0
        %1038 = vmatprep.subr.mxu0 0.0
        %1039 = vmatpush1.msra.mxu0 0.0
        %1040 = vmatprep.subr.mxu0 0.0
        %1041 = vmatpush1.msra.mxu0 0.0
        %1042 = vmatprep.subr.mxu0 0.0
        %1043 = vmatpush1.msra.mxu0 0.0
        %1044 = vmatprep.subr.mxu0 0.0
        %1045 = vmatpush1.msra.mxu0 0.0
        %1046 = vmatprep.subr.mxu0 0.0
        %1047 = vmatpush1.msra.mxu0 0.0
        %1048 = vmatprep.subr.mxu0 0.0
        %1049 = vmatpush1.msra.mxu0 0.0
        %1050 = vmatprep.subr.mxu0 0.0
        %1051 = vmatpush1.msra.mxu0 0.0
        %1052 = vmatprep.subr.mxu0 0.0
        %1053 = vmatpush1.msra.mxu0 0.0
        %1054 = vmatprep.subr.mxu0 0.0
        %1055 = vmatpush1.msra.mxu0 0.0
        %1056 = vmatprep.subr.mxu0 0.0
        %1057 = vmatpush1.msra.mxu0 0.0
        %1058 = vmatprep.subr.mxu0 0.0
        %1059 = vmatpush1.msra.mxu0 0.0
        %1060 = vmatprep.subr.mxu0 0.0
        %1061 = vmatpush1.msra.mxu0 0.0
        %1062 = vmatprep.subr.mxu0 0.0
        %1063 = vmatpush1.msra.mxu0 0.0
        %1064 = vmatprep.subr.mxu0 0.0
        %1065 = vmatpush1.msra.mxu0 0.0
        %1066 = vmatprep.mubr.f32.mxu0 0.0
        %1067 = vmatmul.mubr.f32.gmra.mrb[0].mxu0 %v991
        %v1068 = vpop.f32.mrb[0].mxu0
        %v1069 = vadd.f32 0.0, %v1068
        %v1070 = vpop.f32.mrb[0].mxu0
        %v1071 = vadd.f32 0.0, %v1070
        %1072 = vmatprep.mubr.f32.mxu0 0.0
        %1073 = vmatmul.mubr.f32.gmra.mrb[0].mxu0 %v994
        %v1074 = vpop.f32.mrb[0].mxu0
        %v1075 = vadd.f32 0.0, %v1074
        %v1076 = vpop.f32.mrb[0].mxu0
        %v1077 = vadd.f32 0.0, %v1076
        %1078 = vmatprep.mubr.f32.mxu0 0.0
        %1079 = vmatmul.mubr.f32.gmra.mrb[0].mxu0 %v997
        %v1080 = vpop.f32.mrb[0].mxu0
        %v1081 = vadd.f32 0.0, %v1080
        %v1082 = vpop.f32.mrb[0].mxu0
        %v1083 = vadd.f32 0.0, %v1082
        %1084 = vmatprep.mubr.f32.mxu0 0.0
        %1085 = vmatmul.mubr.f32.gmra.mrb[0].mxu0 %v1000
        %v1086 = vpop.f32.mrb[0].mxu0
        %v1087 = vadd.f32 0.0, %v1086
        %v1088 = vpop.f32.mrb[0].mxu0
        %v1089 = vadd.f32 0.0, %v1088
        %1090 = vdwg.mxu0
        %1091 = vmatprep.subr.mxu0 %v830
        %1092 = vmatpush1.msra.mxu0 %v829
        %1093 = vmatprep.subr.mxu0 0.0
        %1094 = vmatpush1.msra.mxu0 0.0
        %1095 = vmatprep.subr.mxu0 0.0
        %1096 = vmatpush1.msra.mxu0 0.0
        %1097 = vmatprep.subr.mxu0 0.0
        %1098 = vmatpush1.msra.mxu0 0.0
        %1099 = vmatprep.subr.mxu0 0.0
        %1100 = vmatpush1.msra.mxu0 0.0
        %1101 = vmatprep.subr.mxu0 0.0
        %1102 = vmatpush1.msra.mxu0 0.0
        %1103 = vmatprep.subr.mxu0 0.0
        %1104 = vmatpush1.msra.mxu0 0.0
        %1105 = vmatprep.subr.mxu0 0.0
        %1106 = vmatpush1.msra.mxu0 0.0
        %1107 = vmatprep.subr.mxu0 0.0
        %1108 = vmatpush1.msra.mxu0 0.0
        %1109 = vmatprep.subr.mxu0 0.0
        %1110 = vmatpush1.msra.mxu0 0.0
        %1111 = vmatprep.subr.mxu0 0.0
        %1112 = vmatpush1.msra.mxu0 0.0
        %1113 = vmatprep.subr.mxu0 0.0
        %1114 = vmatpush1.msra.mxu0 0.0
        %1115 = vmatprep.subr.mxu0 0.0
        %1116 = vmatpush1.msra.mxu0 0.0
        %1117 = vmatprep.subr.mxu0 0.0
        %1118 = vmatpush1.msra.mxu0 0.0
        %1119 = vmatprep.subr.mxu0 0.0
        %1120 = vmatpush1.msra.mxu0 0.0
        %1121 = vmatprep.subr.mxu0 0.0
        %1122 = vmatpush1.msra.mxu0 0.0
        %1123 = vmatprep.subr.mxu0 0.0
        %1124 = vmatpush1.msra.mxu0 0.0
        %1125 = vmatprep.subr.mxu0 0.0
        %1126 = vmatpush1.msra.mxu0 0.0
        %1127 = vmatprep.subr.mxu0 0.0
        %1128 = vmatpush1.msra.mxu0 0.0
        %1129 = vmatprep.subr.mxu0 0.0
        %1130 = vmatpush1.msra.mxu0 0.0
        %1131 = vmatprep.subr.mxu0 0.0
        %1132 = vmatpush1.msra.mxu0 0.0
        %1133 = vmatprep.subr.mxu0 0.0
        %1134 = vmatpush1.msra.mxu0 0.0
        %1135 = vmatprep.subr.mxu0 0.0
        %1136 = vmatpush1.msra.mxu0 0.0
        %1137 = vmatprep.subr.mxu0 0.0
        %1138 = vmatpush1.msra.mxu0 0.0
        %1139 = vmatprep.subr.mxu0 0.0
        %1140 = vmatpush1.msra.mxu0 0.0
        %1141 = vmatprep.subr.mxu0 0.0
        %1142 = vmatpush1.msra.mxu0 0.0
        %1143 = vmatprep.subr.mxu0 0.0
        %1144 = vmatpush1.msra.mxu0 0.0
        %1145 = vmatprep.subr.mxu0 0.0
        %1146 = vmatpush1.msra.mxu0 0.0
        %1147 = vmatprep.subr.mxu0 0.0
        %1148 = vmatpush1.msra.mxu0 0.0
        %1149 = vmatprep.subr.mxu0 0.0
        %1150 = vmatpush1.msra.mxu0 0.0
        %1151 = vmatprep.subr.mxu0 0.0
        %1152 = vmatpush1.msra.mxu0 0.0
        %1153 = vmatprep.subr.mxu0 0.0
        %1154 = vmatpush1.msra.mxu0 0.0
        %1155 = vmatprep.mubr.f32.mxu0 0.0
        %1156 = vmatmul.mubr.f32.gmra.mrb[0].mxu0 %v991
        %v1157 = vpop.f32.mrb[0].mxu0
        %v1158 = vadd.f32 0.0, %v1157
        %v1159 = vpop.f32.mrb[0].mxu0
        %v1160 = vadd.f32 0.0, %v1159
        %1161 = vmatprep.mubr.f32.mxu0 0.0
        %1162 = vmatmul.mubr.f32.gmra.mrb[0].mxu0 %v994
        %v1163 = vpop.f32.mrb[0].mxu0
        %v1164 = vadd.f32 0.0, %v1163
        %v1165 = vpop.f32.mrb[0].mxu0
        %v1166 = vadd.f32 0.0, %v1165
        %1167 = vmatprep.mubr.f32.mxu0 0.0
        %1168 = vmatmul.mubr.f32.gmra.mrb[0].mxu0 %v997
        %v1169 = vpop.f32.mrb[0].mxu0
        %v1170 = vadd.f32 0.0, %v1169
        %v1171 = vpop.f32.mrb[0].mxu0
        %v1172 = vadd.f32 0.0, %v1171
        %1173 = vmatprep.mubr.f32.mxu0 0.0
        %1174 = vmatmul.mubr.f32.gmra.mrb[0].mxu0 %v1000
        %v1175 = vpop.f32.mrb[0].mxu0
        %v1176 = vadd.f32 0.0, %v1175
        %v1177 = vpop.f32.mrb[0].mxu0
        %v1178 = vadd.f32 0.0, %v1177
        %1179 = vdwg.mxu0
        %1180 = vmatprep.subr.mxu0 %v832
        %1181 = vmatpush1.msra.mxu0 %v831
        %1182 = vmatprep.subr.mxu0 0.0
        %1183 = vmatpush1.msra.mxu0 0.0
        %1184 = vmatprep.subr.mxu0 0.0
        %1185 = vmatpush1.msra.mxu0 0.0
        %1186 = vmatprep.subr.mxu0 0.0
        %1187 = vmatpush1.msra.mxu0 0.0
        %1188 = vmatprep.subr.mxu0 0.0
        %1189 = vmatpush1.msra.mxu0 0.0
        %1190 = vmatprep.subr.mxu0 0.0
        %1191 = vmatpush1.msra.mxu0 0.0
        %1192 = vmatprep.subr.mxu0 0.0
        %1193 = vmatpush1.msra.mxu0 0.0
        %1194 = vmatprep.subr.mxu0 0.0
        %1195 = vmatpush1.msra.mxu0 0.0
        %1196 = vmatprep.subr.mxu0 0.0
        %1197 = vmatpush1.msra.mxu0 0.0
        %1198 = vmatprep.subr.mxu0 0.0
        %1199 = vmatpush1.msra.mxu0 0.0
        %1200 = vmatprep.subr.mxu0 0.0
        %1201 = vmatpush1.msra.mxu0 0.0
        %1202 = vmatprep.subr.mxu0 0.0
        %1203 = vmatpush1.msra.mxu0 0.0
        %1204 = vmatprep.subr.mxu0 0.0
        %1205 = vmatpush1.msra.mxu0 0.0
        %1206 = vmatprep.subr.mxu0 0.0
        %1207 = vmatpush1.msra.mxu0 0.0
        %1208 = vmatprep.subr.mxu0 0.0
        %1209 = vmatpush1.msra.mxu0 0.0
        %1210 = vmatprep.subr.mxu0 0.0
        %1211 = vmatpush1.msra.mxu0 0.0
        %1212 = vmatprep.subr.mxu0 0.0
        %1213 = vmatpush1.msra.mxu0 0.0
        %1214 = vmatprep.subr.mxu0 0.0
        %1215 = vmatpush1.msra.mxu0 0.0
        %1216 = vmatprep.subr.mxu0 0.0
        %1217 = vmatpush1.msra.mxu0 0.0
        %1218 = vmatprep.subr.mxu0 0.0
        %1219 = vmatpush1.msra.mxu0 0.0
        %1220 = vmatprep.subr.mxu0 0.0
        %1221 = vmatpush1.msra.mxu0 0.0
        %1222 = vmatprep.subr.mxu0 0.0
        %1223 = vmatpush1.msra.mxu0 0.0
        %1224 = vmatprep.subr.mxu0 0.0
        %1225 = vmatpush1.msra.mxu0 0.0
        %1226 = vmatprep.subr.mxu0 0.0
        %1227 = vmatpush1.msra.mxu0 0.0
        %1228 = vmatprep.subr.mxu0 0.0
        %1229 = vmatpush1.msra.mxu0 0.0
        %1230 = vmatprep.subr.mxu0 0.0
        %1231 = vmatpush1.msra.mxu0 0.0
        %1232 = vmatprep.subr.mxu0 0.0
        %1233 = vmatpush1.msra.mxu0 0.0
        %1234 = vmatprep.subr.mxu0 0.0
        %1235 = vmatpush1.msra.mxu0 0.0
        %1236 = vmatprep.subr.mxu0 0.0
        %1237 = vmatpush1.msra.mxu0 0.0
        %1238 = vmatprep.subr.mxu0 0.0
        %1239 = vmatpush1.msra.mxu0 0.0
        %1240 = vmatprep.subr.mxu0 0.0
        %1241 = vmatpush1.msra.mxu0 0.0
        %1242 = vmatprep.subr.mxu0 0.0
        %1243 = vmatpush1.msra.mxu0 0.0
        %1244 = vmatprep.mubr.f32.mxu0 0.0
        %1245 = vmatmul.mubr.f32.gmra.mrb[0].mxu0 %v991
        %v1246 = vpop.f32.mrb[0].mxu0
        %v1247 = vadd.f32 0.0, %v1246
        %v1248 = vpop.f32.mrb[0].mxu0
        %v1249 = vadd.f32 0.0, %v1248
        %1250 = vmatprep.mubr.f32.mxu0 0.0
        %1251 = vmatmul.mubr.f32.gmra.mrb[0].mxu0 %v994
        %v1252 = vpop.f32.mrb[0].mxu0
        %v1253 = vadd.f32 0.0, %v1252
        %v1254 = vpop.f32.mrb[0].mxu0
        %v1255 = vadd.f32 0.0, %v1254
        %1256 = vmatprep.mubr.f32.mxu0 0.0
        %1257 = vmatmul.mubr.f32.gmra.mrb[0].mxu0 %v997
        %v1258 = vpop.f32.mrb[0].mxu0
        %v1259 = vadd.f32 0.0, %v1258
        %v1260 = vpop.f32.mrb[0].mxu0
        %v1261 = vadd.f32 0.0, %v1260
        %1262 = vmatprep.mubr.f32.mxu0 0.0
        %1263 = vmatmul.mubr.f32.gmra.mrb[0].mxu0 %v1000
        %v1264 = vpop.f32.mrb[0].mxu0
        %v1265 = vadd.f32 0.0, %v1264
        %v1266 = vpop.f32.mrb[0].mxu0
        %v1267 = vadd.f32 0.0, %v1266
        %1268 = vdwg.mxu0
        %1269 = vmatprep.subr.mxu0 %v834
        %1270 = vmatpush1.msra.mxu0 %v833
        %1271 = vmatprep.subr.mxu0 0.0
        %1272 = vmatpush1.msra.mxu0 0.0
        %1273 = vmatprep.subr.mxu0 0.0
        %1274 = vmatpush1.msra.mxu0 0.0
        %1275 = vmatprep.subr.mxu0 0.0
        %1276 = vmatpush1.msra.mxu0 0.0
        %1277 = vmatprep.subr.mxu0 0.0
        %1278 = vmatpush1.msra.mxu0 0.0
        %1279 = vmatprep.subr.mxu0 0.0
        %1280 = vmatpush1.msra.mxu0 0.0
        %1281 = vmatprep.subr.mxu0 0.0
        %1282 = vmatpush1.msra.mxu0 0.0
        %1283 = vmatprep.subr.mxu0 0.0
        %1284 = vmatpush1.msra.mxu0 0.0
        %1285 = vmatprep.subr.mxu0 0.0
        %1286 = vmatpush1.msra.mxu0 0.0
        %1287 = vmatprep.subr.mxu0 0.0
        %1288 = vmatpush1.msra.mxu0 0.0
        %1289 = vmatprep.subr.mxu0 0.0
        %1290 = vmatpush1.msra.mxu0 0.0
        %1291 = vmatprep.subr.mxu0 0.0
        %1292 = vmatpush1.msra.mxu0 0.0
        %1293 = vmatprep.subr.mxu0 0.0
        %1294 = vmatpush1.msra.mxu0 0.0
        %1295 = vmatprep.subr.mxu0 0.0
        %1296 = vmatpush1.msra.mxu0 0.0
        %1297 = vmatprep.subr.mxu0 0.0
        %1298 = vmatpush1.msra.mxu0 0.0
        %1299 = vmatprep.subr.mxu0 0.0
        %1300 = vmatpush1.msra.mxu0 0.0
        %1301 = vmatprep.subr.mxu0 0.0
        %1302 = vmatpush1.msra.mxu0 0.0
        %1303 = vmatprep.subr.mxu0 0.0
        %1304 = vmatpush1.msra.mxu0 0.0
        %1305 = vmatprep.subr.mxu0 0.0
        %1306 = vmatpush1.msra.mxu0 0.0
        %1307 = vmatprep.subr.mxu0 0.0
        %1308 = vmatpush1.msra.mxu0 0.0
        %1309 = vmatprep.subr.mxu0 0.0
        %1310 = vmatpush1.msra.mxu0 0.0
        %1311 = vmatprep.subr.mxu0 0.0
        %1312 = vmatpush1.msra.mxu0 0.0
        %1313 = vmatprep.subr.mxu0 0.0
        %1314 = vmatpush1.msra.mxu0 0.0
        %1315 = vmatprep.subr.mxu0 0.0
        %1316 = vmatpush1.msra.mxu0 0.0
        %1317 = vmatprep.subr.mxu0 0.0
        %1318 = vmatpush1.msra.mxu0 0.0
        %1319 = vmatprep.subr.mxu0 0.0
        %1320 = vmatpush1.msra.mxu0 0.0
        %1321 = vmatprep.subr.mxu0 0.0
        %1322 = vmatpush1.msra.mxu0 0.0
        %1323 = vmatprep.subr.mxu0 0.0
        %1324 = vmatpush1.msra.mxu0 0.0
        %1325 = vmatprep.subr.mxu0 0.0
        %1326 = vmatpush1.msra.mxu0 0.0
        %1327 = vmatprep.subr.mxu0 0.0
        %1328 = vmatpush1.msra.mxu0 0.0
        %1329 = vmatprep.subr.mxu0 0.0
        %1330 = vmatpush1.msra.mxu0 0.0
        %1331 = vmatprep.subr.mxu0 0.0
        %1332 = vmatpush1.msra.mxu0 0.0
        %1333 = vmatprep.mubr.f32.mxu0 0.0
        %1334 = vmatmul.mubr.f32.gmra.mrb[0].mxu0 %v991
        %v1335 = vpop.f32.mrb[0].mxu0
        %v1336 = vadd.f32 0.0, %v1335
        %v1337 = vpop.f32.mrb[0].mxu0
        %v1338 = vadd.f32 0.0, %v1337
        %1339 = vmatprep.mubr.f32.mxu0 0.0
        %1340 = vmatmul.mubr.f32.gmra.mrb[0].mxu0 %v994
        %v1341 = vpop.f32.mrb[0].mxu0
        %v1342 = vadd.f32 0.0, %v1341
        %v1343 = vpop.f32.mrb[0].mxu0
        %v1344 = vadd.f32 0.0, %v1343
        %1345 = vmatprep.mubr.f32.mxu0 0.0
        %1346 = vmatmul.mubr.f32.gmra.mrb[0].mxu0 %v997
        %v1347 = vpop.f32.mrb[0].mxu0
        %v1348 = vadd.f32 0.0, %v1347
        %v1349 = vpop.f32.mrb[0].mxu0
        %v1350 = vadd.f32 0.0, %v1349
        %1351 = vmatprep.mubr.f32.mxu0 0.0
        %1352 = vmatmul.mubr.f32.gmra.mrb[0].mxu0 %v1000
        %v1353 = vpop.f32.mrb[0].mxu0
        %v1354 = vadd.f32 0.0, %v1353
        %v1355 = vpop.f32.mrb[0].mxu0
        %v1356 = vadd.f32 0.0, %v1355
        %1357 = vdwg.mxu0
        %v1358 = vadd.f32 %v1069, %v967
        %v1359 = vadd.f32 %v1071, %v969
        %v1360 = vadd.f32 %v1075, %v973
        %v1361 = vadd.f32 %v1077, %v975
        %v1362 = vadd.f32 %v1081, %v979
        %v1363 = vadd.f32 %v1083, %v981
        %v1364 = vadd.f32 %v1087, %v985
        %v1365 = vadd.f32 %v1089, %v987
        %v1366 = vmax.f32 %v1358, 0.0
        %v1367 = vmax.f32 %v1359, 0.0
        %v1368 = vmax.f32 %v1360, 0.0
        %v1369 = vmax.f32 %v1361, 0.0
        %v1370 = vmax.f32 %v1362, 0.0
        %v1371 = vmax.f32 %v1363, 0.0
        %v1372 = vmax.f32 %v1364, 0.0
        %v1373 = vmax.f32 %v1365, 0.0
        %v1374 = vadd.f32 %v1158, %v967
        %v1375 = vadd.f32 %v1160, %v969
        %v1376 = vadd.f32 %v1164, %v973
        %v1377 = vadd.f32 %v1166, %v975
        %v1378 = vadd.f32 %v1170, %v979
        %v1379 = vadd.f32 %v1172, %v981
        %v1380 = vadd.f32 %v1176, %v985
        %v1381 = vadd.f32 %v1178, %v987
        %v1382 = vmax.f32 %v1374, 0.0
        %v1383 = vmax.f32 %v1375, 0.0
        %v1384 = vmax.f32 %v1376, 0.0
        %v1385 = vmax.f32 %v1377, 0.0
        %v1386 = vmax.f32 %v1378, 0.0
        %v1387 = vmax.f32 %v1379, 0.0
        %v1388 = vmax.f32 %v1380, 0.0
        %v1389 = vmax.f32 %v1381, 0.0
        %v1390 = vadd.f32 %v1247, %v967
        %v1391 = vadd.f32 %v1249, %v969
        %v1392 = vadd.f32 %v1253, %v973
        %v1393 = vadd.f32 %v1255, %v975
        %v1394 = vadd.f32 %v1259, %v979
        %v1395 = vadd.f32 %v1261, %v981
        %v1396 = vadd.f32 %v1265, %v985
        %v1397 = vadd.f32 %v1267, %v987
        %v1398 = vmax.f32 %v1390, 0.0
        %v1399 = vmax.f32 %v1391, 0.0
        %v1400 = vmax.f32 %v1392, 0.0
        %v1401 = vmax.f32 %v1393, 0.0
        %v1402 = vmax.f32 %v1394, 0.0
        %v1403 = vmax.f32 %v1395, 0.0
        %v1404 = vmax.f32 %v1396, 0.0
        %v1405 = vmax.f32 %v1397, 0.0
        %v1406 = vadd.f32 %v1336, %v967
        %v1407 = vadd.f32 %v1338, %v969
        %v1408 = vadd.f32 %v1342, %v973
        %v1409 = vadd.f32 %v1344, %v975
        %v1410 = vadd.f32 %v1348, %v979
        %v1411 = vadd.f32 %v1350, %v981
        %v1412 = vadd.f32 %v1354, %v985
        %v1413 = vadd.f32 %v1356, %v987
        %v1414 = vmax.f32 %v1406, 0.0
        %v1415 = vmax.f32 %v1407, 0.0
        %v1416 = vmax.f32 %v1408, 0.0
        %v1417 = vmax.f32 %v1409, 0.0
        %v1418 = vmax.f32 %v1410, 0.0
        %v1419 = vmax.f32 %v1411, 0.0
        %v1420 = vmax.f32 %v1412, 0.0
        %v1421 = vmax.f32 %v1413, 0.0
        %vm1422 = vcmask 261120
        %v1424 = vsel %vm1422, %v476, 0
        %1426 = vmatprep.subr.mxu0 %v1367
        %1427 = vmatpush1.msra.mxu0 %v1366
        %1428 = vmatprep.subr.mxu0 %v1369
        %1429 = vmatpush1.msra.mxu0 %v1368
        %1430 = vmatprep.subr.mxu0 %v1371
        %1431 = vmatpush1.msra.mxu0 %v1370
        %1432 = vmatprep.subr.mxu0 %v1373
        %1433 = vmatpush1.msra.mxu0 %v1372
        %1434 = vmatprep.subr.mxu0 0.0
        %1435 = vmatpush1.msra.mxu0 0.0
        %1436 = vmatprep.subr.mxu0 0.0
        %1437 = vmatpush1.msra.mxu0 0.0
        %1438 = vmatprep.subr.mxu0 0.0
        %1439 = vmatpush1.msra.mxu0 0.0
        %1440 = vmatprep.subr.mxu0 0.0
        %1441 = vmatpush1.msra.mxu0 0.0
        %1442 = vmatprep.subr.mxu0 0.0
        %1443 = vmatpush1.msra.mxu0 0.0
        %1444 = vmatprep.subr.mxu0 0.0
        %1445 = vmatpush1.msra.mxu0 0.0
        %1446 = vmatprep.subr.mxu0 0.0
        %1447 = vmatpush1.msra.mxu0 0.0
        %1448 = vmatprep.subr.mxu0 0.0
        %1449 = vmatpush1.msra.mxu0 0.0
        %1450 = vmatprep.subr.mxu0 0.0
        %1451 = vmatpush1.msra.mxu0 0.0
        %1452 = vmatprep.subr.mxu0 0.0
        %1453 = vmatpush1.msra.mxu0 0.0
        %1454 = vmatprep.subr.mxu0 0.0
        %1455 = vmatpush1.msra.mxu0 0.0
        %1456 = vmatprep.subr.mxu0 0.0
        %1457 = vmatpush1.msra.mxu0 0.0
        %1458 = vmatprep.subr.mxu0 0.0
        %1459 = vmatpush1.msra.mxu0 0.0
        %1460 = vmatprep.subr.mxu0 0.0
        %1461 = vmatpush1.msra.mxu0 0.0
        %1462 = vmatprep.subr.mxu0 0.0
        %1463 = vmatpush1.msra.mxu0 0.0
        %1464 = vmatprep.subr.mxu0 0.0
        %1465 = vmatpush1.msra.mxu0 0.0
        %1466 = vmatprep.subr.mxu0 0.0
        %1467 = vmatpush1.msra.mxu0 0.0
        %1468 = vmatprep.subr.mxu0 0.0
        %1469 = vmatpush1.msra.mxu0 0.0
        %1470 = vmatprep.subr.mxu0 0.0
        %1471 = vmatpush1.msra.mxu0 0.0
        %1472 = vmatprep.subr.mxu0 0.0
        %1473 = vmatpush1.msra.mxu0 0.0
        %1474 = vmatprep.subr.mxu0 0.0
        %1475 = vmatpush1.msra.mxu0 0.0
        %1476 = vmatprep.subr.mxu0 0.0
        %1477 = vmatpush1.msra.mxu0 0.0
        %1478 = vmatprep.subr.mxu0 0.0
        %1479 = vmatpush1.msra.mxu0 0.0
        %1480 = vmatprep.subr.mxu0 0.0
        %1481 = vmatpush1.msra.mxu0 0.0
        %1482 = vmatprep.subr.mxu0 0.0
        %1483 = vmatpush1.msra.mxu0 0.0
        %1484 = vmatprep.subr.mxu0 0.0
        %1485 = vmatpush1.msra.mxu0 0.0
        %1486 = vmatprep.subr.mxu0 0.0
        %1487 = vmatpush1.msra.mxu0 0.0
        %1488 = vmatprep.subr.mxu0 0.0
        %1489 = vmatpush1.msra.mxu0 0.0
        %1490 = vmatprep.mubr.f32.mxu0 0.0
        %1491 = vmatmul.mubr.f32.gmra.mrb[0].mxu0 %v1424
        %v1492 = vpop.f32.mrb[0].mxu0
        %v1493 = vadd.f32 0.0, %v1492
        %v1494 = vpop.f32.mrb[0].mxu0
        %v1495 = vadd.f32 0.0, %v1494
        %1496 = vdwg.mxu0
        %1497 = vmatprep.subr.mxu0 %v1383
        %1498 = vmatpush1.msra.mxu0 %v1382
        %1499 = vmatprep.subr.mxu0 %v1385
        %1500 = vmatpush1.msra.mxu0 %v1384
        %1501 = vmatprep.subr.mxu0 %v1387
        %1502 = vmatpush1.msra.mxu0 %v1386
        %1503 = vmatprep.subr.mxu0 %v1389
        %1504 = vmatpush1.msra.mxu0 %v1388
        %1505 = vmatprep.subr.mxu0 0.0
        %1506 = vmatpush1.msra.mxu0 0.0
        %1507 = vmatprep.subr.mxu0 0.0
        %1508 = vmatpush1.msra.mxu0 0.0
        %1509 = vmatprep.subr.mxu0 0.0
        %1510 = vmatpush1.msra.mxu0 0.0
        %1511 = vmatprep.subr.mxu0 0.0
        %1512 = vmatpush1.msra.mxu0 0.0
        %1513 = vmatprep.subr.mxu0 0.0
        %1514 = vmatpush1.msra.mxu0 0.0
        %1515 = vmatprep.subr.mxu0 0.0
        %1516 = vmatpush1.msra.mxu0 0.0
        %1517 = vmatprep.subr.mxu0 0.0
        %1518 = vmatpush1.msra.mxu0 0.0
        %1519 = vmatprep.subr.mxu0 0.0
        %1520 = vmatpush1.msra.mxu0 0.0
        %1521 = vmatprep.subr.mxu0 0.0
        %1522 = vmatpush1.msra.mxu0 0.0
        %1523 = vmatprep.subr.mxu0 0.0
        %1524 = vmatpush1.msra.mxu0 0.0
        %1525 = vmatprep.subr.mxu0 0.0
        %1526 = vmatpush1.msra.mxu0 0.0
        %1527 = vmatprep.subr.mxu0 0.0
        %1528 = vmatpush1.msra.mxu0 0.0
        %1529 = vmatprep.subr.mxu0 0.0
        %1530 = vmatpush1.msra.mxu0 0.0
        %1531 = vmatprep.subr.mxu0 0.0
        %1532 = vmatpush1.msra.mxu0 0.0
        %1533 = vmatprep.subr.mxu0 0.0
        %1534 = vmatpush1.msra.mxu0 0.0
        %1535 = vmatprep.subr.mxu0 0.0
        %1536 = vmatpush1.msra.mxu0 0.0
        %1537 = vmatprep.subr.mxu0 0.0
        %1538 = vmatpush1.msra.mxu0 0.0
        %1539 = vmatprep.subr.mxu0 0.0
        %1540 = vmatpush1.msra.mxu0 0.0
        %1541 = vmatprep.subr.mxu0 0.0
        %1542 = vmatpush1.msra.mxu0 0.0
        %1543 = vmatprep.subr.mxu0 0.0
        %1544 = vmatpush1.msra.mxu0 0.0
        %1545 = vmatprep.subr.mxu0 0.0
        %1546 = vmatpush1.msra.mxu0 0.0
        %1547 = vmatprep.subr.mxu0 0.0
        %1548 = vmatpush1.msra.mxu0 0.0
        %1549 = vmatprep.subr.mxu0 0.0
        %1550 = vmatpush1.msra.mxu0 0.0
        %1551 = vmatprep.subr.mxu0 0.0
        %1552 = vmatpush1.msra.mxu0 0.0
        %1553 = vmatprep.subr.mxu0 0.0
        %1554 = vmatpush1.msra.mxu0 0.0
        %1555 = vmatprep.subr.mxu0 0.0
        %1556 = vmatpush1.msra.mxu0 0.0
        %1557 = vmatprep.subr.mxu0 0.0
        %1558 = vmatpush1.msra.mxu0 0.0
        %1559 = vmatprep.subr.mxu0 0.0
        %1560 = vmatpush1.msra.mxu0 0.0
        %1561 = vmatprep.mubr.f32.mxu0 0.0
        %1562 = vmatmul.mubr.f32.gmra.mrb[0].mxu0 %v1424
        %v1563 = vpop.f32.mrb[0].mxu0
        %v1564 = vadd.f32 0.0, %v1563
        %v1565 = vpop.f32.mrb[0].mxu0
        %v1566 = vadd.f32 0.0, %v1565
        %1567 = vdwg.mxu0
        %1568 = vmatprep.subr.mxu0 %v1399
        %1569 = vmatpush1.msra.mxu0 %v1398
        %1570 = vmatprep.subr.mxu0 %v1401
        %1571 = vmatpush1.msra.mxu0 %v1400
        %1572 = vmatprep.subr.mxu0 %v1403
        %1573 = vmatpush1.msra.mxu0 %v1402
        %1574 = vmatprep.subr.mxu0 %v1405
        %1575 = vmatpush1.msra.mxu0 %v1404
        %1576 = vmatprep.subr.mxu0 0.0
        %1577 = vmatpush1.msra.mxu0 0.0
        %1578 = vmatprep.subr.mxu0 0.0
        %1579 = vmatpush1.msra.mxu0 0.0
        %1580 = vmatprep.subr.mxu0 0.0
        %1581 = vmatpush1.msra.mxu0 0.0
        %1582 = vmatprep.subr.mxu0 0.0
        %1583 = vmatpush1.msra.mxu0 0.0
        %1584 = vmatprep.subr.mxu0 0.0
        %1585 = vmatpush1.msra.mxu0 0.0
        %1586 = vmatprep.subr.mxu0 0.0
        %1587 = vmatpush1.msra.mxu0 0.0
        %1588 = vmatprep.subr.mxu0 0.0
        %1589 = vmatpush1.msra.mxu0 0.0
        %1590 = vmatprep.subr.mxu0 0.0
        %1591 = vmatpush1.msra.mxu0 0.0
        %1592 = vmatprep.subr.mxu0 0.0
        %1593 = vmatpush1.msra.mxu0 0.0
        %1594 = vmatprep.subr.mxu0 0.0
        %1595 = vmatpush1.msra.mxu0 0.0
        %1596 = vmatprep.subr.mxu0 0.0
        %1597 = vmatpush1.msra.mxu0 0.0
        %1598 = vmatprep.subr.mxu0 0.0
        %1599 = vmatpush1.msra.mxu0 0.0
        %1600 = vmatprep.subr.mxu0 0.0
        %1601 = vmatpush1.msra.mxu0 0.0
        %1602 = vmatprep.subr.mxu0 0.0
        %1603 = vmatpush1.msra.mxu0 0.0
        %1604 = vmatprep.subr.mxu0 0.0
        %1605 = vmatpush1.msra.mxu0 0.0
        %1606 = vmatprep.subr.mxu0 0.0
        %1607 = vmatpush1.msra.mxu0 0.0
        %1608 = vmatprep.subr.mxu0 0.0
        %1609 = vmatpush1.msra.mxu0 0.0
        %1610 = vmatprep.subr.mxu0 0.0
        %1611 = vmatpush1.msra.mxu0 0.0
        %1612 = vmatprep.subr.mxu0 0.0
        %1613 = vmatpush1.msra.mxu0 0.0
        %1614 = vmatprep.subr.mxu0 0.0
        %1615 = vmatpush1.msra.mxu0 0.0
        %1616 = vmatprep.subr.mxu0 0.0
        %1617 = vmatpush1.msra.mxu0 0.0
        %1618 = vmatprep.subr.mxu0 0.0
        %1619 = vmatpush1.msra.mxu0 0.0
        %1620 = vmatprep.subr.mxu0 0.0
        %1621 = vmatpush1.msra.mxu0 0.0
        %1622 = vmatprep.subr.mxu0 0.0
        %1623 = vmatpush1.msra.mxu0 0.0
        %1624 = vmatprep.subr.mxu0 0.0
        %1625 = vmatpush1.msra.mxu0 0.0
        %1626 = vmatprep.subr.mxu0 0.0
        %1627 = vmatpush1.msra.mxu0 0.0
        %1628 = vmatprep.subr.mxu0 0.0
        %1629 = vmatpush1.msra.mxu0 0.0
        %1630 = vmatprep.subr.mxu0 0.0
        %1631 = vmatpush1.msra.mxu0 0.0
        %1632 = vmatprep.mubr.f32.mxu0 0.0
        %1633 = vmatmul.mubr.f32.gmra.mrb[0].mxu0 %v1424
        %v1634 = vpop.f32.mrb[0].mxu0
        %v1635 = vadd.f32 0.0, %v1634
        %v1636 = vpop.f32.mrb[0].mxu0
        %v1637 = vadd.f32 0.0, %v1636
        %1638 = vdwg.mxu0
        %1639 = vmatprep.subr.mxu0 %v1415
        %1640 = vmatpush1.msra.mxu0 %v1414
        %1641 = vmatprep.subr.mxu0 %v1417
        %1642 = vmatpush1.msra.mxu0 %v1416
        %1643 = vmatprep.subr.mxu0 %v1419
        %1644 = vmatpush1.msra.mxu0 %v1418
        %1645 = vmatprep.subr.mxu0 %v1421
        %1646 = vmatpush1.msra.mxu0 %v1420
        %1647 = vmatprep.subr.mxu0 0.0
        %1648 = vmatpush1.msra.mxu0 0.0
        %1649 = vmatprep.subr.mxu0 0.0
        %1650 = vmatpush1.msra.mxu0 0.0
        %1651 = vmatprep.subr.mxu0 0.0
        %1652 = vmatpush1.msra.mxu0 0.0
        %1653 = vmatprep.subr.mxu0 0.0
        %1654 = vmatpush1.msra.mxu0 0.0
        %1655 = vmatprep.subr.mxu0 0.0
        %1656 = vmatpush1.msra.mxu0 0.0
        %1657 = vmatprep.subr.mxu0 0.0
        %1658 = vmatpush1.msra.mxu0 0.0
        %1659 = vmatprep.subr.mxu0 0.0
        %1660 = vmatpush1.msra.mxu0 0.0
        %1661 = vmatprep.subr.mxu0 0.0
        %1662 = vmatpush1.msra.mxu0 0.0
        %1663 = vmatprep.subr.mxu0 0.0
        %1664 = vmatpush1.msra.mxu0 0.0
        %1665 = vmatprep.subr.mxu0 0.0
        %1666 = vmatpush1.msra.mxu0 0.0
        %1667 = vmatprep.subr.mxu0 0.0
        %1668 = vmatpush1.msra.mxu0 0.0
        %1669 = vmatprep.subr.mxu0 0.0
        %1670 = vmatpush1.msra.mxu0 0.0
        %1671 = vmatprep.subr.mxu0 0.0
        %1672 = vmatpush1.msra.mxu0 0.0
        %1673 = vmatprep.subr.mxu0 0.0
        %1674 = vmatpush1.msra.mxu0 0.0
        %1675 = vmatprep.subr.mxu0 0.0
        %1676 = vmatpush1.msra.mxu0 0.0
        %1677 = vmatprep.subr.mxu0 0.0
        %1678 = vmatpush1.msra.mxu0 0.0
        %1679 = vmatprep.subr.mxu0 0.0
        %1680 = vmatpush1.msra.mxu0 0.0
        %1681 = vmatprep.subr.mxu0 0.0
        %1682 = vmatpush1.msra.mxu0 0.0
        %1683 = vmatprep.subr.mxu0 0.0
        %1684 = vmatpush1.msra.mxu0 0.0
        %1685 = vmatprep.subr.mxu0 0.0
        %1686 = vmatpush1.msra.mxu0 0.0
        %1687 = vmatprep.subr.mxu0 0.0
        %1688 = vmatpush1.msra.mxu0 0.0
        %1689 = vmatprep.subr.mxu0 0.0
        %1690 = vmatpush1.msra.mxu0 0.0
        %1691 = vmatprep.subr.mxu0 0.0
        %1692 = vmatpush1.msra.mxu0 0.0
        %1693 = vmatprep.subr.mxu0 0.0
        %1694 = vmatpush1.msra.mxu0 0.0
        %1695 = vmatprep.subr.mxu0 0.0
        %1696 = vmatpush1.msra.mxu0 0.0
        %1697 = vmatprep.subr.mxu0 0.0
        %1698 = vmatpush1.msra.mxu0 0.0
        %1699 = vmatprep.subr.mxu0 0.0
        %1700 = vmatpush1.msra.mxu0 0.0
        %1701 = vmatprep.subr.mxu0 0.0
        %1702 = vmatpush1.msra.mxu0 0.0
        %1703 = vmatprep.mubr.f32.mxu0 0.0
        %1704 = vmatmul.mubr.f32.gmra.mrb[0].mxu0 %v1424
        %v1705 = vpop.f32.mrb[0].mxu0
        %v1706 = vadd.f32 0.0, %v1705
        %v1707 = vpop.f32.mrb[0].mxu0
        %v1708 = vadd.f32 0.0, %v1707
        %1709 = vdwg.mxu0
        %1711 = vset.pattern.permute.xlu0 0
        %1712 = vperm.xlu0 %1711, %v477
        %v1713 = vpop.permute.xlu0 %1712
        %v1715 = vlaneseq
        %v1716 = vshrl.u32 %v1715, 7
        %v1717 = vsub.s32 0, %v1716
        %v1718 = vrot.slane %v1713, %v1717
        %v1719 = vadd.f32 %v1493, %v1718
        %v1720 = vadd.f32 %v1495, %v1718
        %v1721 = vadd.f32 %v1564, %v1718
        %v1722 = vadd.f32 %v1566, %v1718
        %v1723 = vadd.f32 %v1635, %v1718
        %v1724 = vadd.f32 %v1637, %v1718
        %v1725 = vadd.f32 %v1706, %v1718
        %v1726 = vadd.f32 %v1708, %v1718
        %v1727 = vmax.f32 %v1719, 0.0
        %v1728 = vmax.f32 %v1720, 0.0
        %v1729 = vmax.f32 %v1721, 0.0
        %v1730 = vmax.f32 %v1722, 0.0
        %v1731 = vmax.f32 %v1723, 0.0
        %v1732 = vmax.f32 %v1724, 0.0
        %v1733 = vmax.f32 %v1725, 0.0
        %v1734 = vmax.f32 %v1726, 0.0
        %v1735 = vmax.f32 %v1727, %v1729
        %v1736 = vmax.f32 %v1728, %v1730
        %v1737 = vmax.f32 %v1735, %v1731
        %v1738 = vmax.f32 %v1736, %v1732
        %v1739 = vmax.f32 %v1737, %v1733
        %v1740 = vmax.f32 %v1738, %v1734
        %v1741 = vsub.f32 %v1727, %v1739
        %v1742 = vsub.f32 %v1728, %v1740
        %v1743 = vmul.f32 %v1741, 1.442695
        %v1744 = vpow.pop %v1743
        %v1745 = vmul.f32 %v1742, 1.442695
        %v1746 = vpow.pop %v1745
        %v1747 = vsub.f32 %v1729, %v1739
        %v1748 = vsub.f32 %v1730, %v1740
        %v1749 = vmul.f32 %v1747, 1.442695
        %v1750 = vpow.pop %v1749
        %v1751 = vmul.f32 %v1748, 1.442695
        %v1752 = vpow.pop %v1751
        %v1753 = vsub.f32 %v1731, %v1739
        %v1754 = vsub.f32 %v1732, %v1740
        %v1755 = vmul.f32 %v1753, 1.442695
        %v1756 = vpow.pop %v1755
        %v1757 = vmul.f32 %v1754, 1.442695
        %v1758 = vpow.pop %v1757
        %v1759 = vsub.f32 %v1733, %v1739
        %v1760 = vsub.f32 %v1734, %v1740
        %v1761 = vmul.f32 %v1759, 1.442695
        %v1762 = vpow.pop %v1761
        %v1763 = vmul.f32 %v1760, 1.442695
        %v1764 = vpow.pop %v1763
        %v1765 = vadd.f32 %v1744, %v1750
        %v1766 = vadd.f32 %v1746, %v1752
        %v1767 = vadd.f32 %v1765, %v1756
        %v1768 = vadd.f32 %v1766, %v1758
        %v1769 = vadd.f32 %v1767, %v1762
        %v1770 = vadd.f32 %v1768, %v1764
        %v1771 = vrcp.pop %v1769
        %v1772 = vrcp.pop %v1770
        %v1773 = vmul.f32 %v1769, %v1771
        %v1774 = vmul.f32 %v1770, %v1772
        %v1775 = vsub.f32 2.0, %v1773
        %v1776 = vsub.f32 2.0, %v1774
        %v1777 = vmul.f32 %v1771, %v1775
        %v1778 = vmul.f32 %v1772, %v1776
        %v1779 = vlaneseq
        %v1780 = vshrl.u32 %v1779, 7
        %v1781 = vsub.s32 0, %v1780
        %v1782 = vrot.slane %v1744, %v1781
        %v1783 = vlaneseq
        %v1784 = vshrl.u32 %v1783, 7
        %v1785 = vsub.s32 0, %v1784
        %v1786 = vrot.slane %v1746, %v1785
        %v1787 = vmul.f32 %v1366, %v1782
        %v1788 = vmul.f32 %v1367, %v1786
        %v1789 = vmul.f32 %v1368, %v1782
        %v1790 = vmul.f32 %v1369, %v1786
        %v1791 = vmul.f32 %v1370, %v1782
        %v1792 = vmul.f32 %v1371, %v1786
        %v1793 = vmul.f32 %v1372, %v1782
        %v1794 = vmul.f32 %v1373, %v1786
        %v1795 = vlaneseq
        %v1796 = vshrl.u32 %v1795, 7
        %v1797 = vsub.s32 0, %v1796
        %v1798 = vrot.slane %v1750, %v1797
        %v1799 = vlaneseq
        %v1800 = vshrl.u32 %v1799, 7
        %v1801 = vsub.s32 0, %v1800
        %v1802 = vrot.slane %v1752, %v1801
        %v1803 = vmul.f32 %v1382, %v1798
        %v1804 = vmul.f32 %v1383, %v1802
        %v1805 = vmul.f32 %v1384, %v1798
        %v1806 = vmul.f32 %v1385, %v1802
        %v1807 = vmul.f32 %v1386, %v1798
        %v1808 = vmul.f32 %v1387, %v1802
        %v1809 = vmul.f32 %v1388, %v1798
        %v1810 = vmul.f32 %v1389, %v1802
        %v1811 = vadd.f32 %v1787, %v1803
        %v1812 = vadd.f32 %v1788, %v1804
        %v1813 = vadd.f32 %v1789, %v1805
        %v1814 = vadd.f32 %v1790, %v1806
        %v1815 = vadd.f32 %v1791, %v1807
        %v1816 = vadd.f32 %v1792, %v1808
        %v1817 = vadd.f32 %v1793, %v1809
        %v1818 = vadd.f32 %v1794, %v1810
        %v1819 = vlaneseq
        %v1820 = vshrl.u32 %v1819, 7
        %v1821 = vsub.s32 0, %v1820
        %v1822 = vrot.slane %v1756, %v1821
        %v1823 = vlaneseq
        %v1824 = vshrl.u32 %v1823, 7
        %v1825 = vsub.s32 0, %v1824
        %v1826 = vrot.slane %v1758, %v1825
        %v1827 = vmul.f32 %v1398, %v1822
        %v1828 = vmul.f32 %v1399, %v1826
        %v1829 = vmul.f32 %v1400, %v1822
        %v1830 = vmul.f32 %v1401, %v1826
        %v1831 = vmul.f32 %v1402, %v1822
        %v1832 = vmul.f32 %v1403, %v1826
        %v1833 = vmul.f32 %v1404, %v1822
        %v1834 = vmul.f32 %v1405, %v1826
        %v1835 = vadd.f32 %v1811, %v1827
        %v1836 = vadd.f32 %v1812, %v1828
        %v1837 = vadd.f32 %v1813, %v1829
        %v1838 = vadd.f32 %v1814, %v1830
        %v1839 = vadd.f32 %v1815, %v1831
        %v1840 = vadd.f32 %v1816, %v1832
        %v1841 = vadd.f32 %v1817, %v1833
        %v1842 = vadd.f32 %v1818, %v1834
        %v1843 = vlaneseq
        %v1844 = vshrl.u32 %v1843, 7
        %v1845 = vsub.s32 0, %v1844
        %v1846 = vrot.slane %v1762, %v1845
        %v1847 = vlaneseq
        %v1848 = vshrl.u32 %v1847, 7
        %v1849 = vsub.s32 0, %v1848
        %v1850 = vrot.slane %v1764, %v1849
        %v1851 = vmul.f32 %v1414, %v1846
        %v1852 = vmul.f32 %v1415, %v1850
        %v1853 = vmul.f32 %v1416, %v1846
        %v1854 = vmul.f32 %v1417, %v1850
        %v1855 = vmul.f32 %v1418, %v1846
        %v1856 = vmul.f32 %v1419, %v1850
        %v1857 = vmul.f32 %v1420, %v1846
        %v1858 = vmul.f32 %v1421, %v1850
        %v1859 = vadd.f32 %v1835, %v1851
        %v1860 = vadd.f32 %v1836, %v1852
        %v1861 = vadd.f32 %v1837, %v1853
        %v1862 = vadd.f32 %v1838, %v1854
        %v1863 = vadd.f32 %v1839, %v1855
        %v1864 = vadd.f32 %v1840, %v1856
        %v1865 = vadd.f32 %v1841, %v1857
        %v1866 = vadd.f32 %v1842, %v1858
        %v1867 = vlaneseq
        %v1868 = vshrl.u32 %v1867, 7
        %v1869 = vsub.s32 0, %v1868
        %v1870 = vrot.slane %v1777, %v1869
        %v1871 = vlaneseq
        %v1872 = vshrl.u32 %v1871, 7
        %v1873 = vsub.s32 0, %v1872
        %v1874 = vrot.slane %v1778, %v1873
        %v1875 = vmul.f32 %v1859, %v1870
        %v1876 = vmul.f32 %v1860, %v1874
        %v1877 = vmul.f32 %v1861, %v1870
        %v1878 = vmul.f32 %v1862, %v1874
        %v1879 = vmul.f32 %v1863, %v1870
        %v1880 = vmul.f32 %v1864, %v1874
        %v1881 = vmul.f32 %v1865, %v1870
        %v1882 = vmul.f32 %v1866, %v1874
        %1884 = vset.pattern.permute.xlu0 0
        %1885 = vperm.xlu0 %1884, %v480
        %v1886 = vpop.permute.xlu0 %1885
        %1889 = vset.pattern.permute.xlu0 0
        %1890 = vperm.xlu0 %1889, %v481
        %v1891 = vpop.permute.xlu0 %1890
        %v1894 = vsel %vm1422, %v478, 0
        %v1897 = vsel %vm1422, %v479, 0
        %1899 = vmatprep.subr.mxu0 %v1876
        %1900 = vmatpush1.msra.mxu0 %v1875
        %1901 = vmatprep.subr.mxu0 %v1878
        %1902 = vmatpush1.msra.mxu0 %v1877
        %1903 = vmatprep.subr.mxu0 %v1880
        %1904 = vmatpush1.msra.mxu0 %v1879
        %1905 = vmatprep.subr.mxu0 %v1882
        %1906 = vmatpush1.msra.mxu0 %v1881
        %1907 = vmatprep.subr.mxu0 0.0
        %1908 = vmatpush1.msra.mxu0 0.0
        %1909 = vmatprep.subr.mxu0 0.0
        %1910 = vmatpush1.msra.mxu0 0.0
        %1911 = vmatprep.subr.mxu0 0.0
        %1912 = vmatpush1.msra.mxu0 0.0
        %1913 = vmatprep.subr.mxu0 0.0
        %1914 = vmatpush1.msra.mxu0 0.0
        %1915 = vmatprep.subr.mxu0 0.0
        %1916 = vmatpush1.msra.mxu0 0.0
        %1917 = vmatprep.subr.mxu0 0.0
        %1918 = vmatpush1.msra.mxu0 0.0
        %1919 = vmatprep.subr.mxu0 0.0
        %1920 = vmatpush1.msra.mxu0 0.0
        %1921 = vmatprep.subr.mxu0 0.0
        %1922 = vmatpush1.msra.mxu0 0.0
        %1923 = vmatprep.subr.mxu0 0.0
        %1924 = vmatpush1.msra.mxu0 0.0
        %1925 = vmatprep.subr.mxu0 0.0
        %1926 = vmatpush1.msra.mxu0 0.0
        %1927 = vmatprep.subr.mxu0 0.0
        %1928 = vmatpush1.msra.mxu0 0.0
        %1929 = vmatprep.subr.mxu0 0.0
        %1930 = vmatpush1.msra.mxu0 0.0
        %1931 = vmatprep.subr.mxu0 0.0
        %1932 = vmatpush1.msra.mxu0 0.0
        %1933 = vmatprep.subr.mxu0 0.0
        %1934 = vmatpush1.msra.mxu0 0.0
        %1935 = vmatprep.subr.mxu0 0.0
        %1936 = vmatpush1.msra.mxu0 0.0
        %1937 = vmatprep.subr.mxu0 0.0
        %1938 = vmatpush1.msra.mxu0 0.0
        %1939 = vmatprep.subr.mxu0 0.0
        %1940 = vmatpush1.msra.mxu0 0.0
        %1941 = vmatprep.subr.mxu0 0.0
        %1942 = vmatpush1.msra.mxu0 0.0
        %1943 = vmatprep.subr.mxu0 0.0
        %1944 = vmatpush1.msra.mxu0 0.0
        %1945 = vmatprep.subr.mxu0 0.0
        %1946 = vmatpush1.msra.mxu0 0.0
        %1947 = vmatprep.subr.mxu0 0.0
        %1948 = vmatpush1.msra.mxu0 0.0
        %1949 = vmatprep.subr.mxu0 0.0
        %1950 = vmatpush1.msra.mxu0 0.0
        %1951 = vmatprep.subr.mxu0 0.0
        %1952 = vmatpush1.msra.mxu0 0.0
        %1953 = vmatprep.subr.mxu0 0.0
        %1954 = vmatpush1.msra.mxu0 0.0
        %1955 = vmatprep.subr.mxu0 0.0
        %1956 = vmatpush1.msra.mxu0 0.0
        %1957 = vmatprep.subr.mxu0 0.0
        %1958 = vmatpush1.msra.mxu0 0.0
        %1959 = vmatprep.subr.mxu0 0.0
        %1960 = vmatpush1.msra.mxu0 0.0
        %1961 = vmatprep.subr.mxu0 0.0
        %1962 = vmatpush1.msra.mxu0 0.0
        %1963 = vmatprep.mubr.f32.mxu0 0.0
        %1964 = vmatmul.mubr.f32.gmra.mrb[0].mxu0 %v1894
        %v1965 = vpop.f32.mrb[0].mxu0
        %v1966 = vadd.f32 %v1886, %v1965
        %v1967 = vpop.f32.mrb[0].mxu0
        %v1968 = vadd.f32 %v1886, %v1967
        %1969 = vmatprep.mubr.f32.mxu0 0.0
        %1970 = vmatmul.mubr.f32.gmra.mrb[0].mxu0 %v1897
        %v1971 = vpop.f32.mrb[0].mxu0
        %v1972 = vadd.f32 %v1891, %v1971
        %v1973 = vpop.f32.mrb[0].mxu0
        %v1974 = vadd.f32 %v1891, %v1973
        %1975 = vdwg.mxu0
        %v1976 = vmax.f32 %v1966, 0.0
        %v1977 = vmax.f32 %v1968, 0.0
        %v1978 = vmax.f32 %v1972, 0.0
        %v1979 = vmax.f32 %v1974, 0.0
        %1980 = vst [vmem:[%s459] sm:$0xff] %v1976
        %1981 = vst [vmem:[%s459 + $0x8] sm:$0xff] %v1977
        %1982 = vst [vmem:[%s459 + $0x20] sm:$0xff] %v1978
        %1983 = vst [vmem:[%s459 + $0x28] sm:$0xff] %v1979
        %v1984 = vld [vmem:[%s425 + $0x10] sm:$0xff]
        %v1985 = vld [vmem:[%s425 + $0x18] sm:$0xff]
        %v1986 = vld [vmem:[%s484 + $0x10] sm:$0xff]
        %v1987 = vld [vmem:[%s484 + $0x18] sm:$0xff]
        %v1988 = vld [vmem:[%s487 + $0x10] sm:$0xff]
        %v1989 = vld [vmem:[%s487 + $0x18] sm:$0xff]
        %v1990 = vld [vmem:[%s490 + $0x10] sm:$0xff]
        %v1991 = vld [vmem:[%s490 + $0x18] sm:$0xff]
        %v1992 = vld [vmem:[%s425 + $0x30] sm:$0xf]
        %v1993 = vld [vmem:[%s425 + $0x38] sm:$0xf]
        %v1994 = vld [vmem:[%s484 + $0x30] sm:$0xf]
        %v1995 = vld [vmem:[%s484 + $0x38] sm:$0xf]
        %v1996 = vld [vmem:[%s487 + $0x30] sm:$0xf]
        %v1997 = vld [vmem:[%s487 + $0x38] sm:$0xf]
        %v1998 = vld [vmem:[%s490 + $0x30] sm:$0xf]
        %v1999 = vld [vmem:[%s490 + $0x38] sm:$0xf]
        %v2001 = vsel %vm510, %v1992, 0
        %v2004 = vsel %vm510, %v1993, 0
        %v2007 = vsel %vm510, %v1994, 0
        %v2010 = vsel %vm510, %v1995, 0
        %v2013 = vsel %vm510, %v1996, 0
        %v2016 = vsel %vm510, %v1997, 0
        %v2019 = vsel %vm510, %v1998, 0
        %v2022 = vsel %vm510, %v1999, 0
        %2024 = vmatprep.subr.mxu0 %v2004
        %2025 = vmatpush1.msra.mxu0 %v2001
        %2026 = vmatprep.subr.mxu0 0.0
        %2027 = vmatpush1.msra.mxu0 0.0
        %2028 = vmatprep.subr.mxu0 0.0
        %2029 = vmatpush1.msra.mxu0 0.0
        %2030 = vmatprep.subr.mxu0 0.0
        %2031 = vmatpush1.msra.mxu0 0.0
        %2032 = vmatprep.subr.mxu0 0.0
        %2033 = vmatpush1.msra.mxu0 0.0
        %2034 = vmatprep.subr.mxu0 0.0
        %2035 = vmatpush1.msra.mxu0 0.0
        %2036 = vmatprep.subr.mxu0 0.0
        %2037 = vmatpush1.msra.mxu0 0.0
        %2038 = vmatprep.subr.mxu0 0.0
        %2039 = vmatpush1.msra.mxu0 0.0
        %2040 = vmatprep.subr.mxu0 0.0
        %2041 = vmatpush1.msra.mxu0 0.0
        %2042 = vmatprep.subr.mxu0 0.0
        %2043 = vmatpush1.msra.mxu0 0.0
        %2044 = vmatprep.subr.mxu0 0.0
        %2045 = vmatpush1.msra.mxu0 0.0
        %2046 = vmatprep.subr.mxu0 0.0
        %2047 = vmatpush1.msra.mxu0 0.0
        %2048 = vmatprep.subr.mxu0 0.0
        %2049 = vmatpush1.msra.mxu0 0.0
        %2050 = vmatprep.subr.mxu0 0.0
        %2051 = vmatpush1.msra.mxu0 0.0
        %2052 = vmatprep.subr.mxu0 0.0
        %2053 = vmatpush1.msra.mxu0 0.0
        %2054 = vmatprep.subr.mxu0 0.0
        %2055 = vmatpush1.msra.mxu0 0.0
        %2056 = vmatprep.subr.mxu0 0.0
        %2057 = vmatpush1.msra.mxu0 0.0
        %2058 = vmatprep.subr.mxu0 0.0
        %2059 = vmatpush1.msra.mxu0 0.0
        %2060 = vmatprep.subr.mxu0 0.0
        %2061 = vmatpush1.msra.mxu0 0.0
        %2062 = vmatprep.subr.mxu0 0.0
        %2063 = vmatpush1.msra.mxu0 0.0
        %2064 = vmatprep.subr.mxu0 0.0
        %2065 = vmatpush1.msra.mxu0 0.0
        %2066 = vmatprep.subr.mxu0 0.0
        %2067 = vmatpush1.msra.mxu0 0.0
        %2068 = vmatprep.subr.mxu0 0.0
        %2069 = vmatpush1.msra.mxu0 0.0
        %2070 = vmatprep.subr.mxu0 0.0
        %2071 = vmatpush1.msra.mxu0 0.0
        %2072 = vmatprep.subr.mxu0 0.0
        %2073 = vmatpush1.msra.mxu0 0.0
        %2074 = vmatprep.subr.mxu0 0.0
        %2075 = vmatpush1.msra.mxu0 0.0
        %2076 = vmatprep.subr.mxu0 0.0
        %2077 = vmatpush1.msra.mxu0 0.0
        %2078 = vmatprep.subr.mxu0 0.0
        %2079 = vmatpush1.msra.mxu0 0.0
        %2080 = vmatprep.subr.mxu0 0.0
        %2081 = vmatpush1.msra.mxu0 0.0
        %2082 = vmatprep.subr.mxu0 0.0
        %2083 = vmatpush1.msra.mxu0 0.0
        %2084 = vmatprep.subr.mxu0 0.0
        %2085 = vmatpush1.msra.mxu0 0.0
        %2086 = vmatprep.subr.mxu0 0.0
        %2087 = vmatpush1.msra.mxu0 0.0
        %2088 = vmatprep.mubr.f32.mxu0 0.0
        %2089 = vmatmul.mubr.f32.gmra.mrb[0].mxu0 %v508
        %v2090 = vpop.f32.mrb[0].mxu0
        %v2091 = vadd.f32 %v504, %v2090
        %v2092 = vpop.f32.mrb[0].mxu0
        %v2093 = vadd.f32 %v504, %v2092
        %2094 = vdwg.mxu0
        %2095 = vmatprep.subr.mxu0 %v2010
        %2096 = vmatpush1.msra.mxu0 %v2007
        %2097 = vmatprep.subr.mxu0 0.0
        %2098 = vmatpush1.msra.mxu0 0.0
        %2099 = vmatprep.subr.mxu0 0.0
        %2100 = vmatpush1.msra.mxu0 0.0
        %2101 = vmatprep.subr.mxu0 0.0
        %2102 = vmatpush1.msra.mxu0 0.0
        %2103 = vmatprep.subr.mxu0 0.0
        %2104 = vmatpush1.msra.mxu0 0.0
        %2105 = vmatprep.subr.mxu0 0.0
        %2106 = vmatpush1.msra.mxu0 0.0
        %2107 = vmatprep.subr.mxu0 0.0
        %2108 = vmatpush1.msra.mxu0 0.0
        %2109 = vmatprep.subr.mxu0 0.0
        %2110 = vmatpush1.msra.mxu0 0.0
        %2111 = vmatprep.subr.mxu0 0.0
        %2112 = vmatpush1.msra.mxu0 0.0
        %2113 = vmatprep.subr.mxu0 0.0
        %2114 = vmatpush1.msra.mxu0 0.0
        %2115 = vmatprep.subr.mxu0 0.0
        %2116 = vmatpush1.msra.mxu0 0.0
        %2117 = vmatprep.subr.mxu0 0.0
        %2118 = vmatpush1.msra.mxu0 0.0
        %2119 = vmatprep.subr.mxu0 0.0
        %2120 = vmatpush1.msra.mxu0 0.0
        %2121 = vmatprep.subr.mxu0 0.0
        %2122 = vmatpush1.msra.mxu0 0.0
        %2123 = vmatprep.subr.mxu0 0.0
        %2124 = vmatpush1.msra.mxu0 0.0
        %2125 = vmatprep.subr.mxu0 0.0
        %2126 = vmatpush1.msra.mxu0 0.0
        %2127 = vmatprep.subr.mxu0 0.0
        %2128 = vmatpush1.msra.mxu0 0.0
        %2129 = vmatprep.subr.mxu0 0.0
        %2130 = vmatpush1.msra.mxu0 0.0
        %2131 = vmatprep.subr.mxu0 0.0
        %2132 = vmatpush1.msra.mxu0 0.0
        %2133 = vmatprep.subr.mxu0 0.0
        %2134 = vmatpush1.msra.mxu0 0.0
        %2135 = vmatprep.subr.mxu0 0.0
        %2136 = vmatpush1.msra.mxu0 0.0
        %2137 = vmatprep.subr.mxu0 0.0
        %2138 = vmatpush1.msra.mxu0 0.0
        %2139 = vmatprep.subr.mxu0 0.0
        %2140 = vmatpush1.msra.mxu0 0.0
        %2141 = vmatprep.subr.mxu0 0.0
        %2142 = vmatpush1.msra.mxu0 0.0
        %2143 = vmatprep.subr.mxu0 0.0
        %2144 = vmatpush1.msra.mxu0 0.0
        %2145 = vmatprep.subr.mxu0 0.0
        %2146 = vmatpush1.msra.mxu0 0.0
        %2147 = vmatprep.subr.mxu0 0.0
        %2148 = vmatpush1.msra.mxu0 0.0
        %2149 = vmatprep.subr.mxu0 0.0
        %2150 = vmatpush1.msra.mxu0 0.0
        %2151 = vmatprep.subr.mxu0 0.0
        %2152 = vmatpush1.msra.mxu0 0.0
        %2153 = vmatprep.subr.mxu0 0.0
        %2154 = vmatpush1.msra.mxu0 0.0
        %2155 = vmatprep.subr.mxu0 0.0
        %2156 = vmatpush1.msra.mxu0 0.0
        %2157 = vmatprep.subr.mxu0 0.0
        %2158 = vmatpush1.msra.mxu0 0.0
        %2159 = vmatprep.mubr.f32.mxu0 0.0
        %2160 = vmatmul.mubr.f32.gmra.mrb[0].mxu0 %v508
        %v2161 = vpop.f32.mrb[0].mxu0
        %v2162 = vadd.f32 %v504, %v2161
        %v2163 = vpop.f32.mrb[0].mxu0
        %v2164 = vadd.f32 %v504, %v2163
        %2165 = vdwg.mxu0
        %2166 = vmatprep.subr.mxu0 %v2016
        %2167 = vmatpush1.msra.mxu0 %v2013
        %2168 = vmatprep.subr.mxu0 0.0
        %2169 = vmatpush1.msra.mxu0 0.0
        %2170 = vmatprep.subr.mxu0 0.0
        %2171 = vmatpush1.msra.mxu0 0.0
        %2172 = vmatprep.subr.mxu0 0.0
        %2173 = vmatpush1.msra.mxu0 0.0
        %2174 = vmatprep.subr.mxu0 0.0
        %2175 = vmatpush1.msra.mxu0 0.0
        %2176 = vmatprep.subr.mxu0 0.0
        %2177 = vmatpush1.msra.mxu0 0.0
        %2178 = vmatprep.subr.mxu0 0.0
        %2179 = vmatpush1.msra.mxu0 0.0
        %2180 = vmatprep.subr.mxu0 0.0
        %2181 = vmatpush1.msra.mxu0 0.0
        %2182 = vmatprep.subr.mxu0 0.0
        %2183 = vmatpush1.msra.mxu0 0.0
        %2184 = vmatprep.subr.mxu0 0.0
        %2185 = vmatpush1.msra.mxu0 0.0
        %2186 = vmatprep.subr.mxu0 0.0
        %2187 = vmatpush1.msra.mxu0 0.0
        %2188 = vmatprep.subr.mxu0 0.0
        %2189 = vmatpush1.msra.mxu0 0.0
        %2190 = vmatprep.subr.mxu0 0.0
        %2191 = vmatpush1.msra.mxu0 0.0
        %2192 = vmatprep.subr.mxu0 0.0
        %2193 = vmatpush1.msra.mxu0 0.0
        %2194 = vmatprep.subr.mxu0 0.0
        %2195 = vmatpush1.msra.mxu0 0.0
        %2196 = vmatprep.subr.mxu0 0.0
        %2197 = vmatpush1.msra.mxu0 0.0
        %2198 = vmatprep.subr.mxu0 0.0
        %2199 = vmatpush1.msra.mxu0 0.0
        %2200 = vmatprep.subr.mxu0 0.0
        %2201 = vmatpush1.msra.mxu0 0.0
        %2202 = vmatprep.subr.mxu0 0.0
        %2203 = vmatpush1.msra.mxu0 0.0
        %2204 = vmatprep.subr.mxu0 0.0
        %2205 = vmatpush1.msra.mxu0 0.0
        %2206 = vmatprep.subr.mxu0 0.0
        %2207 = vmatpush1.msra.mxu0 0.0
        %2208 = vmatprep.subr.mxu0 0.0
        %2209 = vmatpush1.msra.mxu0 0.0
        %2210 = vmatprep.subr.mxu0 0.0
        %2211 = vmatpush1.msra.mxu0 0.0
        %2212 = vmatprep.subr.mxu0 0.0
        %2213 = vmatpush1.msra.mxu0 0.0
        %2214 = vmatprep.subr.mxu0 0.0
        %2215 = vmatpush1.msra.mxu0 0.0
        %2216 = vmatprep.subr.mxu0 0.0
        %2217 = vmatpush1.msra.mxu0 0.0
        %2218 = vmatprep.subr.mxu0 0.0
        %2219 = vmatpush1.msra.mxu0 0.0
        %2220 = vmatprep.subr.mxu0 0.0
        %2221 = vmatpush1.msra.mxu0 0.0
        %2222 = vmatprep.subr.mxu0 0.0
        %2223 = vmatpush1.msra.mxu0 0.0
        %2224 = vmatprep.subr.mxu0 0.0
        %2225 = vmatpush1.msra.mxu0 0.0
        %2226 = vmatprep.subr.mxu0 0.0
        %2227 = vmatpush1.msra.mxu0 0.0
        %2228 = vmatprep.subr.mxu0 0.0
        %2229 = vmatpush1.msra.mxu0 0.0
        %2230 = vmatprep.mubr.f32.mxu0 0.0
        %2231 = vmatmul.mubr.f32.gmra.mrb[0].mxu0 %v508
        %v2232 = vpop.f32.mrb[0].mxu0
        %v2233 = vadd.f32 %v504, %v2232
        %v2234 = vpop.f32.mrb[0].mxu0
        %v2235 = vadd.f32 %v504, %v2234
        %2236 = vdwg.mxu0
        %2237 = vmatprep.subr.mxu0 %v2022
        %2238 = vmatpush1.msra.mxu0 %v2019
        %2239 = vmatprep.subr.mxu0 0.0
        %2240 = vmatpush1.msra.mxu0 0.0
        %2241 = vmatprep.subr.mxu0 0.0
        %2242 = vmatpush1.msra.mxu0 0.0
        %2243 = vmatprep.subr.mxu0 0.0
        %2244 = vmatpush1.msra.mxu0 0.0
        %2245 = vmatprep.subr.mxu0 0.0
        %2246 = vmatpush1.msra.mxu0 0.0
        %2247 = vmatprep.subr.mxu0 0.0
        %2248 = vmatpush1.msra.mxu0 0.0
        %2249 = vmatprep.subr.mxu0 0.0
        %2250 = vmatpush1.msra.mxu0 0.0
        %2251 = vmatprep.subr.mxu0 0.0
        %2252 = vmatpush1.msra.mxu0 0.0
        %2253 = vmatprep.subr.mxu0 0.0
        %2254 = vmatpush1.msra.mxu0 0.0
        %2255 = vmatprep.subr.mxu0 0.0
        %2256 = vmatpush1.msra.mxu0 0.0
        %2257 = vmatprep.subr.mxu0 0.0
        %2258 = vmatpush1.msra.mxu0 0.0
        %2259 = vmatprep.subr.mxu0 0.0
        %2260 = vmatpush1.msra.mxu0 0.0
        %2261 = vmatprep.subr.mxu0 0.0
        %2262 = vmatpush1.msra.mxu0 0.0
        %2263 = vmatprep.subr.mxu0 0.0
        %2264 = vmatpush1.msra.mxu0 0.0
        %2265 = vmatprep.subr.mxu0 0.0
        %2266 = vmatpush1.msra.mxu0 0.0
        %2267 = vmatprep.subr.mxu0 0.0
        %2268 = vmatpush1.msra.mxu0 0.0
        %2269 = vmatprep.subr.mxu0 0.0
        %2270 = vmatpush1.msra.mxu0 0.0
        %2271 = vmatprep.subr.mxu0 0.0
        %2272 = vmatpush1.msra.mxu0 0.0
        %2273 = vmatprep.subr.mxu0 0.0
        %2274 = vmatpush1.msra.mxu0 0.0
        %2275 = vmatprep.subr.mxu0 0.0
        %2276 = vmatpush1.msra.mxu0 0.0
        %2277 = vmatprep.subr.mxu0 0.0
        %2278 = vmatpush1.msra.mxu0 0.0
        %2279 = vmatprep.subr.mxu0 0.0
        %2280 = vmatpush1.msra.mxu0 0.0
        %2281 = vmatprep.subr.mxu0 0.0
        %2282 = vmatpush1.msra.mxu0 0.0
        %2283 = vmatprep.subr.mxu0 0.0
        %2284 = vmatpush1.msra.mxu0 0.0
        %2285 = vmatprep.subr.mxu0 0.0
        %2286 = vmatpush1.msra.mxu0 0.0
        %2287 = vmatprep.subr.mxu0 0.0
        %2288 = vmatpush1.msra.mxu0 0.0
        %2289 = vmatprep.subr.mxu0 0.0
        %2290 = vmatpush1.msra.mxu0 0.0
        %2291 = vmatprep.subr.mxu0 0.0
        %2292 = vmatpush1.msra.mxu0 0.0
        %2293 = vmatprep.subr.mxu0 0.0
        %2294 = vmatpush1.msra.mxu0 0.0
        %2295 = vmatprep.subr.mxu0 0.0
        %2296 = vmatpush1.msra.mxu0 0.0
        %2297 = vmatprep.subr.mxu0 0.0
        %2298 = vmatpush1.msra.mxu0 0.0
        %2299 = vmatprep.subr.mxu0 0.0
        %2300 = vmatpush1.msra.mxu0 0.0
        %2301 = vmatprep.mubr.f32.mxu0 0.0
        %2302 = vmatmul.mubr.f32.gmra.mrb[0].mxu0 %v508
        %v2303 = vpop.f32.mrb[0].mxu0
        %v2304 = vadd.f32 %v504, %v2303
        %v2305 = vpop.f32.mrb[0].mxu0
        %v2306 = vadd.f32 %v504, %v2305
        %2307 = vdwg.mxu0
        %v2308 = vmax.f32 %v2091, 0.0
        %v2309 = vmax.f32 %v2093, 0.0
        %v2310 = vmax.f32 %v2162, 0.0
        %v2311 = vmax.f32 %v2164, 0.0
        %v2312 = vmax.f32 %v2233, 0.0
        %v2313 = vmax.f32 %v2235, 0.0
        %v2314 = vmax.f32 %v2304, 0.0
        %v2315 = vmax.f32 %v2306, 0.0
        %v2316 = vadd.f32 %v1984, %v2308
        %v2317 = vadd.f32 %v1985, %v2309
        %v2318 = vadd.f32 %v1986, %v2310
        %v2319 = vadd.f32 %v1987, %v2311
        %v2320 = vadd.f32 %v1988, %v2312
        %v2321 = vadd.f32 %v1989, %v2313
        %v2322 = vadd.f32 %v1990, %v2314
        %v2323 = vadd.f32 %v1991, %v2315
        %v2324 = vadd.f32 %v2316, %v2318
        %v2325 = vadd.f32 %v2317, %v2319
        %v2326 = vadd.f32 %v2324, %v2320
        %v2327 = vadd.f32 %v2325, %v2321
        %v2328 = vadd.f32 %v2326, %v2322
        %v2329 = vadd.f32 %v2327, %v2323
        %v2330 = vmul.f32 %v2328, 0.25
        %v2331 = vmul.f32 %v2329, 0.25
        %v2332 = vsub.f32 %v2316, %v2330
        %v2333 = vsub.f32 %v2317, %v2331
        %v2334 = vmul.f32 %v2332, %v2332
        %v2335 = vmul.f32 %v2333, %v2333
        %v2336 = vsub.f32 %v2318, %v2330
        %v2337 = vsub.f32 %v2319, %v2331
        %v2338 = vmul.f32 %v2336, %v2336
        %v2339 = vmul.f32 %v2337, %v2337
        %v2340 = vadd.f32 %v2334, %v2338
        %v2341 = vadd.f32 %v2335, %v2339
        %v2342 = vsub.f32 %v2320, %v2330
        %v2343 = vsub.f32 %v2321, %v2331
        %v2344 = vmul.f32 %v2342, %v2342
        %v2345 = vmul.f32 %v2343, %v2343
        %v2346 = vadd.f32 %v2340, %v2344
        %v2347 = vadd.f32 %v2341, %v2345
        %v2348 = vsub.f32 %v2322, %v2330
        %v2349 = vsub.f32 %v2323, %v2331
        %v2350 = vmul.f32 %v2348, %v2348
        %v2351 = vmul.f32 %v2349, %v2349
        %v2352 = vadd.f32 %v2346, %v2350
        %v2353 = vadd.f32 %v2347, %v2351
        %v2354 = vmul.f32 %v2352, 0.33333334
        %v2355 = vmul.f32 %v2353, 0.33333334
        %2356 = vmatprep.subr.mxu0 %v2355
        %2357 = vmatpush1.msra.mxu0 %v2354
        %2358 = vmatprep.subr.mxu0 %v2331
        %2359 = vmatpush1.msra.mxu0 %v2330
        %2360 = vmatprep.subr.mxu0 0.0
        %2361 = vmatpush1.msra.mxu0 0.0
        %2362 = vmatprep.subr.mxu0 0.0
        %2363 = vmatpush1.msra.mxu0 0.0
        %2364 = vmatprep.subr.mxu0 0.0
        %2365 = vmatpush1.msra.mxu0 0.0
        %2366 = vmatprep.subr.mxu0 0.0
        %2367 = vmatpush1.msra.mxu0 0.0
        %2368 = vmatprep.subr.mxu0 0.0
        %2369 = vmatpush1.msra.mxu0 0.0
        %2370 = vmatprep.subr.mxu0 0.0
        %2371 = vmatpush1.msra.mxu0 0.0
        %2372 = vmatprep.subr.mxu0 0.0
        %2373 = vmatpush1.msra.mxu0 0.0
        %2374 = vmatprep.subr.mxu0 0.0
        %2375 = vmatpush1.msra.mxu0 0.0
        %2376 = vmatprep.subr.mxu0 0.0
        %2377 = vmatpush1.msra.mxu0 0.0
        %2378 = vmatprep.subr.mxu0 0.0
        %2379 = vmatpush1.msra.mxu0 0.0
        %2380 = vmatprep.subr.mxu0 0.0
        %2381 = vmatpush1.msra.mxu0 0.0
        %2382 = vmatprep.subr.mxu0 0.0
        %2383 = vmatpush1.msra.mxu0 0.0
        %2384 = vmatprep.subr.mxu0 0.0
        %2385 = vmatpush1.msra.mxu0 0.0
        %2386 = vmatprep.subr.mxu0 0.0
        %2387 = vmatpush1.msra.mxu0 0.0
        %2388 = vmatprep.subr.mxu0 0.0
        %2389 = vmatpush1.msra.mxu0 0.0
        %2390 = vmatprep.subr.mxu0 0.0
        %2391 = vmatpush1.msra.mxu0 0.0
        %2392 = vmatprep.subr.mxu0 0.0
        %2393 = vmatpush1.msra.mxu0 0.0
        %2394 = vmatprep.subr.mxu0 0.0
        %2395 = vmatpush1.msra.mxu0 0.0
        %2396 = vmatprep.subr.mxu0 0.0
        %2397 = vmatpush1.msra.mxu0 0.0
        %2398 = vmatprep.subr.mxu0 0.0
        %2399 = vmatpush1.msra.mxu0 0.0
        %2400 = vmatprep.subr.mxu0 0.0
        %2401 = vmatpush1.msra.mxu0 0.0
        %2402 = vmatprep.subr.mxu0 0.0
        %2403 = vmatpush1.msra.mxu0 0.0
        %2404 = vmatprep.subr.mxu0 0.0
        %2405 = vmatpush1.msra.mxu0 0.0
        %2406 = vmatprep.subr.mxu0 0.0
        %2407 = vmatpush1.msra.mxu0 0.0
        %2408 = vmatprep.subr.mxu0 0.0
        %2409 = vmatpush1.msra.mxu0 0.0
        %2410 = vmatprep.subr.mxu0 0.0
        %2411 = vmatpush1.msra.mxu0 0.0
        %2412 = vmatprep.subr.mxu0 0.0
        %2413 = vmatpush1.msra.mxu0 0.0
        %2414 = vmatprep.subr.mxu0 0.0
        %2415 = vmatpush1.msra.mxu0 0.0
        %2416 = vmatprep.subr.mxu0 0.0
        %2417 = vmatpush1.msra.mxu0 0.0
        %2418 = vmatprep.subr.mxu0 0.0
        %2419 = vmatpush1.msra.mxu0 0.0
        %2420 = vmatprep.mubr.f32.mxu0 0.0
        %2421 = vmatmul.mubr.f32.gmra.mrb[0].mxu0 %v889
        %v2422 = vpop.f32.mrb[0].mxu0
        %v2423 = vadd.f32 %v870, %v2422
        %v2424 = vpop.f32.mrb[0].mxu0
        %v2425 = vadd.f32 %v870, %v2424
        %2426 = vmatprep.mubr.f32.mxu0 0.0
        %2427 = vmatmul.mubr.f32.gmra.mrb[0].mxu0 %v892
        %v2428 = vpop.f32.mrb[0].mxu0
        %v2429 = vadd.f32 %v875, %v2428
        %v2430 = vpop.f32.mrb[0].mxu0
        %v2431 = vadd.f32 %v875, %v2430
        %2432 = vmatprep.mubr.f32.mxu0 0.0
        %2433 = vmatmul.mubr.f32.gmra.mrb[0].mxu0 %v895
        %v2434 = vpop.f32.mrb[0].mxu0
        %v2435 = vadd.f32 %v880, %v2434
        %v2436 = vpop.f32.mrb[0].mxu0
        %v2437 = vadd.f32 %v880, %v2436
        %2438 = vmatprep.mubr.f32.mxu0 0.0
        %2439 = vmatmul.mubr.f32.gmra.mrb[0].mxu0 %v898
        %v2440 = vpop.f32.mrb[0].mxu0
        %v2441 = vadd.f32 %v885, %v2440
        %v2442 = vpop.f32.mrb[0].mxu0
        %v2443 = vadd.f32 %v885, %v2442
        %2444 = vdwg.mxu0
        %2445 = vmatprep.subr.mxu0 %v2317
        %2446 = vmatpush1.msra.mxu0 %v2316
        %2447 = vmatprep.subr.mxu0 0.0
        %2448 = vmatpush1.msra.mxu0 0.0
        %2449 = vmatprep.subr.mxu0 0.0
        %2450 = vmatpush1.msra.mxu0 0.0
        %2451 = vmatprep.subr.mxu0 0.0
        %2452 = vmatpush1.msra.mxu0 0.0
        %2453 = vmatprep.subr.mxu0 0.0
        %2454 = vmatpush1.msra.mxu0 0.0
        %2455 = vmatprep.subr.mxu0 0.0
        %2456 = vmatpush1.msra.mxu0 0.0
        %2457 = vmatprep.subr.mxu0 0.0
        %2458 = vmatpush1.msra.mxu0 0.0
        %2459 = vmatprep.subr.mxu0 0.0
        %2460 = vmatpush1.msra.mxu0 0.0
        %2461 = vmatprep.subr.mxu0 0.0
        %2462 = vmatpush1.msra.mxu0 0.0
        %2463 = vmatprep.subr.mxu0 0.0
        %2464 = vmatpush1.msra.mxu0 0.0
        %2465 = vmatprep.subr.mxu0 0.0
        %2466 = vmatpush1.msra.mxu0 0.0
        %2467 = vmatprep.subr.mxu0 0.0
        %2468 = vmatpush1.msra.mxu0 0.0
        %2469 = vmatprep.subr.mxu0 0.0
        %2470 = vmatpush1.msra.mxu0 0.0
        %2471 = vmatprep.subr.mxu0 0.0
        %2472 = vmatpush1.msra.mxu0 0.0
        %2473 = vmatprep.subr.mxu0 0.0
        %2474 = vmatpush1.msra.mxu0 0.0
        %2475 = vmatprep.subr.mxu0 0.0
        %2476 = vmatpush1.msra.mxu0 0.0
        %2477 = vmatprep.subr.mxu0 0.0
        %2478 = vmatpush1.msra.mxu0 0.0
        %2479 = vmatprep.subr.mxu0 0.0
        %2480 = vmatpush1.msra.mxu0 0.0
        %2481 = vmatprep.subr.mxu0 0.0
        %2482 = vmatpush1.msra.mxu0 0.0
        %2483 = vmatprep.subr.mxu0 0.0
        %2484 = vmatpush1.msra.mxu0 0.0
        %2485 = vmatprep.subr.mxu0 0.0
        %2486 = vmatpush1.msra.mxu0 0.0
        %2487 = vmatprep.subr.mxu0 0.0
        %2488 = vmatpush1.msra.mxu0 0.0
        %2489 = vmatprep.subr.mxu0 0.0
        %2490 = vmatpush1.msra.mxu0 0.0
        %2491 = vmatprep.subr.mxu0 0.0
        %2492 = vmatpush1.msra.mxu0 0.0
        %2493 = vmatprep.subr.mxu0 0.0
        %2494 = vmatpush1.msra.mxu0 0.0
        %2495 = vmatprep.subr.mxu0 0.0
        %2496 = vmatpush1.msra.mxu0 0.0
        %2497 = vmatprep.subr.mxu0 0.0
        %2498 = vmatpush1.msra.mxu0 0.0
        %2499 = vmatprep.subr.mxu0 0.0
        %2500 = vmatpush1.msra.mxu0 0.0
        %2501 = vmatprep.subr.mxu0 0.0
        %2502 = vmatpush1.msra.mxu0 0.0
        %2503 = vmatprep.subr.mxu0 0.0
        %2504 = vmatpush1.msra.mxu0 0.0
        %2505 = vmatprep.subr.mxu0 0.0
        %2506 = vmatpush1.msra.mxu0 0.0
        %2507 = vmatprep.subr.mxu0 0.0
        %2508 = vmatpush1.msra.mxu0 0.0
        %2509 = vmatprep.mubr.f32.mxu0 0.0
        %2510 = vmatmul.mubr.f32.gmra.mrb[0].mxu0 %v991
        %v2511 = vpop.f32.mrb[0].mxu0
        %v2512 = vadd.f32 0.0, %v2511
        %v2513 = vpop.f32.mrb[0].mxu0
        %v2514 = vadd.f32 0.0, %v2513
        %2515 = vmatprep.mubr.f32.mxu0 0.0
        %2516 = vmatmul.mubr.f32.gmra.mrb[0].mxu0 %v994
        %v2517 = vpop.f32.mrb[0].mxu0
        %v2518 = vadd.f32 0.0, %v2517
        %v2519 = vpop.f32.mrb[0].mxu0
        %v2520 = vadd.f32 0.0, %v2519
        %2521 = vmatprep.mubr.f32.mxu0 0.0
        %2522 = vmatmul.mubr.f32.gmra.mrb[0].mxu0 %v997
        %v2523 = vpop.f32.mrb[0].mxu0
        %v2524 = vadd.f32 0.0, %v2523
        %v2525 = vpop.f32.mrb[0].mxu0
        %v2526 = vadd.f32 0.0, %v2525
        %2527 = vmatprep.mubr.f32.mxu0 0.0
        %2528 = vmatmul.mubr.f32.gmra.mrb[0].mxu0 %v1000
        %v2529 = vpop.f32.mrb[0].mxu0
        %v2530 = vadd.f32 0.0, %v2529
        %v2531 = vpop.f32.mrb[0].mxu0
        %v2532 = vadd.f32 0.0, %v2531
        %2533 = vdwg.mxu0
        %2534 = vmatprep.subr.mxu0 %v2319
        %2535 = vmatpush1.msra.mxu0 %v2318
        %2536 = vmatprep.subr.mxu0 0.0
        %2537 = vmatpush1.msra.mxu0 0.0
        %2538 = vmatprep.subr.mxu0 0.0
        %2539 = vmatpush1.msra.mxu0 0.0
        %2540 = vmatprep.subr.mxu0 0.0
        %2541 = vmatpush1.msra.mxu0 0.0
        %2542 = vmatprep.subr.mxu0 0.0
        %2543 = vmatpush1.msra.mxu0 0.0
        %2544 = vmatprep.subr.mxu0 0.0
        %2545 = vmatpush1.msra.mxu0 0.0
        %2546 = vmatprep.subr.mxu0 0.0
        %2547 = vmatpush1.msra.mxu0 0.0
        %2548 = vmatprep.subr.mxu0 0.0
        %2549 = vmatpush1.msra.mxu0 0.0
        %2550 = vmatprep.subr.mxu0 0.0
        %2551 = vmatpush1.msra.mxu0 0.0
        %2552 = vmatprep.subr.mxu0 0.0
        %2553 = vmatpush1.msra.mxu0 0.0
        %2554 = vmatprep.subr.mxu0 0.0
        %2555 = vmatpush1.msra.mxu0 0.0
        %2556 = vmatprep.subr.mxu0 0.0
        %2557 = vmatpush1.msra.mxu0 0.0
        %2558 = vmatprep.subr.mxu0 0.0
        %2559 = vmatpush1.msra.mxu0 0.0
        %2560 = vmatprep.subr.mxu0 0.0
        %2561 = vmatpush1.msra.mxu0 0.0
        %2562 = vmatprep.subr.mxu0 0.0
        %2563 = vmatpush1.msra.mxu0 0.0
        %2564 = vmatprep.subr.mxu0 0.0
        %2565 = vmatpush1.msra.mxu0 0.0
        %2566 = vmatprep.subr.mxu0 0.0
        %2567 = vmatpush1.msra.mxu0 0.0
        %2568 = vmatprep.subr.mxu0 0.0
        %2569 = vmatpush1.msra.mxu0 0.0
        %2570 = vmatprep.subr.mxu0 0.0
        %2571 = vmatpush1.msra.mxu0 0.0
        %2572 = vmatprep.subr.mxu0 0.0
        %2573 = vmatpush1.msra.mxu0 0.0
        %2574 = vmatprep.subr.mxu0 0.0
        %2575 = vmatpush1.msra.mxu0 0.0
        %2576 = vmatprep.subr.mxu0 0.0
        %2577 = vmatpush1.msra.mxu0 0.0
        %2578 = vmatprep.subr.mxu0 0.0
        %2579 = vmatpush1.msra.mxu0 0.0
        %2580 = vmatprep.subr.mxu0 0.0
        %2581 = vmatpush1.msra.mxu0 0.0
        %2582 = vmatprep.subr.mxu0 0.0
        %2583 = vmatpush1.msra.mxu0 0.0
        %2584 = vmatprep.subr.mxu0 0.0
        %2585 = vmatpush1.msra.mxu0 0.0
        %2586 = vmatprep.subr.mxu0 0.0
        %2587 = vmatpush1.msra.mxu0 0.0
        %2588 = vmatprep.subr.mxu0 0.0
        %2589 = vmatpush1.msra.mxu0 0.0
        %2590 = vmatprep.subr.mxu0 0.0
        %2591 = vmatpush1.msra.mxu0 0.0
        %2592 = vmatprep.subr.mxu0 0.0
        %2593 = vmatpush1.msra.mxu0 0.0
        %2594 = vmatprep.subr.mxu0 0.0
        %2595 = vmatpush1.msra.mxu0 0.0
        %2596 = vmatprep.subr.mxu0 0.0
        %2597 = vmatpush1.msra.mxu0 0.0
        %2598 = vmatprep.mubr.f32.mxu0 0.0
        %2599 = vmatmul.mubr.f32.gmra.mrb[0].mxu0 %v991
        %v2600 = vpop.f32.mrb[0].mxu0
        %v2601 = vadd.f32 0.0, %v2600
        %v2602 = vpop.f32.mrb[0].mxu0
        %v2603 = vadd.f32 0.0, %v2602
        %2604 = vmatprep.mubr.f32.mxu0 0.0
        %2605 = vmatmul.mubr.f32.gmra.mrb[0].mxu0 %v994
        %v2606 = vpop.f32.mrb[0].mxu0
        %v2607 = vadd.f32 0.0, %v2606
        %v2608 = vpop.f32.mrb[0].mxu0
        %v2609 = vadd.f32 0.0, %v2608
        %2610 = vmatprep.mubr.f32.mxu0 0.0
        %2611 = vmatmul.mubr.f32.gmra.mrb[0].mxu0 %v997
        %v2612 = vpop.f32.mrb[0].mxu0
        %v2613 = vadd.f32 0.0, %v2612
        %v2614 = vpop.f32.mrb[0].mxu0
        %v2615 = vadd.f32 0.0, %v2614
        %2616 = vmatprep.mubr.f32.mxu0 0.0
        %2617 = vmatmul.mubr.f32.gmra.mrb[0].mxu0 %v1000
        %v2618 = vpop.f32.mrb[0].mxu0
        %v2619 = vadd.f32 0.0, %v2618
        %v2620 = vpop.f32.mrb[0].mxu0
        %v2621 = vadd.f32 0.0, %v2620
        %2622 = vdwg.mxu0
        %2623 = vmatprep.subr.mxu0 %v2321
        %2624 = vmatpush1.msra.mxu0 %v2320
        %2625 = vmatprep.subr.mxu0 0.0
        %2626 = vmatpush1.msra.mxu0 0.0
        %2627 = vmatprep.subr.mxu0 0.0
        %2628 = vmatpush1.msra.mxu0 0.0
        %2629 = vmatprep.subr.mxu0 0.0
        %2630 = vmatpush1.msra.mxu0 0.0
        %2631 = vmatprep.subr.mxu0 0.0
        %2632 = vmatpush1.msra.mxu0 0.0
        %2633 = vmatprep.subr.mxu0 0.0
        %2634 = vmatpush1.msra.mxu0 0.0
        %2635 = vmatprep.subr.mxu0 0.0
        %2636 = vmatpush1.msra.mxu0 0.0
        %2637 = vmatprep.subr.mxu0 0.0
        %2638 = vmatpush1.msra.mxu0 0.0
        %2639 = vmatprep.subr.mxu0 0.0
        %2640 = vmatpush1.msra.mxu0 0.0
        %2641 = vmatprep.subr.mxu0 0.0
        %2642 = vmatpush1.msra.mxu0 0.0
        %2643 = vmatprep.subr.mxu0 0.0
        %2644 = vmatpush1.msra.mxu0 0.0
        %2645 = vmatprep.subr.mxu0 0.0
        %2646 = vmatpush1.msra.mxu0 0.0
        %2647 = vmatprep.subr.mxu0 0.0
        %2648 = vmatpush1.msra.mxu0 0.0
        %2649 = vmatprep.subr.mxu0 0.0
        %2650 = vmatpush1.msra.mxu0 0.0
        %2651 = vmatprep.subr.mxu0 0.0
        %2652 = vmatpush1.msra.mxu0 0.0
        %2653 = vmatprep.subr.mxu0 0.0
        %2654 = vmatpush1.msra.mxu0 0.0
        %2655 = vmatprep.subr.mxu0 0.0
        %2656 = vmatpush1.msra.mxu0 0.0
        %2657 = vmatprep.subr.mxu0 0.0
        %2658 = vmatpush1.msra.mxu0 0.0
        %2659 = vmatprep.subr.mxu0 0.0
        %2660 = vmatpush1.msra.mxu0 0.0
        %2661 = vmatprep.subr.mxu0 0.0
        %2662 = vmatpush1.msra.mxu0 0.0
        %2663 = vmatprep.subr.mxu0 0.0
        %2664 = vmatpush1.msra.mxu0 0.0
        %2665 = vmatprep.subr.mxu0 0.0
        %2666 = vmatpush1.msra.mxu0 0.0
        %2667 = vmatprep.subr.mxu0 0.0
        %2668 = vmatpush1.msra.mxu0 0.0
        %2669 = vmatprep.subr.mxu0 0.0
        %2670 = vmatpush1.msra.mxu0 0.0
        %2671 = vmatprep.subr.mxu0 0.0
        %2672 = vmatpush1.msra.mxu0 0.0
        %2673 = vmatprep.subr.mxu0 0.0
        %2674 = vmatpush1.msra.mxu0 0.0
        %2675 = vmatprep.subr.mxu0 0.0
        %2676 = vmatpush1.msra.mxu0 0.0
        %2677 = vmatprep.subr.mxu0 0.0
        %2678 = vmatpush1.msra.mxu0 0.0
        %2679 = vmatprep.subr.mxu0 0.0
        %2680 = vmatpush1.msra.mxu0 0.0
        %2681 = vmatprep.subr.mxu0 0.0
        %2682 = vmatpush1.msra.mxu0 0.0
        %2683 = vmatprep.subr.mxu0 0.0
        %2684 = vmatpush1.msra.mxu0 0.0
        %2685 = vmatprep.subr.mxu0 0.0
        %2686 = vmatpush1.msra.mxu0 0.0
        %2687 = vmatprep.mubr.f32.mxu0 0.0
        %2688 = vmatmul.mubr.f32.gmra.mrb[0].mxu0 %v991
        %v2689 = vpop.f32.mrb[0].mxu0
        %v2690 = vadd.f32 0.0, %v2689
        %v2691 = vpop.f32.mrb[0].mxu0
        %v2692 = vadd.f32 0.0, %v2691
        %2693 = vmatprep.mubr.f32.mxu0 0.0
        %2694 = vmatmul.mubr.f32.gmra.mrb[0].mxu0 %v994
        %v2695 = vpop.f32.mrb[0].mxu0
        %v2696 = vadd.f32 0.0, %v2695
        %v2697 = vpop.f32.mrb[0].mxu0
        %v2698 = vadd.f32 0.0, %v2697
        %2699 = vmatprep.mubr.f32.mxu0 0.0
        %2700 = vmatmul.mubr.f32.gmra.mrb[0].mxu0 %v997
        %v2701 = vpop.f32.mrb[0].mxu0
        %v2702 = vadd.f32 0.0, %v2701
        %v2703 = vpop.f32.mrb[0].mxu0
        %v2704 = vadd.f32 0.0, %v2703
        %2705 = vmatprep.mubr.f32.mxu0 0.0
        %2706 = vmatmul.mubr.f32.gmra.mrb[0].mxu0 %v1000
        %v2707 = vpop.f32.mrb[0].mxu0
        %v2708 = vadd.f32 0.0, %v2707
        %v2709 = vpop.f32.mrb[0].mxu0
        %v2710 = vadd.f32 0.0, %v2709
        %2711 = vdwg.mxu0
        %2712 = vmatprep.subr.mxu0 %v2323
        %2713 = vmatpush1.msra.mxu0 %v2322
        %2714 = vmatprep.subr.mxu0 0.0
        %2715 = vmatpush1.msra.mxu0 0.0
        %2716 = vmatprep.subr.mxu0 0.0
        %2717 = vmatpush1.msra.mxu0 0.0
        %2718 = vmatprep.subr.mxu0 0.0
        %2719 = vmatpush1.msra.mxu0 0.0
        %2720 = vmatprep.subr.mxu0 0.0
        %2721 = vmatpush1.msra.mxu0 0.0
        %2722 = vmatprep.subr.mxu0 0.0
        %2723 = vmatpush1.msra.mxu0 0.0
        %2724 = vmatprep.subr.mxu0 0.0
        %2725 = vmatpush1.msra.mxu0 0.0
        %2726 = vmatprep.subr.mxu0 0.0
        %2727 = vmatpush1.msra.mxu0 0.0
        %2728 = vmatprep.subr.mxu0 0.0
        %2729 = vmatpush1.msra.mxu0 0.0
        %2730 = vmatprep.subr.mxu0 0.0
        %2731 = vmatpush1.msra.mxu0 0.0
        %2732 = vmatprep.subr.mxu0 0.0
        %2733 = vmatpush1.msra.mxu0 0.0
        %2734 = vmatprep.subr.mxu0 0.0
        %2735 = vmatpush1.msra.mxu0 0.0
        %2736 = vmatprep.subr.mxu0 0.0
        %2737 = vmatpush1.msra.mxu0 0.0
        %2738 = vmatprep.subr.mxu0 0.0
        %2739 = vmatpush1.msra.mxu0 0.0
        %2740 = vmatprep.subr.mxu0 0.0
        %2741 = vmatpush1.msra.mxu0 0.0
        %2742 = vmatprep.subr.mxu0 0.0
        %2743 = vmatpush1.msra.mxu0 0.0
        %2744 = vmatprep.subr.mxu0 0.0
        %2745 = vmatpush1.msra.mxu0 0.0
        %2746 = vmatprep.subr.mxu0 0.0
        %2747 = vmatpush1.msra.mxu0 0.0
        %2748 = vmatprep.subr.mxu0 0.0
        %2749 = vmatpush1.msra.mxu0 0.0
        %2750 = vmatprep.subr.mxu0 0.0
        %2751 = vmatpush1.msra.mxu0 0.0
        %2752 = vmatprep.subr.mxu0 0.0
        %2753 = vmatpush1.msra.mxu0 0.0
        %2754 = vmatprep.subr.mxu0 0.0
        %2755 = vmatpush1.msra.mxu0 0.0
        %2756 = vmatprep.subr.mxu0 0.0
        %2757 = vmatpush1.msra.mxu0 0.0
        %2758 = vmatprep.subr.mxu0 0.0
        %2759 = vmatpush1.msra.mxu0 0.0
        %2760 = vmatprep.subr.mxu0 0.0
        %2761 = vmatpush1.msra.mxu0 0.0
        %2762 = vmatprep.subr.mxu0 0.0
        %2763 = vmatpush1.msra.mxu0 0.0
        %2764 = vmatprep.subr.mxu0 0.0
        %2765 = vmatpush1.msra.mxu0 0.0
        %2766 = vmatprep.subr.mxu0 0.0
        %2767 = vmatpush1.msra.mxu0 0.0
        %2768 = vmatprep.subr.mxu0 0.0
        %2769 = vmatpush1.msra.mxu0 0.0
        %2770 = vmatprep.subr.mxu0 0.0
        %2771 = vmatpush1.msra.mxu0 0.0
        %2772 = vmatprep.subr.mxu0 0.0
        %2773 = vmatpush1.msra.mxu0 0.0
        %2774 = vmatprep.subr.mxu0 0.0
        %2775 = vmatpush1.msra.mxu0 0.0
        %2776 = vmatprep.mubr.f32.mxu0 0.0
        %2777 = vmatmul.mubr.f32.gmra.mrb[0].mxu0 %v991
        %v2778 = vpop.f32.mrb[0].mxu0
        %v2779 = vadd.f32 0.0, %v2778
        %v2780 = vpop.f32.mrb[0].mxu0
        %v2781 = vadd.f32 0.0, %v2780
        %2782 = vmatprep.mubr.f32.mxu0 0.0
        %2783 = vmatmul.mubr.f32.gmra.mrb[0].mxu0 %v994
        %v2784 = vpop.f32.mrb[0].mxu0
        %v2785 = vadd.f32 0.0, %v2784
        %v2786 = vpop.f32.mrb[0].mxu0
        %v2787 = vadd.f32 0.0, %v2786
        %2788 = vmatprep.mubr.f32.mxu0 0.0
        %2789 = vmatmul.mubr.f32.gmra.mrb[0].mxu0 %v997
        %v2790 = vpop.f32.mrb[0].mxu0
        %v2791 = vadd.f32 0.0, %v2790
        %v2792 = vpop.f32.mrb[0].mxu0
        %v2793 = vadd.f32 0.0, %v2792
        %2794 = vmatprep.mubr.f32.mxu0 0.0
        %2795 = vmatmul.mubr.f32.gmra.mrb[0].mxu0 %v1000
        %v2796 = vpop.f32.mrb[0].mxu0
        %v2797 = vadd.f32 0.0, %v2796
        %v2798 = vpop.f32.mrb[0].mxu0
        %v2799 = vadd.f32 0.0, %v2798
        %2800 = vdwg.mxu0
        %v2801 = vadd.f32 %v2512, %v2423
        %v2802 = vadd.f32 %v2514, %v2425
        %v2803 = vadd.f32 %v2518, %v2429
        %v2804 = vadd.f32 %v2520, %v2431
        %v2805 = vadd.f32 %v2524, %v2435
        %v2806 = vadd.f32 %v2526, %v2437
        %v2807 = vadd.f32 %v2530, %v2441
        %v2808 = vadd.f32 %v2532, %v2443
        %v2809 = vmax.f32 %v2801, 0.0
        %v2810 = vmax.f32 %v2802, 0.0
        %v2811 = vmax.f32 %v2803, 0.0
        %v2812 = vmax.f32 %v2804, 0.0
        %v2813 = vmax.f32 %v2805, 0.0
        %v2814 = vmax.f32 %v2806, 0.0
        %v2815 = vmax.f32 %v2807, 0.0
        %v2816 = vmax.f32 %v2808, 0.0
        %v2817 = vadd.f32 %v2601, %v2423
        %v2818 = vadd.f32 %v2603, %v2425
        %v2819 = vadd.f32 %v2607, %v2429
        %v2820 = vadd.f32 %v2609, %v2431
        %v2821 = vadd.f32 %v2613, %v2435
        %v2822 = vadd.f32 %v2615, %v2437
        %v2823 = vadd.f32 %v2619, %v2441
        %v2824 = vadd.f32 %v2621, %v2443
        %v2825 = vmax.f32 %v2817, 0.0
        %v2826 = vmax.f32 %v2818, 0.0
        %v2827 = vmax.f32 %v2819, 0.0
        %v2828 = vmax.f32 %v2820, 0.0
        %v2829 = vmax.f32 %v2821, 0.0
        %v2830 = vmax.f32 %v2822, 0.0
        %v2831 = vmax.f32 %v2823, 0.0
        %v2832 = vmax.f32 %v2824, 0.0
        %v2833 = vadd.f32 %v2690, %v2423
        %v2834 = vadd.f32 %v2692, %v2425
        %v2835 = vadd.f32 %v2696, %v2429
        %v2836 = vadd.f32 %v2698, %v2431
        %v2837 = vadd.f32 %v2702, %v2435
        %v2838 = vadd.f32 %v2704, %v2437
        %v2839 = vadd.f32 %v2708, %v2441
        %v2840 = vadd.f32 %v2710, %v2443
        %v2841 = vmax.f32 %v2833, 0.0
        %v2842 = vmax.f32 %v2834, 0.0
        %v2843 = vmax.f32 %v2835, 0.0
        %v2844 = vmax.f32 %v2836, 0.0
        %v2845 = vmax.f32 %v2837, 0.0
        %v2846 = vmax.f32 %v2838, 0.0
        %v2847 = vmax.f32 %v2839, 0.0
        %v2848 = vmax.f32 %v2840, 0.0
        %v2849 = vadd.f32 %v2779, %v2423
        %v2850 = vadd.f32 %v2781, %v2425
        %v2851 = vadd.f32 %v2785, %v2429
        %v2852 = vadd.f32 %v2787, %v2431
        %v2853 = vadd.f32 %v2791, %v2435
        %v2854 = vadd.f32 %v2793, %v2437
        %v2855 = vadd.f32 %v2797, %v2441
        %v2856 = vadd.f32 %v2799, %v2443
        %v2857 = vmax.f32 %v2849, 0.0
        %v2858 = vmax.f32 %v2850, 0.0
        %v2859 = vmax.f32 %v2851, 0.0
        %v2860 = vmax.f32 %v2852, 0.0
        %v2861 = vmax.f32 %v2853, 0.0
        %v2862 = vmax.f32 %v2854, 0.0
        %v2863 = vmax.f32 %v2855, 0.0
        %v2864 = vmax.f32 %v2856, 0.0
        %2865 = vmatprep.subr.mxu0 %v2810
        %2866 = vmatpush1.msra.mxu0 %v2809
        %2867 = vmatprep.subr.mxu0 %v2812
        %2868 = vmatpush1.msra.mxu0 %v2811
        %2869 = vmatprep.subr.mxu0 %v2814
        %2870 = vmatpush1.msra.mxu0 %v2813
        %2871 = vmatprep.subr.mxu0 %v2816
        %2872 = vmatpush1.msra.mxu0 %v2815
        %2873 = vmatprep.subr.mxu0 0.0
        %2874 = vmatpush1.msra.mxu0 0.0
        %2875 = vmatprep.subr.mxu0 0.0
        %2876 = vmatpush1.msra.mxu0 0.0
        %2877 = vmatprep.subr.mxu0 0.0
        %2878 = vmatpush1.msra.mxu0 0.0
        %2879 = vmatprep.subr.mxu0 0.0
        %2880 = vmatpush1.msra.mxu0 0.0
        %2881 = vmatprep.subr.mxu0 0.0
        %2882 = vmatpush1.msra.mxu0 0.0
        %2883 = vmatprep.subr.mxu0 0.0
        %2884 = vmatpush1.msra.mxu0 0.0
        %2885 = vmatprep.subr.mxu0 0.0
        %2886 = vmatpush1.msra.mxu0 0.0
        %2887 = vmatprep.subr.mxu0 0.0
        %2888 = vmatpush1.msra.mxu0 0.0
        %2889 = vmatprep.subr.mxu0 0.0
        %2890 = vmatpush1.msra.mxu0 0.0
        %2891 = vmatprep.subr.mxu0 0.0
        %2892 = vmatpush1.msra.mxu0 0.0
        %2893 = vmatprep.subr.mxu0 0.0
        %2894 = vmatpush1.msra.mxu0 0.0
        %2895 = vmatprep.subr.mxu0 0.0
        %2896 = vmatpush1.msra.mxu0 0.0
        %2897 = vmatprep.subr.mxu0 0.0
        %2898 = vmatpush1.msra.mxu0 0.0
        %2899 = vmatprep.subr.mxu0 0.0
        %2900 = vmatpush1.msra.mxu0 0.0
        %2901 = vmatprep.subr.mxu0 0.0
        %2902 = vmatpush1.msra.mxu0 0.0
        %2903 = vmatprep.subr.mxu0 0.0
        %2904 = vmatpush1.msra.mxu0 0.0
        %2905 = vmatprep.subr.mxu0 0.0
        %2906 = vmatpush1.msra.mxu0 0.0
        %2907 = vmatprep.subr.mxu0 0.0
        %2908 = vmatpush1.msra.mxu0 0.0
        %2909 = vmatprep.subr.mxu0 0.0
        %2910 = vmatpush1.msra.mxu0 0.0
        %2911 = vmatprep.subr.mxu0 0.0
        %2912 = vmatpush1.msra.mxu0 0.0
        %2913 = vmatprep.subr.mxu0 0.0
        %2914 = vmatpush1.msra.mxu0 0.0
        %2915 = vmatprep.subr.mxu0 0.0
        %2916 = vmatpush1.msra.mxu0 0.0
        %2917 = vmatprep.subr.mxu0 0.0
        %2918 = vmatpush1.msra.mxu0 0.0
        %2919 = vmatprep.subr.mxu0 0.0
        %2920 = vmatpush1.msra.mxu0 0.0
        %2921 = vmatprep.subr.mxu0 0.0
        %2922 = vmatpush1.msra.mxu0 0.0
        %2923 = vmatprep.subr.mxu0 0.0
        %2924 = vmatpush1.msra.mxu0 0.0
        %2925 = vmatprep.subr.mxu0 0.0
        %2926 = vmatpush1.msra.mxu0 0.0
        %2927 = vmatprep.subr.mxu0 0.0
        %2928 = vmatpush1.msra.mxu0 0.0
        %2929 = vmatprep.mubr.f32.mxu0 0.0
        %2930 = vmatmul.mubr.f32.gmra.mrb[0].mxu0 %v1424
        %v2931 = vpop.f32.mrb[0].mxu0
        %v2932 = vadd.f32 0.0, %v2931
        %v2933 = vpop.f32.mrb[0].mxu0
        %v2934 = vadd.f32 0.0, %v2933
        %2935 = vdwg.mxu0
        %2936 = vmatprep.subr.mxu0 %v2826
        %2937 = vmatpush1.msra.mxu0 %v2825
        %2938 = vmatprep.subr.mxu0 %v2828
        %2939 = vmatpush1.msra.mxu0 %v2827
        %2940 = vmatprep.subr.mxu0 %v2830
        %2941 = vmatpush1.msra.mxu0 %v2829
        %2942 = vmatprep.subr.mxu0 %v2832
        %2943 = vmatpush1.msra.mxu0 %v2831
        %2944 = vmatprep.subr.mxu0 0.0
        %2945 = vmatpush1.msra.mxu0 0.0
        %2946 = vmatprep.subr.mxu0 0.0
        %2947 = vmatpush1.msra.mxu0 0.0
        %2948 = vmatprep.subr.mxu0 0.0
        %2949 = vmatpush1.msra.mxu0 0.0
        %2950 = vmatprep.subr.mxu0 0.0
        %2951 = vmatpush1.msra.mxu0 0.0
        %2952 = vmatprep.subr.mxu0 0.0
        %2953 = vmatpush1.msra.mxu0 0.0
        %2954 = vmatprep.subr.mxu0 0.0
        %2955 = vmatpush1.msra.mxu0 0.0
        %2956 = vmatprep.subr.mxu0 0.0
        %2957 = vmatpush1.msra.mxu0 0.0
        %2958 = vmatprep.subr.mxu0 0.0
        %2959 = vmatpush1.msra.mxu0 0.0
        %2960 = vmatprep.subr.mxu0 0.0
        %2961 = vmatpush1.msra.mxu0 0.0
        %2962 = vmatprep.subr.mxu0 0.0
        %2963 = vmatpush1.msra.mxu0 0.0
        %2964 = vmatprep.subr.mxu0 0.0
        %2965 = vmatpush1.msra.mxu0 0.0
        %2966 = vmatprep.subr.mxu0 0.0
        %2967 = vmatpush1.msra.mxu0 0.0
        %2968 = vmatprep.subr.mxu0 0.0
        %2969 = vmatpush1.msra.mxu0 0.0
        %2970 = vmatprep.subr.mxu0 0.0
        %2971 = vmatpush1.msra.mxu0 0.0
        %2972 = vmatprep.subr.mxu0 0.0
        %2973 = vmatpush1.msra.mxu0 0.0
        %2974 = vmatprep.subr.mxu0 0.0
        %2975 = vmatpush1.msra.mxu0 0.0
        %2976 = vmatprep.subr.mxu0 0.0
        %2977 = vmatpush1.msra.mxu0 0.0
        %2978 = vmatprep.subr.mxu0 0.0
        %2979 = vmatpush1.msra.mxu0 0.0
        %2980 = vmatprep.subr.mxu0 0.0
        %2981 = vmatpush1.msra.mxu0 0.0
        %2982 = vmatprep.subr.mxu0 0.0
        %2983 = vmatpush1.msra.mxu0 0.0
        %2984 = vmatprep.subr.mxu0 0.0
        %2985 = vmatpush1.msra.mxu0 0.0
        %2986 = vmatprep.subr.mxu0 0.0
        %2987 = vmatpush1.msra.mxu0 0.0
        %2988 = vmatprep.subr.mxu0 0.0
        %2989 = vmatpush1.msra.mxu0 0.0
        %2990 = vmatprep.subr.mxu0 0.0
        %2991 = vmatpush1.msra.mxu0 0.0
        %2992 = vmatprep.subr.mxu0 0.0
        %2993 = vmatpush1.msra.mxu0 0.0
        %2994 = vmatprep.subr.mxu0 0.0
        %2995 = vmatpush1.msra.mxu0 0.0
        %2996 = vmatprep.subr.mxu0 0.0
        %2997 = vmatpush1.msra.mxu0 0.0
        %2998 = vmatprep.subr.mxu0 0.0
        %2999 = vmatpush1.msra.mxu0 0.0
        %3000 = vmatprep.mubr.f32.mxu0 0.0
        %3001 = vmatmul.mubr.f32.gmra.mrb[0].mxu0 %v1424
        %v3002 = vpop.f32.mrb[0].mxu0
        %v3003 = vadd.f32 0.0, %v3002
        %v3004 = vpop.f32.mrb[0].mxu0
        %v3005 = vadd.f32 0.0, %v3004
        %3006 = vdwg.mxu0
        %3007 = vmatprep.subr.mxu0 %v2842
        %3008 = vmatpush1.msra.mxu0 %v2841
        %3009 = vmatprep.subr.mxu0 %v2844
        %3010 = vmatpush1.msra.mxu0 %v2843
        %3011 = vmatprep.subr.mxu0 %v2846
        %3012 = vmatpush1.msra.mxu0 %v2845
        %3013 = vmatprep.subr.mxu0 %v2848
        %3014 = vmatpush1.msra.mxu0 %v2847
        %3015 = vmatprep.subr.mxu0 0.0
        %3016 = vmatpush1.msra.mxu0 0.0
        %3017 = vmatprep.subr.mxu0 0.0
        %3018 = vmatpush1.msra.mxu0 0.0
        %3019 = vmatprep.subr.mxu0 0.0
        %3020 = vmatpush1.msra.mxu0 0.0
        %3021 = vmatprep.subr.mxu0 0.0
        %3022 = vmatpush1.msra.mxu0 0.0
        %3023 = vmatprep.subr.mxu0 0.0
        %3024 = vmatpush1.msra.mxu0 0.0
        %3025 = vmatprep.subr.mxu0 0.0
        %3026 = vmatpush1.msra.mxu0 0.0
        %3027 = vmatprep.subr.mxu0 0.0
        %3028 = vmatpush1.msra.mxu0 0.0
        %3029 = vmatprep.subr.mxu0 0.0
        %3030 = vmatpush1.msra.mxu0 0.0
        %3031 = vmatprep.subr.mxu0 0.0
        %3032 = vmatpush1.msra.mxu0 0.0
        %3033 = vmatprep.subr.mxu0 0.0
        %3034 = vmatpush1.msra.mxu0 0.0
        %3035 = vmatprep.subr.mxu0 0.0
        %3036 = vmatpush1.msra.mxu0 0.0
        %3037 = vmatprep.subr.mxu0 0.0
        %3038 = vmatpush1.msra.mxu0 0.0
        %3039 = vmatprep.subr.mxu0 0.0
        %3040 = vmatpush1.msra.mxu0 0.0
        %3041 = vmatprep.subr.mxu0 0.0
        %3042 = vmatpush1.msra.mxu0 0.0
        %3043 = vmatprep.subr.mxu0 0.0
        %3044 = vmatpush1.msra.mxu0 0.0
        %3045 = vmatprep.subr.mxu0 0.0
        %3046 = vmatpush1.msra.mxu0 0.0
        %3047 = vmatprep.subr.mxu0 0.0
        %3048 = vmatpush1.msra.mxu0 0.0
        %3049 = vmatprep.subr.mxu0 0.0
        %3050 = vmatpush1.msra.mxu0 0.0
        %3051 = vmatprep.subr.mxu0 0.0
        %3052 = vmatpush1.msra.mxu0 0.0
        %3053 = vmatprep.subr.mxu0 0.0
        %3054 = vmatpush1.msra.mxu0 0.0
        %3055 = vmatprep.subr.mxu0 0.0
        %3056 = vmatpush1.msra.mxu0 0.0
        %3057 = vmatprep.subr.mxu0 0.0
        %3058 = vmatpush1.msra.mxu0 0.0
        %3059 = vmatprep.subr.mxu0 0.0
        %3060 = vmatpush1.msra.mxu0 0.0
        %3061 = vmatprep.subr.mxu0 0.0
        %3062 = vmatpush1.msra.mxu0 0.0
        %3063 = vmatprep.subr.mxu0 0.0
        %3064 = vmatpush1.msra.mxu0 0.0
        %3065 = vmatprep.subr.mxu0 0.0
        %3066 = vmatpush1.msra.mxu0 0.0
        %3067 = vmatprep.subr.mxu0 0.0
        %3068 = vmatpush1.msra.mxu0 0.0
        %3069 = vmatprep.subr.mxu0 0.0
        %3070 = vmatpush1.msra.mxu0 0.0
        %3071 = vmatprep.mubr.f32.mxu0 0.0
        %3072 = vmatmul.mubr.f32.gmra.mrb[0].mxu0 %v1424
        %v3073 = vpop.f32.mrb[0].mxu0
        %v3074 = vadd.f32 0.0, %v3073
        %v3075 = vpop.f32.mrb[0].mxu0
        %v3076 = vadd.f32 0.0, %v3075
        %3077 = vdwg.mxu0
        %3078 = vmatprep.subr.mxu0 %v2858
        %3079 = vmatpush1.msra.mxu0 %v2857
        %3080 = vmatprep.subr.mxu0 %v2860
        %3081 = vmatpush1.msra.mxu0 %v2859
        %3082 = vmatprep.subr.mxu0 %v2862
        %3083 = vmatpush1.msra.mxu0 %v2861
        %3084 = vmatprep.subr.mxu0 %v2864
        %3085 = vmatpush1.msra.mxu0 %v2863
        %3086 = vmatprep.subr.mxu0 0.0
        %3087 = vmatpush1.msra.mxu0 0.0
        %3088 = vmatprep.subr.mxu0 0.0
        %3089 = vmatpush1.msra.mxu0 0.0
        %3090 = vmatprep.subr.mxu0 0.0
        %3091 = vmatpush1.msra.mxu0 0.0
        %3092 = vmatprep.subr.mxu0 0.0
        %3093 = vmatpush1.msra.mxu0 0.0
        %3094 = vmatprep.subr.mxu0 0.0
        %3095 = vmatpush1.msra.mxu0 0.0
        %3096 = vmatprep.subr.mxu0 0.0
        %3097 = vmatpush1.msra.mxu0 0.0
        %3098 = vmatprep.subr.mxu0 0.0
        %3099 = vmatpush1.msra.mxu0 0.0
        %3100 = vmatprep.subr.mxu0 0.0
        %3101 = vmatpush1.msra.mxu0 0.0
        %3102 = vmatprep.subr.mxu0 0.0
        %3103 = vmatpush1.msra.mxu0 0.0
        %3104 = vmatprep.subr.mxu0 0.0
        %3105 = vmatpush1.msra.mxu0 0.0
        %3106 = vmatprep.subr.mxu0 0.0
        %3107 = vmatpush1.msra.mxu0 0.0
        %3108 = vmatprep.subr.mxu0 0.0
        %3109 = vmatpush1.msra.mxu0 0.0
        %3110 = vmatprep.subr.mxu0 0.0
        %3111 = vmatpush1.msra.mxu0 0.0
        %3112 = vmatprep.subr.mxu0 0.0
        %3113 = vmatpush1.msra.mxu0 0.0
        %3114 = vmatprep.subr.mxu0 0.0
        %3115 = vmatpush1.msra.mxu0 0.0
        %3116 = vmatprep.subr.mxu0 0.0
        %3117 = vmatpush1.msra.mxu0 0.0
        %3118 = vmatprep.subr.mxu0 0.0
        %3119 = vmatpush1.msra.mxu0 0.0
        %3120 = vmatprep.subr.mxu0 0.0
        %3121 = vmatpush1.msra.mxu0 0.0
        %3122 = vmatprep.subr.mxu0 0.0
        %3123 = vmatpush1.msra.mxu0 0.0
        %3124 = vmatprep.subr.mxu0 0.0
        %3125 = vmatpush1.msra.mxu0 0.0
        %3126 = vmatprep.subr.mxu0 0.0
        %3127 = vmatpush1.msra.mxu0 0.0
        %3128 = vmatprep.subr.mxu0 0.0
        %3129 = vmatpush1.msra.mxu0 0.0
        %3130 = vmatprep.subr.mxu0 0.0
        %3131 = vmatpush1.msra.mxu0 0.0
        %3132 = vmatprep.subr.mxu0 0.0
        %3133 = vmatpush1.msra.mxu0 0.0
        %3134 = vmatprep.subr.mxu0 0.0
        %3135 = vmatpush1.msra.mxu0 0.0
        %3136 = vmatprep.subr.mxu0 0.0
        %3137 = vmatpush1.msra.mxu0 0.0
        %3138 = vmatprep.subr.mxu0 0.0
        %3139 = vmatpush1.msra.mxu0 0.0
        %3140 = vmatprep.subr.mxu0 0.0
        %3141 = vmatpush1.msra.mxu0 0.0
        %3142 = vmatprep.mubr.f32.mxu0 0.0
        %3143 = vmatmul.mubr.f32.gmra.mrb[0].mxu0 %v1424
        %v3144 = vpop.f32.mrb[0].mxu0
        %v3145 = vadd.f32 0.0, %v3144
        %v3146 = vpop.f32.mrb[0].mxu0
        %v3147 = vadd.f32 0.0, %v3146
        %3148 = vdwg.mxu0
        %v3149 = vadd.f32 %v2932, %v1718
        %v3150 = vadd.f32 %v2934, %v1718
        %v3151 = vadd.f32 %v3003, %v1718
        %v3152 = vadd.f32 %v3005, %v1718
        %v3153 = vadd.f32 %v3074, %v1718
        %v3154 = vadd.f32 %v3076, %v1718
        %v3155 = vadd.f32 %v3145, %v1718
        %v3156 = vadd.f32 %v3147, %v1718
        %v3157 = vmax.f32 %v3149, 0.0
        %v3158 = vmax.f32 %v3150, 0.0
        %v3159 = vmax.f32 %v3151, 0.0
        %v3160 = vmax.f32 %v3152, 0.0
        %v3161 = vmax.f32 %v3153, 0.0
        %v3162 = vmax.f32 %v3154, 0.0
        %v3163 = vmax.f32 %v3155, 0.0
        %v3164 = vmax.f32 %v3156, 0.0
        %v3165 = vmax.f32 %v3157, %v3159
        %v3166 = vmax.f32 %v3158, %v3160
        %v3167 = vmax.f32 %v3165, %v3161
        %v3168 = vmax.f32 %v3166, %v3162
        %v3169 = vmax.f32 %v3167, %v3163
        %v3170 = vmax.f32 %v3168, %v3164
        %v3171 = vsub.f32 %v3157, %v3169
        %v3172 = vsub.f32 %v3158, %v3170
        %v3173 = vmul.f32 %v3171, 1.442695
        %v3174 = vpow.pop %v3173
        %v3175 = vmul.f32 %v3172, 1.442695
        %v3176 = vpow.pop %v3175
        %v3177 = vsub.f32 %v3159, %v3169
        %v3178 = vsub.f32 %v3160, %v3170
        %v3179 = vmul.f32 %v3177, 1.442695
        %v3180 = vpow.pop %v3179
        %v3181 = vmul.f32 %v3178, 1.442695
        %v3182 = vpow.pop %v3181
        %v3183 = vsub.f32 %v3161, %v3169
        %v3184 = vsub.f32 %v3162, %v3170
        %v3185 = vmul.f32 %v3183, 1.442695
        %v3186 = vpow.pop %v3185
        %v3187 = vmul.f32 %v3184, 1.442695
        %v3188 = vpow.pop %v3187
        %v3189 = vsub.f32 %v3163, %v3169
        %v3190 = vsub.f32 %v3164, %v3170
        %v3191 = vmul.f32 %v3189, 1.442695
        %v3192 = vpow.pop %v3191
        %v3193 = vmul.f32 %v3190, 1.442695
        %v3194 = vpow.pop %v3193
        %v3195 = vadd.f32 %v3174, %v3180
        %v3196 = vadd.f32 %v3176, %v3182
        %v3197 = vadd.f32 %v3195, %v3186
        %v3198 = vadd.f32 %v3196, %v3188
        %v3199 = vadd.f32 %v3197, %v3192
        %v3200 = vadd.f32 %v3198, %v3194
        %v3201 = vrcp.pop %v3199
        %v3202 = vrcp.pop %v3200
        %v3203 = vmul.f32 %v3199, %v3201
        %v3204 = vmul.f32 %v3200, %v3202
        %v3205 = vsub.f32 2.0, %v3203
        %v3206 = vsub.f32 2.0, %v3204
        %v3207 = vmul.f32 %v3201, %v3205
        %v3208 = vmul.f32 %v3202, %v3206
        %v3209 = vlaneseq
        %v3210 = vshrl.u32 %v3209, 7
        %v3211 = vsub.s32 0, %v3210
        %v3212 = vrot.slane %v3174, %v3211
        %v3213 = vlaneseq
        %v3214 = vshrl.u32 %v3213, 7
        %v3215 = vsub.s32 0, %v3214
        %v3216 = vrot.slane %v3176, %v3215
        %v3217 = vmul.f32 %v2809, %v3212
        %v3218 = vmul.f32 %v2810, %v3216
        %v3219 = vmul.f32 %v2811, %v3212
        %v3220 = vmul.f32 %v2812, %v3216
        %v3221 = vmul.f32 %v2813, %v3212
        %v3222 = vmul.f32 %v2814, %v3216
        %v3223 = vmul.f32 %v2815, %v3212
        %v3224 = vmul.f32 %v2816, %v3216
        %v3225 = vlaneseq
        %v3226 = vshrl.u32 %v3225, 7
        %v3227 = vsub.s32 0, %v3226
        %v3228 = vrot.slane %v3180, %v3227
        %v3229 = vlaneseq
        %v3230 = vshrl.u32 %v3229, 7
        %v3231 = vsub.s32 0, %v3230
        %v3232 = vrot.slane %v3182, %v3231
        %v3233 = vmul.f32 %v2825, %v3228
        %v3234 = vmul.f32 %v2826, %v3232
        %v3235 = vmul.f32 %v2827, %v3228
        %v3236 = vmul.f32 %v2828, %v3232
        %v3237 = vmul.f32 %v2829, %v3228
        %v3238 = vmul.f32 %v2830, %v3232
        %v3239 = vmul.f32 %v2831, %v3228
        %v3240 = vmul.f32 %v2832, %v3232
        %v3241 = vadd.f32 %v3217, %v3233
        %v3242 = vadd.f32 %v3218, %v3234
        %v3243 = vadd.f32 %v3219, %v3235
        %v3244 = vadd.f32 %v3220, %v3236
        %v3245 = vadd.f32 %v3221, %v3237
        %v3246 = vadd.f32 %v3222, %v3238
        %v3247 = vadd.f32 %v3223, %v3239
        %v3248 = vadd.f32 %v3224, %v3240
        %v3249 = vlaneseq
        %v3250 = vshrl.u32 %v3249, 7
        %v3251 = vsub.s32 0, %v3250
        %v3252 = vrot.slane %v3186, %v3251
        %v3253 = vlaneseq
        %v3254 = vshrl.u32 %v3253, 7
        %v3255 = vsub.s32 0, %v3254
        %v3256 = vrot.slane %v3188, %v3255
        %v3257 = vmul.f32 %v2841, %v3252
        %v3258 = vmul.f32 %v2842, %v3256
        %v3259 = vmul.f32 %v2843, %v3252
        %v3260 = vmul.f32 %v2844, %v3256
        %v3261 = vmul.f32 %v2845, %v3252
        %v3262 = vmul.f32 %v2846, %v3256
        %v3263 = vmul.f32 %v2847, %v3252
        %v3264 = vmul.f32 %v2848, %v3256
        %v3265 = vadd.f32 %v3241, %v3257
        %v3266 = vadd.f32 %v3242, %v3258
        %v3267 = vadd.f32 %v3243, %v3259
        %v3268 = vadd.f32 %v3244, %v3260
        %v3269 = vadd.f32 %v3245, %v3261
        %v3270 = vadd.f32 %v3246, %v3262
        %v3271 = vadd.f32 %v3247, %v3263
        %v3272 = vadd.f32 %v3248, %v3264
        %v3273 = vlaneseq
        %v3274 = vshrl.u32 %v3273, 7
        %v3275 = vsub.s32 0, %v3274
        %v3276 = vrot.slane %v3192, %v3275
        %v3277 = vlaneseq
        %v3278 = vshrl.u32 %v3277, 7
        %v3279 = vsub.s32 0, %v3278
        %v3280 = vrot.slane %v3194, %v3279
        %v3281 = vmul.f32 %v2857, %v3276
        %v3282 = vmul.f32 %v2858, %v3280
        %v3283 = vmul.f32 %v2859, %v3276
        %v3284 = vmul.f32 %v2860, %v3280
        %v3285 = vmul.f32 %v2861, %v3276
        %v3286 = vmul.f32 %v2862, %v3280
        %v3287 = vmul.f32 %v2863, %v3276
        %v3288 = vmul.f32 %v2864, %v3280
        %v3289 = vadd.f32 %v3265, %v3281
        %v3290 = vadd.f32 %v3266, %v3282
        %v3291 = vadd.f32 %v3267, %v3283
        %v3292 = vadd.f32 %v3268, %v3284
        %v3293 = vadd.f32 %v3269, %v3285
        %v3294 = vadd.f32 %v3270, %v3286
        %v3295 = vadd.f32 %v3271, %v3287
        %v3296 = vadd.f32 %v3272, %v3288
        %v3297 = vlaneseq
        %v3298 = vshrl.u32 %v3297, 7
        %v3299 = vsub.s32 0, %v3298
        %v3300 = vrot.slane %v3207, %v3299
        %v3301 = vlaneseq
        %v3302 = vshrl.u32 %v3301, 7
        %v3303 = vsub.s32 0, %v3302
        %v3304 = vrot.slane %v3208, %v3303
        %v3305 = vmul.f32 %v3289, %v3300
        %v3306 = vmul.f32 %v3290, %v3304
        %v3307 = vmul.f32 %v3291, %v3300
        %v3308 = vmul.f32 %v3292, %v3304
        %v3309 = vmul.f32 %v3293, %v3300
        %v3310 = vmul.f32 %v3294, %v3304
        %v3311 = vmul.f32 %v3295, %v3300
        %v3312 = vmul.f32 %v3296, %v3304
        %3313 = vmatprep.subr.mxu0 %v3306
        %3314 = vmatpush1.msra.mxu0 %v3305
        %3315 = vmatprep.subr.mxu0 %v3308
        %3316 = vmatpush1.msra.mxu0 %v3307
        %3317 = vmatprep.subr.mxu0 %v3310
        %3318 = vmatpush1.msra.mxu0 %v3309
        %3319 = vmatprep.subr.mxu0 %v3312
        %3320 = vmatpush1.msra.mxu0 %v3311
        %3321 = vmatprep.subr.mxu0 0.0
        %3322 = vmatpush1.msra.mxu0 0.0
        %3323 = vmatprep.subr.mxu0 0.0
        %3324 = vmatpush1.msra.mxu0 0.0
        %3325 = vmatprep.subr.mxu0 0.0
        %3326 = vmatpush1.msra.mxu0 0.0
        %3327 = vmatprep.subr.mxu0 0.0
        %3328 = vmatpush1.msra.mxu0 0.0
        %3329 = vmatprep.subr.mxu0 0.0
        %3330 = vmatpush1.msra.mxu0 0.0
        %3331 = vmatprep.subr.mxu0 0.0
        %3332 = vmatpush1.msra.mxu0 0.0
        %3333 = vmatprep.subr.mxu0 0.0
        %3334 = vmatpush1.msra.mxu0 0.0
        %3335 = vmatprep.subr.mxu0 0.0
        %3336 = vmatpush1.msra.mxu0 0.0
        %3337 = vmatprep.subr.mxu0 0.0
        %3338 = vmatpush1.msra.mxu0 0.0
        %3339 = vmatprep.subr.mxu0 0.0
        %3340 = vmatpush1.msra.mxu0 0.0
        %3341 = vmatprep.subr.mxu0 0.0
        %3342 = vmatpush1.msra.mxu0 0.0
        %3343 = vmatprep.subr.mxu0 0.0
        %3344 = vmatpush1.msra.mxu0 0.0
        %3345 = vmatprep.subr.mxu0 0.0
        %3346 = vmatpush1.msra.mxu0 0.0
        %3347 = vmatprep.subr.mxu0 0.0
        %3348 = vmatpush1.msra.mxu0 0.0
        %3349 = vmatprep.subr.mxu0 0.0
        %3350 = vmatpush1.msra.mxu0 0.0
        %3351 = vmatprep.subr.mxu0 0.0
        %3352 = vmatpush1.msra.mxu0 0.0
        %3353 = vmatprep.subr.mxu0 0.0
        %3354 = vmatpush1.msra.mxu0 0.0
        %3355 = vmatprep.subr.mxu0 0.0
        %3356 = vmatpush1.msra.mxu0 0.0
        %3357 = vmatprep.subr.mxu0 0.0
        %3358 = vmatpush1.msra.mxu0 0.0
        %3359 = vmatprep.subr.mxu0 0.0
        %3360 = vmatpush1.msra.mxu0 0.0
        %3361 = vmatprep.subr.mxu0 0.0
        %3362 = vmatpush1.msra.mxu0 0.0
        %3363 = vmatprep.subr.mxu0 0.0
        %3364 = vmatpush1.msra.mxu0 0.0
        %3365 = vmatprep.subr.mxu0 0.0
        %3366 = vmatpush1.msra.mxu0 0.0
        %3367 = vmatprep.subr.mxu0 0.0
        %3368 = vmatpush1.msra.mxu0 0.0
        %3369 = vmatprep.subr.mxu0 0.0
        %3370 = vmatpush1.msra.mxu0 0.0
        %3371 = vmatprep.subr.mxu0 0.0
        %3372 = vmatpush1.msra.mxu0 0.0
        %3373 = vmatprep.subr.mxu0 0.0
        %3374 = vmatpush1.msra.mxu0 0.0
        %3375 = vmatprep.subr.mxu0 0.0
        %3376 = vmatpush1.msra.mxu0 0.0
        %3377 = vmatprep.mubr.f32.mxu0 0.0
        %3378 = vmatmul.mubr.f32.gmra.mrb[0].mxu0 %v1894
        %v3379 = vpop.f32.mrb[0].mxu0
        %v3380 = vadd.f32 %v1886, %v3379
        %v3381 = vpop.f32.mrb[0].mxu0
        %v3382 = vadd.f32 %v1886, %v3381
        %3383 = vmatprep.mubr.f32.mxu0 0.0
        %3384 = vmatmul.mubr.f32.gmra.mrb[0].mxu0 %v1897
        %v3385 = vpop.f32.mrb[0].mxu0
        %v3386 = vadd.f32 %v1891, %v3385
        %v3387 = vpop.f32.mrb[0].mxu0
        %v3388 = vadd.f32 %v1891, %v3387
        %3389 = vdwg.mxu0
        %v3390 = vmax.f32 %v3380, 0.0
        %v3391 = vmax.f32 %v3382, 0.0
        %v3392 = vmax.f32 %v3386, 0.0
        %v3393 = vmax.f32 %v3388, 0.0
        %3394 = vst [vmem:[%s459 + $0x10] sm:$0xff] %v3390
        %3395 = vst [vmem:[%s459 + $0x18] sm:$0xff] %v3391
        %3396 = vst [vmem:[%s459 + $0x30] sm:$0xff] %v3392
        %3397 = vst [vmem:[%s459 + $0x38] sm:$0xff] %v3393
        %s3398 = sand.u32 %s265, 1
        %s3399 = scalar_lea.sflag [#allocation5], %s3398
        %s3400 = sand.u32 %s265, 1
        %s3401 = smul.addr %s3400, 64
        %s3402 = scalar_lea.vmem [#allocation4], %s3401
        // Predicated region
        $region84: #{tpu_custom_call.1} parent=78 // pred_check
          %p3403 = pneg %p275
        $region85: #{tpu_custom_call.1} parent=78 // pred_check_branch
          %3405 = sbr.rel (%p3403) target = $region87
        $region86: #{tpu_custom_call.1} parent=78 // pred_region
          %s3406 = smul.u32 4, %s31
          %s3408 = ssub.s32 1024, 1024
          %3409 = vsyncadd %s3399, %s3408
          %s3410 = smul.addr %s30, 16
          %s3411 = sadd.s32 %s3406, %s3410
          %s3412 = smul.addr %s3411, 128
          %s3413 = scalar_lea.hbm %s10, %s3412
          %s3414 = sshll.u32 %s3402, 4
          %s3415 = int_to_ptr.vmem [resolvable:$true] %s3414
          %3420 = dma.vmem_to_hbm [thread:$0]  %s3415, 1024, %s3413, %s3399, 512, 1024, 32
        $region87: #{tpu_custom_call.1} parent=78 // pred_fallthru
          _
      $region79: #{tpu_custom_call.1} parent=5 // pred_fallthru
        _
      %p3421 = scmp.le.s32.totalorder 2, %s21
      // Predicated region
      $region88: #{tpu_custom_call.1} parent=5 // pred_check
        %p3422 = pneg %p3421
      $region89: #{tpu_custom_call.1} parent=5 // pred_check_branch
        %3424 = sbr.rel (%p3422) target = $region91
      $region90: #{tpu_custom_call.1} parent=5 // pred_region
        %s3425 = ssub.s32 %s21, 2
        // Predicated region
        $region92: #{tpu_custom_call.1} parent=90 // pred_check
          %p3426 = pneg %p281
        $region93: #{tpu_custom_call.1} parent=90 // pred_check_branch
          %3428 = sbr.rel (%p3426) target = $region95
        $region94: #{tpu_custom_call.1} parent=90 // pred_region
          %s3429 = sand.u32 %s266, 1
          %s3430 = scalar_lea.sflag [#allocation5], %s3429
          %s3431 = sand.u32 %s266, 1
          %s3432 = smul.addr %s3431, 64
          %s3433 = scalar_lea.vmem [#allocation4], %s3432
          %3434 = dma.done %s3430, 1024
        $region95: #{tpu_custom_call.1} parent=90 // pred_fallthru
          _
      $region91: #{tpu_custom_call.1} parent=5 // pred_fallthru
        _
    $region6: #{tpu_custom_call.1} parent=1 // loop_footer
      %s25 = sadd.s32 1, %s21
    $region7: #{tpu_custom_call.1} parent=1 // loop_footer_branch
      %20 = sbr.rel target = $region3
    $region8: #{tpu_custom_call.1} parent=1 // loop_exit
      _
    %3435 = vsyncpa [#allocation5], 1
    %s3436 = scalar_lea.sflag [#allocation5], 1
    %3437 = vsyncpa %s3436, 1

</llo_original>
